<compile_context>
chip_gen: v6e
topology: v6e:2x2x1
jax: 0.10.0
libtpu: 0.0.40
codegen_flags: <defaults>
</compile_context>

<pallas_src>
import functools

import jax
import jax.numpy as jnp
from jax import lax
from jax.experimental import pallas as pl
from jax.experimental.pallas import tpu as pltpu


def encoder_gru_kernel(T, B, H, V,
                       ids_ref, e6_ref, bx6_ref, whh6_ref, bhn2_ref,
                       fcw_ref, fcb_ref,
                       out_ref, hid_ref,
                       xcat_ref):
    """Fused bidirectional GRU + fc/tanh head.

    ids_ref : (T*B, 2) int32   col 0 = token id at time t, col 1 = token id at time T-1-t
    e6_ref  : (2V, 6H)         embedding folded into input->gate weights; rows [0:V]
                               are selected by the forward-time token, rows [V:2V] by
                               the backward-time token.  Column layout (gate-major,
                               direction-minor): [r_f | r_b | z_f | z_b | n_f | n_b].
    bx6_ref : (1, 6H)          [b_ir+b_hr (f,b) | b_iz+b_hz (f,b) | b_in (f,b)]
    whh6_ref: (2H, 6H)         block-diagonal recurrent weights, same column layout
    bhn2_ref: (1, 2H)          [b_hn_f | b_hn_b]  (must stay inside r * (...))
    fcw_ref : (2H, H), fcb_ref : (1, H)
    out_ref : (T*B, 2H)        GRU outputs, fwd in lanes [:H], bwd in lanes [H:]
    hid_ref : (B, H)           tanh(fc(cat(h_f_final, h_b_final)))
    xcat_ref: (T*B, 6H)        VMEM scratch: hoisted input projections, step-major
    """
    H2, H4 = 2 * H, 4 * H

    # ---- Fused embedding + input projection: one stacked-one-hot MXU GEMM ----
    ids = ids_ref[...]                                              # (T*B, 2) int32
    ids_f = ids[:, 0:1]                                             # token at time t
    ids_b = ids[:, 1:2] + V                                         # token at time T-1-t
    iota = lax.broadcasted_iota(jnp.int32, (T * B, 2 * V), 1)
    onehot = jnp.logical_or(iota == ids_f, iota == ids_b).astype(jnp.float32)
    xcat_ref[...] = (jnp.dot(onehot, e6_ref[...],
                             preferred_element_type=jnp.float32)
                     + bx6_ref[...])

    # Hoist bias broadcast out of the loop (broadcast_in_dim is not CSE'd).
    bhn2 = jnp.broadcast_to(bhn2_ref[...], (B, H2))

    def sigmoid(x):
        # 0.5*(1 + tanh(0.5x)) == sigmoid(x); single EUP tanh, no divide.
        return 0.5 * (1.0 + jnp.tanh(0.5 * x))

    # ---- Single fused recurrence: one (B,2H)@(2H,6H) dot per step ----
    def body(t, h):                                                 # h: (B, 2H)
        row_f = pl.multiple_of(t * B, B)
        row_b = pl.multiple_of((T - 1 - t) * B, B)

        gx = xcat_ref[pl.ds(row_f, B), :]                           # (B, 6H)
        hp = jnp.dot(h, whh6_ref[...],
                     preferred_element_type=jnp.float32)            # (B, 6H)

        r = sigmoid(gx[:, :H2] + hp[:, :H2])                        # (B, 2H)
        z = sigmoid(gx[:, H2:H4] + hp[:, H2:H4])                    # (B, 2H)
        n = jnp.tanh(gx[:, H4:] + r * (hp[:, H4:] + bhn2))          # (B, 2H)
        h = (1.0 - z) * n + z * h                                   # (B, 2H)

        out_ref[pl.ds(row_f, B), pl.ds(0, H)] = h[:, :H]            # fwd @ time t
        out_ref[pl.ds(row_b, B), pl.ds(H, H)] = h[:, H:]            # bwd @ time T-1-t
        return h

    h0 = jnp.zeros((B, H2), jnp.float32)
    h = lax.fori_loop(0, T, body, h0, unroll=True)

    # ---- hidden = tanh(fc(cat(h_f, h_b))); h already holds [h_f | h_b] ----
    hid_ref[...] = jnp.tanh(
        jnp.dot(h, fcw_ref[...], preferred_element_type=jnp.float32)
        + fcb_ref[...])


def encoder_forward(src, kp):
    """src: (B, T) int32 token ids.  Returns (outputs (T, B, 2H), hidden (B, H))."""
    B, T = src.shape
    H, V = kp["H"], kp["V"]
    Bp = ((B + 7) // 8) * 8                       # pad batch to full sublanes

    # Step-major token ids: col 0 = time t (forward), col 1 = time T-1-t (backward).
    ids_f = src.T                                                   # (T, B)
    ids_b = src[:, ::-1].T                                          # (T, B)
    ids = jnp.stack([ids_f, ids_b], axis=-1).astype(jnp.int32)      # (T, B, 2)
    if Bp != B:
        ids = jnp.pad(ids, ((0, 0), (0, Bp - B), (0, 0)))           # pad ids = token 0
    ids = ids.reshape(T * Bp, 2)

    kernel = functools.partial(encoder_gru_kernel, T, Bp, H, V)
    vmem = pl.BlockSpec(memory_space=pltpu.MemorySpace.VMEM)

    out2d, hidden = pl.pallas_call(
        kernel,
        out_shape=(
            jax.ShapeDtypeStruct((T * Bp, 2 * H), jnp.float32),
            jax.ShapeDtypeStruct((Bp, H), jnp.float32),
        ),
        in_specs=[vmem] * 7,
        out_specs=(vmem, vmem),
        scratch_shapes=[
            pltpu.VMEM((T * Bp, 6 * H), jnp.float32),   # hoisted x-projections
        ],
    )(ids, kp["e6"], kp["bx6"], kp["whh6"], kp["bhn2"], kp["fc_w"], kp["fc_b"])

    outputs = out2d.reshape(T, Bp, 2 * H)[:, :B, :]                 # drop batch pad
    hidden = hidden[:B, :]
    return outputs, hidden


# --------------------------------------------------------------------------
# Parameter handling: torch-style params -> fused kernel params, plus a
# pure-JAX reference that mirrors torch.nn.GRU(bidirectional=True) + Linear.
# --------------------------------------------------------------------------

def init_params(key, vocab, H):
    """PyTorch-layout parameters (weight_ih_l0: (3H, H), bias: (3H,), etc.)."""
    ks = jax.random.split(key, 12)
    bound = 1.0 / jnp.sqrt(jnp.float32(H))
    u = lambda k, s: jax.random.uniform(k, s, jnp.float32, -bound, bound)
    return {
        "embedding": jax.random.normal(ks[0], (vocab, H), jnp.float32),
        "w_ih_f": u(ks[1], (3 * H, H)), "w_hh_f": u(ks[2], (3 * H, H)),
        "b_ih_f": u(ks[3], (3 * H,)),   "b_hh_f": u(ks[4], (3 * H,)),
        "w_ih_b": u(ks[5], (3 * H, H)), "w_hh_b": u(ks[6], (3 * H, H)),
        "b_ih_b": u(ks[7], (3 * H,)),   "b_hh_b": u(ks[8], (3 * H,)),
        "fc_w": u(ks[9], (H, 2 * H)),   "fc_b": u(ks[10], (H,)),
    }


def prepare_kernel_params(p):
    """Fold embedding into input projections, fuse both directions + gates."""
    V, H = p["embedding"].shape
    E = p["embedding"].astype(jnp.float32)

    def split3T(w):  # (3H, H) torch layout -> r,z,n each as (H, H) "x @ W" form
        return w[:H].T, w[H:2 * H].T, w[2 * H:].T

    wir_f, wiz_f, win_f = split3T(p["w_ih_f"])
    whr_f, whz_f, whn_f = split3T(p["w_hh_f"])
    wir_b, wiz_b, win_b = split3T(p["w_ih_b"])
    whr_b, whz_b, whn_b = split3T(p["w_hh_b"])

    # Embedding folded into input->gate weights; stacked one-hot selects rows
    # [0:V] with the forward-time token and [V:2V] with the backward-time token.
    # Column layout (gate-major, direction-minor): [r_f | r_b | z_f | z_b | n_f | n_b].
    E6 = jnp.zeros((2 * V, 6 * H), jnp.float32)
    E6 = E6.at[:V, 0 * H:1 * H].set(E @ wir_f)
    E6 = E6.at[:V, 2 * H:3 * H].set(E @ wiz_f)
    E6 = E6.at[:V, 4 * H:5 * H].set(E @ win_f)
    E6 = E6.at[V:, 1 * H:2 * H].set(E @ wir_b)
    E6 = E6.at[V:, 3 * H:4 * H].set(E @ wiz_b)
    E6 = E6.at[V:, 5 * H:6 * H].set(E @ win_b)

    def b3(b):
        return b[:H], b[H:2 * H], b[2 * H:]

    bir_f, biz_f, bin_f = b3(p["b_ih_f"]); bhr_f, bhz_f, bhn_f = b3(p["b_hh_f"])
    bir_b, biz_b, bin_b = b3(p["b_ih_b"]); bhr_b, bhz_b, bhn_b = b3(p["b_hh_b"])

    bx6 = jnp.concatenate([bir_f + bhr_f, bir_b + bhr_b,
                           biz_f + bhz_f, biz_b + bhz_b,
                           bin_f, bin_b]).reshape(1, 6 * H)
    bhn2 = jnp.concatenate([bhn_f, bhn_b]).reshape(1, 2 * H)

    # Block-diagonal recurrent weights: [h_f | h_b] @ Whh6 -> all 6 gate pre-acts.
    Whh6 = jnp.zeros((2 * H, 6 * H), jnp.float32)
    Whh6 = Whh6.at[:H, 0 * H:1 * H].set(whr_f)
    Whh6 = Whh6.at[H:, 1 * H:2 * H].set(whr_b)
    Whh6 = Whh6.at[:H, 2 * H:3 * H].set(whz_f)
    Whh6 = Whh6.at[H:, 3 * H:4 * H].set(whz_b)
    Whh6 = Whh6.at[:H, 4 * H:5 * H].set(whn_f)
    Whh6 = Whh6.at[H:, 5 * H:6 * H].set(whn_b)

    return {
        "V": V, "H": H,
        "e6": E6, "bx6": bx6, "whh6": Whh6, "bhn2": bhn2,
        "fc_w": p["fc_w"].T.astype(jnp.float32),                    # (2H, H)
        "fc_b": p["fc_b"].reshape(1, H).astype(jnp.float32),
    }


def reference_forward(src, p):
    """Pure-JAX reference, PyTorch GRU semantics (gate order r, z, n)."""
    emb = p["embedding"][src]                                       # (B, T, H)
    emb = jnp.transpose(emb, (1, 0, 2)).astype(jnp.float32)         # (T, B, H)
    T, B, H = emb.shape

    def run_direction(order, w_ih, w_hh, b_ih, b_hh):
        h = jnp.zeros((B, H), jnp.float32)
        outs = [None] * T
        for t in order:
            gi = emb[t] @ w_ih.T + b_ih                             # (B, 3H)
            gh = h @ w_hh.T + b_hh                                  # (B, 3H)
            r = jax.nn.sigmoid(gi[:, :H] + gh[:, :H])
            z = jax.nn.sigmoid(gi[:, H:2 * H] + gh[:, H:2 * H])
            n = jnp.tanh(gi[:, 2 * H:] + r * gh[:, 2 * H:])
            h = (1.0 - z) * n + z * h
            outs[t] = h
        return jnp.stack(outs), h

    out_f, h_f = run_direction(range(T),
                               p["w_ih_f"], p["w_hh_f"], p["b_ih_f"], p["b_hh_f"])
    out_b, h_b = run_direction(range(T - 1, -1, -1),
                               p["w_ih_b"], p["w_hh_b"], p["b_ih_b"], p["b_hh_b"])

    outputs = jnp.concatenate([out_f, out_b], axis=-1)              # (T, B, 2H)
    hidden = jnp.tanh(jnp.concatenate([h_f, h_b], axis=-1) @ p["fc_w"].T + p["fc_b"])
    return outputs, hidden


if __name__ == "__main__":
    VOCAB = 16      # input_size (vocab)
    HIDDEN = 128    # hidden_size (lane-aligned)
    BATCH = 4       # padded to 8 sublanes inside the wrapper
    TIME = 8

    key = jax.random.PRNGKey(0)
    pkey, skey = jax.random.split(key)
    torch_params = init_params(pkey, VOCAB, HIDDEN)
    params = prepare_kernel_params(torch_params)
    src = jax.random.randint(skey, (BATCH, TIME), 0, VOCAB, dtype=jnp.int32)

    outputs, hidden = encoder_forward(src, params)
    jax.block_until_ready((outputs, hidden))

    ref_out, ref_hid = reference_forward(src, torch_params)
    assert outputs.shape == (TIME, BATCH, 2 * HIDDEN)
    assert hidden.shape == (BATCH, HIDDEN)
    # Tolerance accounts for MXU reduced-precision f32 matmul passes across the
    # 8-step recurrence (both implementations use MXU dots, but different fusions).
    assert jnp.allclose(outputs, ref_out, atol=1e-2, rtol=1e-2), \
        float(jnp.max(jnp.abs(outputs - ref_out)))
    assert jnp.allclose(hidden, ref_hid, atol=1e-2, rtol=1e-2), \
        float(jnp.max(jnp.abs(hidden - ref_hid)))

    print("KERNEL_OK")
</pallas_src>

<mosaic_0001>
module attributes {stable_mosaic.version = 11 : i64} {
  func.func @encoder_gru_kernel(%arg0: memref<64x2xi32, #tpu.memory_space<vmem>>, %arg1: memref<32x768xf32, #tpu.memory_space<vmem>>, %arg2: memref<1x768xf32, #tpu.memory_space<vmem>>, %arg3: memref<256x768xf32, #tpu.memory_space<vmem>>, %arg4: memref<1x256xf32, #tpu.memory_space<vmem>>, %arg5: memref<256x128xf32, #tpu.memory_space<vmem>>, %arg6: memref<1x128xf32, #tpu.memory_space<vmem>>, %arg7: memref<64x256xf32, #tpu.memory_space<vmem>>, %arg8: memref<8x128xf32, #tpu.memory_space<vmem>>, %arg9: memref<64x768xf32, #tpu.memory_space<vmem>>) attributes {dimension_semantics = [], scalar_prefetch = 0 : i64, scratch_operands = 1 : i64, tpu.core_type = #tpu.core_type<tc>} {
    %c0 = arith.constant 0 : index
    %c0_0 = arith.constant 0 : index
    %0 = vector.load %arg0[%c0, %c0_0] : memref<64x2xi32, #tpu.memory_space<vmem>>, vector<64x2xi32>
    %1 = vector.extract_strided_slice %0 {offsets = [0, 0], sizes = [64, 1], strides = [1, 1]} : vector<64x2xi32> to vector<64x1xi32>
    %2 = vector.extract_strided_slice %0 {offsets = [0, 1], sizes = [64, 1], strides = [1, 1]} : vector<64x2xi32> to vector<64x1xi32>
    %c16_i32 = arith.constant 16 : i32
    %3 = vector.broadcast %c16_i32 : i32 to vector<64x1xi32>
    %4 = arith.addi %2, %3 : vector<64x1xi32>
    %5 = tpu.iota {dimensions = array<i32: 1>} : vector<64x32xi32>
    %6 = vector.broadcast %1 : vector<64x1xi32> to vector<64x32xi32>
    %7 = arith.cmpi eq, %5, %6 : vector<64x32xi32>
    %8 = vector.broadcast %4 : vector<64x1xi32> to vector<64x32xi32>
    %9 = arith.cmpi eq, %5, %8 : vector<64x32xi32>
    %10 = arith.ori %7, %9 : vector<64x32xi1>
    %11 = arith.extui %10 : vector<64x32xi1> to vector<64x32xi32>
    %12 = arith.sitofp %11 : vector<64x32xi32> to vector<64x32xf32>
    %c0_1 = arith.constant 0 : index
    %c0_2 = arith.constant 0 : index
    %13 = vector.load %arg1[%c0_1, %c0_2] : memref<32x768xf32, #tpu.memory_space<vmem>>, vector<32x768xf32>
    %cst = arith.constant dense<0.000000e+00> : vector<64x768xf32>
    %14 = tpu.matmul %12, %13, %cst {dimension_numbers = #tpu.dot_dimension_numbers<[1], [0], [0], [1], [0, 0, 1, 1], [], []>} : vector<64x32xf32>, vector<32x768xf32>, vector<64x768xf32> -> vector<64x768xf32>
    %c0_3 = arith.constant 0 : index
    %c0_4 = arith.constant 0 : index
    %15 = vector.load %arg2[%c0_3, %c0_4] : memref<1x768xf32, #tpu.memory_space<vmem>>, vector<1x768xf32>
    %16 = vector.broadcast %15 : vector<1x768xf32> to vector<64x768xf32>
    %17 = arith.addf %14, %16 : vector<64x768xf32>
    %c0_5 = arith.constant 0 : index
    %c0_6 = arith.constant 0 : index
    %18 = vector.load %arg9[%c0_5, %c0_6] : memref<64x768xf32, #tpu.memory_space<vmem>>, vector<64x768xf32>
    tpu.vector_store %arg9[%c0_5, %c0_6], %17 {strides = array<i32>} : memref<64x768xf32, #tpu.memory_space<vmem>>, vector<64x768xf32>,
    %c0_7 = arith.constant 0 : index
    %c0_8 = arith.constant 0 : index
    %19 = vector.load %arg4[%c0_7, %c0_8] : memref<1x256xf32, #tpu.memory_space<vmem>>, vector<1x256xf32>
    %20 = vector.shape_cast %19 : vector<1x256xf32> to vector<1x256xf32>
    %21 = vector.broadcast %20 : vector<1x256xf32> to vector<8x256xf32>
    %cst_9 = arith.constant 0.000000e+00 : f32
    %22 = vector.broadcast %cst_9 : f32 to vector<8x256xf32>
    %c0_i32 = arith.constant 0 : i32
    %c8_i32 = arith.constant 8 : i32
    %23 = arith.muli %c0_i32, %c8_i32 : i32
    %24 = tpu.assume_multiple %23, 8 : i32
    %c7_i32 = arith.constant 7 : i32
    %25 = arith.subi %c7_i32, %c0_i32 : i32
    %c8_i32_10 = arith.constant 8 : i32
    %26 = arith.muli %25, %c8_i32_10 : i32
    %27 = tpu.assume_multiple %26, 8 : i32
    %28 = arith.index_cast %24 : i32 to index
    %c0_11 = arith.constant 0 : index
    %29 = vector.load %arg9[%28, %c0_11] : memref<64x768xf32, #tpu.memory_space<vmem>>, vector<8x768xf32>
    %c0_12 = arith.constant 0 : index
    %c0_13 = arith.constant 0 : index
    %30 = vector.load %arg3[%c0_12, %c0_13] : memref<256x768xf32, #tpu.memory_space<vmem>>, vector<256x768xf32>
    %cst_14 = arith.constant dense<0.000000e+00> : vector<8x768xf32>
    %31 = tpu.matmul %22, %30, %cst_14 {dimension_numbers = #tpu.dot_dimension_numbers<[1], [0], [0], [1], [0, 0, 1, 1], [], []>} : vector<8x256xf32>, vector<256x768xf32>, vector<8x768xf32> -> vector<8x768xf32>
    %32 = vector.extract_strided_slice %29 {offsets = [0, 0], sizes = [8, 256], strides = [1, 1]} : vector<8x768xf32> to vector<8x256xf32>
    %33 = vector.extract_strided_slice %31 {offsets = [0, 0], sizes = [8, 256], strides = [1, 1]} : vector<8x768xf32> to vector<8x256xf32>
    %34 = arith.addf %32, %33 : vector<8x256xf32>
    %cst_15 = arith.constant 5.000000e-01 : f32
    %35 = vector.broadcast %cst_15 : f32 to vector<8x256xf32>
    %36 = arith.mulf %35, %34 : vector<8x256xf32>
    %37 = math.tanh %36 : vector<8x256xf32>
    %cst_16 = arith.constant 1.000000e+00 : f32
    %38 = vector.broadcast %cst_16 : f32 to vector<8x256xf32>
    %39 = arith.addf %38, %37 : vector<8x256xf32>
    %cst_17 = arith.constant 5.000000e-01 : f32
    %40 = vector.broadcast %cst_17 : f32 to vector<8x256xf32>
    %41 = arith.mulf %40, %39 : vector<8x256xf32>
    %42 = vector.extract_strided_slice %29 {offsets = [0, 256], sizes = [8, 256], strides = [1, 1]} : vector<8x768xf32> to vector<8x256xf32>
    %43 = vector.extract_strided_slice %31 {offsets = [0, 256], sizes = [8, 256], strides = [1, 1]} : vector<8x768xf32> to vector<8x256xf32>
    %44 = arith.addf %42, %43 : vector<8x256xf32>
    %cst_18 = arith.constant 5.000000e-01 : f32
    %45 = vector.broadcast %cst_18 : f32 to vector<8x256xf32>
    %46 = arith.mulf %45, %44 : vector<8x256xf32>
    %47 = math.tanh %46 : vector<8x256xf32>
    %cst_19 = arith.constant 1.000000e+00 : f32
    %48 = vector.broadcast %cst_19 : f32 to vector<8x256xf32>
    %49 = arith.addf %48, %47 : vector<8x256xf32>
    %cst_20 = arith.constant 5.000000e-01 : f32
    %50 = vector.broadcast %cst_20 : f32 to vector<8x256xf32>
    %51 = arith.mulf %50, %49 : vector<8x256xf32>
    %52 = vector.extract_strided_slice %29 {offsets = [0, 512], sizes = [8, 256], strides = [1, 1]} : vector<8x768xf32> to vector<8x256xf32>
    %53 = vector.extract_strided_slice %31 {offsets = [0, 512], sizes = [8, 256], strides = [1, 1]} : vector<8x768xf32> to vector<8x256xf32>
    %54 = arith.addf %53, %21 : vector<8x256xf32>
    %55 = arith.mulf %41, %54 : vector<8x256xf32>
    %56 = arith.addf %52, %55 : vector<8x256xf32>
    %57 = math.tanh %56 : vector<8x256xf32>
    %cst_21 = arith.constant 1.000000e+00 : f32
    %58 = vector.broadcast %cst_21 : f32 to vector<8x256xf32>
    %59 = arith.subf %58, %51 : vector<8x256xf32>
    %60 = arith.mulf %59, %57 : vector<8x256xf32>
    %61 = arith.mulf %51, %22 : vector<8x256xf32>
    %62 = arith.addf %60, %61 : vector<8x256xf32>
    %63 = vector.extract_strided_slice %62 {offsets = [0, 0], sizes = [8, 128], strides = [1, 1]} : vector<8x256xf32> to vector<8x128xf32>
    %64 = arith.index_cast %24 : i32 to index
    %c0_22 = arith.constant 0 : index
    %65 = vector.load %arg7[%64, %c0_22] : memref<64x256xf32, #tpu.memory_space<vmem>>, vector<8x128xf32>
    tpu.vector_store %arg7[%64, %c0_22], %63 {strides = array<i32>} : memref<64x256xf32, #tpu.memory_space<vmem>>, vector<8x128xf32>,
    %66 = vector.extract_strided_slice %62 {offsets = [0, 128], sizes = [8, 128], strides = [1, 1]} : vector<8x256xf32> to vector<8x128xf32>
    %67 = arith.index_cast %27 : i32 to index
    %c128 = arith.constant 128 : index
    %68 = vector.load %arg7[%67, %c128] : memref<64x256xf32, #tpu.memory_space<vmem>>, vector<8x128xf32>
    tpu.vector_store %arg7[%67, %c128], %66 {strides = array<i32>} : memref<64x256xf32, #tpu.memory_space<vmem>>, vector<8x128xf32>,
    %c1_i32 = arith.constant 1 : i32
    %c8_i32_23 = arith.constant 8 : i32
    %69 = arith.muli %c1_i32, %c8_i32_23 : i32
    %70 = tpu.assume_multiple %69, 8 : i32
    %c7_i32_24 = arith.constant 7 : i32
    %71 = arith.subi %c7_i32_24, %c1_i32 : i32
    %c8_i32_25 = arith.constant 8 : i32
    %72 = arith.muli %71, %c8_i32_25 : i32
    %73 = tpu.assume_multiple %72, 8 : i32
    %74 = arith.index_cast %70 : i32 to index
    %c0_26 = arith.constant 0 : index
    %75 = vector.load %arg9[%74, %c0_26] : memref<64x768xf32, #tpu.memory_space<vmem>>, vector<8x768xf32>
    %c0_27 = arith.constant 0 : index
    %c0_28 = arith.constant 0 : index
    %76 = vector.load %arg3[%c0_27, %c0_28] : memref<256x768xf32, #tpu.memory_space<vmem>>, vector<256x768xf32>
    %cst_29 = arith.constant dense<0.000000e+00> : vector<8x768xf32>
    %77 = tpu.matmul %62, %76, %cst_29 {dimension_numbers = #tpu.dot_dimension_numbers<[1], [0], [0], [1], [0, 0, 1, 1], [], []>} : vector<8x256xf32>, vector<256x768xf32>, vector<8x768xf32> -> vector<8x768xf32>
    %78 = vector.extract_strided_slice %75 {offsets = [0, 0], sizes = [8, 256], strides = [1, 1]} : vector<8x768xf32> to vector<8x256xf32>
    %79 = vector.extract_strided_slice %77 {offsets = [0, 0], sizes = [8, 256], strides = [1, 1]} : vector<8x768xf32> to vector<8x256xf32>
    %80 = arith.addf %78, %79 : vector<8x256xf32>
    %cst_30 = arith.constant 5.000000e-01 : f32
    %81 = vector.broadcast %cst_30 : f32 to vector<8x256xf32>
    %82 = arith.mulf %81, %80 : vector<8x256xf32>
    %83 = math.tanh %82 : vector<8x256xf32>
    %cst_31 = arith.constant 1.000000e+00 : f32
    %84 = vector.broadcast %cst_31 : f32 to vector<8x256xf32>
    %85 = arith.addf %84, %83 : vector<8x256xf32>
    %cst_32 = arith.constant 5.000000e-01 : f32
    %86 = vector.broadcast %cst_32 : f32 to vector<8x256xf32>
    %87 = arith.mulf %86, %85 : vector<8x256xf32>
    %88 = vector.extract_strided_slice %75 {offsets = [0, 256], sizes = [8, 256], strides = [1, 1]} : vector<8x768xf32> to vector<8x256xf32>
    %89 = vector.extract_strided_slice %77 {offsets = [0, 256], sizes = [8, 256], strides = [1, 1]} : vector<8x768xf32> to vector<8x256xf32>
    %90 = arith.addf %88, %89 : vector<8x256xf32>
    %cst_33 = arith.constant 5.000000e-01 : f32
    %91 = vector.broadcast %cst_33 : f32 to vector<8x256xf32>
    %92 = arith.mulf %91, %90 : vector<8x256xf32>
    %93 = math.tanh %92 : vector<8x256xf32>
    %cst_34 = arith.constant 1.000000e+00 : f32
    %94 = vector.broadcast %cst_34 : f32 to vector<8x256xf32>
    %95 = arith.addf %94, %93 : vector<8x256xf32>
    %cst_35 = arith.constant 5.000000e-01 : f32
    %96 = vector.broadcast %cst_35 : f32 to vector<8x256xf32>
    %97 = arith.mulf %96, %95 : vector<8x256xf32>
    %98 = vector.extract_strided_slice %75 {offsets = [0, 512], sizes = [8, 256], strides = [1, 1]} : vector<8x768xf32> to vector<8x256xf32>
    %99 = vector.extract_strided_slice %77 {offsets = [0, 512], sizes = [8, 256], strides = [1, 1]} : vector<8x768xf32> to vector<8x256xf32>
    %100 = arith.addf %99, %21 : vector<8x256xf32>
    %101 = arith.mulf %87, %100 : vector<8x256xf32>
    %102 = arith.addf %98, %101 : vector<8x256xf32>
    %103 = math.tanh %102 : vector<8x256xf32>
    %cst_36 = arith.constant 1.000000e+00 : f32
    %104 = vector.broadcast %cst_36 : f32 to vector<8x256xf32>
    %105 = arith.subf %104, %97 : vector<8x256xf32>
    %106 = arith.mulf %105, %103 : vector<8x256xf32>
    %107 = arith.mulf %97, %62 : vector<8x256xf32>
    %108 = arith.addf %106, %107 : vector<8x256xf32>
    %109 = vector.extract_strided_slice %108 {offsets = [0, 0], sizes = [8, 128], strides = [1, 1]} : vector<8x256xf32> to vector<8x128xf32>
    %110 = arith.index_cast %70 : i32 to index
    %c0_37 = arith.constant 0 : index
    %111 = vector.load %arg7[%110, %c0_37] : memref<64x256xf32, #tpu.memory_space<vmem>>, vector<8x128xf32>
    tpu.vector_store %arg7[%110, %c0_37], %109 {strides = array<i32>} : memref<64x256xf32, #tpu.memory_space<vmem>>, vector<8x128xf32>,
    %112 = vector.extract_strided_slice %108 {offsets = [0, 128], sizes = [8, 128], strides = [1, 1]} : vector<8x256xf32> to vector<8x128xf32>
    %113 = arith.index_cast %73 : i32 to index
    %c128_38 = arith.constant 128 : index
    %114 = vector.load %arg7[%113, %c128_38] : memref<64x256xf32, #tpu.memory_space<vmem>>, vector<8x128xf32>
    tpu.vector_store %arg7[%113, %c128_38], %112 {strides = array<i32>} : memref<64x256xf32, #tpu.memory_space<vmem>>, vector<8x128xf32>,
    %c2_i32 = arith.constant 2 : i32
    %c8_i32_39 = arith.constant 8 : i32
    %115 = arith.muli %c2_i32, %c8_i32_39 : i32
    %116 = tpu.assume_multiple %115, 8 : i32
    %c7_i32_40 = arith.constant 7 : i32
    %117 = arith.subi %c7_i32_40, %c2_i32 : i32
    %c8_i32_41 = arith.constant 8 : i32
    %118 = arith.muli %117, %c8_i32_41 : i32
    %119 = tpu.assume_multiple %118, 8 : i32
    %120 = arith.index_cast %116 : i32 to index
    %c0_42 = arith.constant 0 : index
    %121 = vector.load %arg9[%120, %c0_42] : memref<64x768xf32, #tpu.memory_space<vmem>>, vector<8x768xf32>
    %c0_43 = arith.constant 0 : index
    %c0_44 = arith.constant 0 : index
    %122 = vector.load %arg3[%c0_43, %c0_44] : memref<256x768xf32, #tpu.memory_space<vmem>>, vector<256x768xf32>
    %cst_45 = arith.constant dense<0.000000e+00> : vector<8x768xf32>
    %123 = tpu.matmul %108, %122, %cst_45 {dimension_numbers = #tpu.dot_dimension_numbers<[1], [0], [0], [1], [0, 0, 1, 1], [], []>} : vector<8x256xf32>, vector<256x768xf32>, vector<8x768xf32> -> vector<8x768xf32>
    %124 = vector.extract_strided_slice %121 {offsets = [0, 0], sizes = [8, 256], strides = [1, 1]} : vector<8x768xf32> to vector<8x256xf32>
    %125 = vector.extract_strided_slice %123 {offsets = [0, 0], sizes = [8, 256], strides = [1, 1]} : vector<8x768xf32> to vector<8x256xf32>
    %126 = arith.addf %124, %125 : vector<8x256xf32>
    %cst_46 = arith.constant 5.000000e-01 : f32
    %127 = vector.broadcast %cst_46 : f32 to vector<8x256xf32>
    %128 = arith.mulf %127, %126 : vector<8x256xf32>
    %129 = math.tanh %128 : vector<8x256xf32>
    %cst_47 = arith.constant 1.000000e+00 : f32
    %130 = vector.broadcast %cst_47 : f32 to vector<8x256xf32>
    %131 = arith.addf %130, %129 : vector<8x256xf32>
    %cst_48 = arith.constant 5.000000e-01 : f32
    %132 = vector.broadcast %cst_48 : f32 to vector<8x256xf32>
    %133 = arith.mulf %132, %131 : vector<8x256xf32>
    %134 = vector.extract_strided_slice %121 {offsets = [0, 256], sizes = [8, 256], strides = [1, 1]} : vector<8x768xf32> to vector<8x256xf32>
    %135 = vector.extract_strided_slice %123 {offsets = [0, 256], sizes = [8, 256], strides = [1, 1]} : vector<8x768xf32> to vector<8x256xf32>
    %136 = arith.addf %134, %135 : vector<8x256xf32>
    %cst_49 = arith.constant 5.000000e-01 : f32
    %137 = vector.broadcast %cst_49 : f32 to vector<8x256xf32>
    %138 = arith.mulf %137, %136 : vector<8x256xf32>
    %139 = math.tanh %138 : vector<8x256xf32>
    %cst_50 = arith.constant 1.000000e+00 : f32
    %140 = vector.broadcast %cst_50 : f32 to vector<8x256xf32>
    %141 = arith.addf %140, %139 : vector<8x256xf32>
    %cst_51 = arith.constant 5.000000e-01 : f32
    %142 = vector.broadcast %cst_51 : f32 to vector<8x256xf32>
    %143 = arith.mulf %142, %141 : vector<8x256xf32>
    %144 = vector.extract_strided_slice %121 {offsets = [0, 512], sizes = [8, 256], strides = [1, 1]} : vector<8x768xf32> to vector<8x256xf32>
    %145 = vector.extract_strided_slice %123 {offsets = [0, 512], sizes = [8, 256], strides = [1, 1]} : vector<8x768xf32> to vector<8x256xf32>
    %146 = arith.addf %145, %21 : vector<8x256xf32>
    %147 = arith.mulf %133, %146 : vector<8x256xf32>
    %148 = arith.addf %144, %147 : vector<8x256xf32>
    %149 = math.tanh %148 : vector<8x256xf32>
    %cst_52 = arith.constant 1.000000e+00 : f32
    %150 = vector.broadcast %cst_52 : f32 to vector<8x256xf32>
    %151 = arith.subf %150, %143 : vector<8x256xf32>
    %152 = arith.mulf %151, %149 : vector<8x256xf32>
    %153 = arith.mulf %143, %108 : vector<8x256xf32>
    %154 = arith.addf %152, %153 : vector<8x256xf32>
    %155 = vector.extract_strided_slice %154 {offsets = [0, 0], sizes = [8, 128], strides = [1, 1]} : vector<8x256xf32> to vector<8x128xf32>
    %156 = arith.index_cast %116 : i32 to index
    %c0_53 = arith.constant 0 : index
    %157 = vector.load %arg7[%156, %c0_53] : memref<64x256xf32, #tpu.memory_space<vmem>>, vector<8x128xf32>
    tpu.vector_store %arg7[%156, %c0_53], %155 {strides = array<i32>} : memref<64x256xf32, #tpu.memory_space<vmem>>, vector<8x128xf32>,
    %158 = vector.extract_strided_slice %154 {offsets = [0, 128], sizes = [8, 128], strides = [1, 1]} : vector<8x256xf32> to vector<8x128xf32>
    %159 = arith.index_cast %119 : i32 to index
    %c128_54 = arith.constant 128 : index
    %160 = vector.load %arg7[%159, %c128_54] : memref<64x256xf32, #tpu.memory_space<vmem>>, vector<8x128xf32>
    tpu.vector_store %arg7[%159, %c128_54], %158 {strides = array<i32>} : memref<64x256xf32, #tpu.memory_space<vmem>>, vector<8x128xf32>,
    %c3_i32 = arith.constant 3 : i32
    %c8_i32_55 = arith.constant 8 : i32
    %161 = arith.muli %c3_i32, %c8_i32_55 : i32
    %162 = tpu.assume_multiple %161, 8 : i32
    %c7_i32_56 = arith.constant 7 : i32
    %163 = arith.subi %c7_i32_56, %c3_i32 : i32
    %c8_i32_57 = arith.constant 8 : i32
    %164 = arith.muli %163, %c8_i32_57 : i32
    %165 = tpu.assume_multiple %164, 8 : i32
    %166 = arith.index_cast %162 : i32 to index
    %c0_58 = arith.constant 0 : index
    %167 = vector.load %arg9[%166, %c0_58] : memref<64x768xf32, #tpu.memory_space<vmem>>, vector<8x768xf32>
    %c0_59 = arith.constant 0 : index
    %c0_60 = arith.constant 0 : index
    %168 = vector.load %arg3[%c0_59, %c0_60] : memref<256x768xf32, #tpu.memory_space<vmem>>, vector<256x768xf32>
    %cst_61 = arith.constant dense<0.000000e+00> : vector<8x768xf32>
    %169 = tpu.matmul %154, %168, %cst_61 {dimension_numbers = #tpu.dot_dimension_numbers<[1], [0], [0], [1], [0, 0, 1, 1], [], []>} : vector<8x256xf32>, vector<256x768xf32>, vector<8x768xf32> -> vector<8x768xf32>
    %170 = vector.extract_strided_slice %167 {offsets = [0, 0], sizes = [8, 256], strides = [1, 1]} : vector<8x768xf32> to vector<8x256xf32>
    %171 = vector.extract_strided_slice %169 {offsets = [0, 0], sizes = [8, 256], strides = [1, 1]} : vector<8x768xf32> to vector<8x256xf32>
    %172 = arith.addf %170, %171 : vector<8x256xf32>
    %cst_62 = arith.constant 5.000000e-01 : f32
    %173 = vector.broadcast %cst_62 : f32 to vector<8x256xf32>
    %174 = arith.mulf %173, %172 : vector<8x256xf32>
    %175 = math.tanh %174 : vector<8x256xf32>
    %cst_63 = arith.constant 1.000000e+00 : f32
    %176 = vector.broadcast %cst_63 : f32 to vector<8x256xf32>
    %177 = arith.addf %176, %175 : vector<8x256xf32>
    %cst_64 = arith.constant 5.000000e-01 : f32
    %178 = vector.broadcast %cst_64 : f32 to vector<8x256xf32>
    %179 = arith.mulf %178, %177 : vector<8x256xf32>
    %180 = vector.extract_strided_slice %167 {offsets = [0, 256], sizes = [8, 256], strides = [1, 1]} : vector<8x768xf32> to vector<8x256xf32>
    %181 = vector.extract_strided_slice %169 {offsets = [0, 256], sizes = [8, 256], strides = [1, 1]} : vector<8x768xf32> to vector<8x256xf32>
    %182 = arith.addf %180, %181 : vector<8x256xf32>
    %cst_65 = arith.constant 5.000000e-01 : f32
    %183 = vector.broadcast %cst_65 : f32 to vector<8x256xf32>
    %184 = arith.mulf %183, %182 : vector<8x256xf32>
    %185 = math.tanh %184 : vector<8x256xf32>
    %cst_66 = arith.constant 1.000000e+00 : f32
    %186 = vector.broadcast %cst_66 : f32 to vector<8x256xf32>
    %187 = arith.addf %186, %185 : vector<8x256xf32>
    %cst_67 = arith.constant 5.000000e-01 : f32
    %188 = vector.broadcast %cst_67 : f32 to vector<8x256xf32>
    %189 = arith.mulf %188, %187 : vector<8x256xf32>
    %190 = vector.extract_strided_slice %167 {offsets = [0, 512], sizes = [8, 256], strides = [1, 1]} : vector<8x768xf32> to vector<8x256xf32>
    %191 = vector.extract_strided_slice %169 {offsets = [0, 512], sizes = [8, 256], strides = [1, 1]} : vector<8x768xf32> to vector<8x256xf32>
    %192 = arith.addf %191, %21 : vector<8x256xf32>
    %193 = arith.mulf %179, %192 : vector<8x256xf32>
    %194 = arith.addf %190, %193 : vector<8x256xf32>
    %195 = math.tanh %194 : vector<8x256xf32>
    %cst_68 = arith.constant 1.000000e+00 : f32
    %196 = vector.broadcast %cst_68 : f32 to vector<8x256xf32>
    %197 = arith.subf %196, %189 : vector<8x256xf32>
    %198 = arith.mulf %197, %195 : vector<8x256xf32>
    %199 = arith.mulf %189, %154 : vector<8x256xf32>
    %200 = arith.addf %198, %199 : vector<8x256xf32>
    %201 = vector.extract_strided_slice %200 {offsets = [0, 0], sizes = [8, 128], strides = [1, 1]} : vector<8x256xf32> to vector<8x128xf32>
    %202 = arith.index_cast %162 : i32 to index
    %c0_69 = arith.constant 0 : index
    %203 = vector.load %arg7[%202, %c0_69] : memref<64x256xf32, #tpu.memory_space<vmem>>, vector<8x128xf32>
    tpu.vector_store %arg7[%202, %c0_69], %201 {strides = array<i32>} : memref<64x256xf32, #tpu.memory_space<vmem>>, vector<8x128xf32>,
    %204 = vector.extract_strided_slice %200 {offsets = [0, 128], sizes = [8, 128], strides = [1, 1]} : vector<8x256xf32> to vector<8x128xf32>
    %205 = arith.index_cast %165 : i32 to index
    %c128_70 = arith.constant 128 : index
    %206 = vector.load %arg7[%205, %c128_70] : memref<64x256xf32, #tpu.memory_space<vmem>>, vector<8x128xf32>
    tpu.vector_store %arg7[%205, %c128_70], %204 {strides = array<i32>} : memref<64x256xf32, #tpu.memory_space<vmem>>, vector<8x128xf32>,
    %c4_i32 = arith.constant 4 : i32
    %c8_i32_71 = arith.constant 8 : i32
    %207 = arith.muli %c4_i32, %c8_i32_71 : i32
    %208 = tpu.assume_multiple %207, 8 : i32
    %c7_i32_72 = arith.constant 7 : i32
    %209 = arith.subi %c7_i32_72, %c4_i32 : i32
    %c8_i32_73 = arith.constant 8 : i32
    %210 = arith.muli %209, %c8_i32_73 : i32
    %211 = tpu.assume_multiple %210, 8 : i32
    %212 = arith.index_cast %208 : i32 to index
    %c0_74 = arith.constant 0 : index
    %213 = vector.load %arg9[%212, %c0_74] : memref<64x768xf32, #tpu.memory_space<vmem>>, vector<8x768xf32>
    %c0_75 = arith.constant 0 : index
    %c0_76 = arith.constant 0 : index
    %214 = vector.load %arg3[%c0_75, %c0_76] : memref<256x768xf32, #tpu.memory_space<vmem>>, vector<256x768xf32>
    %cst_77 = arith.constant dense<0.000000e+00> : vector<8x768xf32>
    %215 = tpu.matmul %200, %214, %cst_77 {dimension_numbers = #tpu.dot_dimension_numbers<[1], [0], [0], [1], [0, 0, 1, 1], [], []>} : vector<8x256xf32>, vector<256x768xf32>, vector<8x768xf32> -> vector<8x768xf32>
    %216 = vector.extract_strided_slice %213 {offsets = [0, 0], sizes = [8, 256], strides = [1, 1]} : vector<8x768xf32> to vector<8x256xf32>
    %217 = vector.extract_strided_slice %215 {offsets = [0, 0], sizes = [8, 256], strides = [1, 1]} : vector<8x768xf32> to vector<8x256xf32>
    %218 = arith.addf %216, %217 : vector<8x256xf32>
    %cst_78 = arith.constant 5.000000e-01 : f32
    %219 = vector.broadcast %cst_78 : f32 to vector<8x256xf32>
    %220 = arith.mulf %219, %218 : vector<8x256xf32>
    %221 = math.tanh %220 : vector<8x256xf32>
    %cst_79 = arith.constant 1.000000e+00 : f32
    %222 = vector.broadcast %cst_79 : f32 to vector<8x256xf32>
    %223 = arith.addf %222, %221 : vector<8x256xf32>
    %cst_80 = arith.constant 5.000000e-01 : f32
    %224 = vector.broadcast %cst_80 : f32 to vector<8x256xf32>
    %225 = arith.mulf %224, %223 : vector<8x256xf32>
    %226 = vector.extract_strided_slice %213 {offsets = [0, 256], sizes = [8, 256], strides = [1, 1]} : vector<8x768xf32> to vector<8x256xf32>
    %227 = vector.extract_strided_slice %215 {offsets = [0, 256], sizes = [8, 256], strides = [1, 1]} : vector<8x768xf32> to vector<8x256xf32>
    %228 = arith.addf %226, %227 : vector<8x256xf32>
    %cst_81 = arith.constant 5.000000e-01 : f32
    %229 = vector.broadcast %cst_81 : f32 to vector<8x256xf32>
    %230 = arith.mulf %229, %228 : vector<8x256xf32>
    %231 = math.tanh %230 : vector<8x256xf32>
    %cst_82 = arith.constant 1.000000e+00 : f32
    %232 = vector.broadcast %cst_82 : f32 to vector<8x256xf32>
    %233 = arith.addf %232, %231 : vector<8x256xf32>
    %cst_83 = arith.constant 5.000000e-01 : f32
    %234 = vector.broadcast %cst_83 : f32 to vector<8x256xf32>
    %235 = arith.mulf %234, %233 : vector<8x256xf32>
    %236 = vector.extract_strided_slice %213 {offsets = [0, 512], sizes = [8, 256], strides = [1, 1]} : vector<8x768xf32> to vector<8x256xf32>
    %237 = vector.extract_strided_slice %215 {offsets = [0, 512], sizes = [8, 256], strides = [1, 1]} : vector<8x768xf32> to vector<8x256xf32>
    %238 = arith.addf %237, %21 : vector<8x256xf32>
    %239 = arith.mulf %225, %238 : vector<8x256xf32>
    %240 = arith.addf %236, %239 : vector<8x256xf32>
    %241 = math.tanh %240 : vector<8x256xf32>
    %cst_84 = arith.constant 1.000000e+00 : f32
    %242 = vector.broadcast %cst_84 : f32 to vector<8x256xf32>
    %243 = arith.subf %242, %235 : vector<8x256xf32>
    %244 = arith.mulf %243, %241 : vector<8x256xf32>
    %245 = arith.mulf %235, %200 : vector<8x256xf32>
    %246 = arith.addf %244, %245 : vector<8x256xf32>
    %247 = vector.extract_strided_slice %246 {offsets = [0, 0], sizes = [8, 128], strides = [1, 1]} : vector<8x256xf32> to vector<8x128xf32>
    %248 = arith.index_cast %208 : i32 to index
    %c0_85 = arith.constant 0 : index
    %249 = vector.load %arg7[%248, %c0_85] : memref<64x256xf32, #tpu.memory_space<vmem>>, vector<8x128xf32>
    tpu.vector_store %arg7[%248, %c0_85], %247 {strides = array<i32>} : memref<64x256xf32, #tpu.memory_space<vmem>>, vector<8x128xf32>,
    %250 = vector.extract_strided_slice %246 {offsets = [0, 128], sizes = [8, 128], strides = [1, 1]} : vector<8x256xf32> to vector<8x128xf32>
    %251 = arith.index_cast %211 : i32 to index
    %c128_86 = arith.constant 128 : index
    %252 = vector.load %arg7[%251, %c128_86] : memref<64x256xf32, #tpu.memory_space<vmem>>, vector<8x128xf32>
    tpu.vector_store %arg7[%251, %c128_86], %250 {strides = array<i32>} : memref<64x256xf32, #tpu.memory_space<vmem>>, vector<8x128xf32>,
    %c5_i32 = arith.constant 5 : i32
    %c8_i32_87 = arith.constant 8 : i32
    %253 = arith.muli %c5_i32, %c8_i32_87 : i32
    %254 = tpu.assume_multiple %253, 8 : i32
    %c7_i32_88 = arith.constant 7 : i32
    %255 = arith.subi %c7_i32_88, %c5_i32 : i32
    %c8_i32_89 = arith.constant 8 : i32
    %256 = arith.muli %255, %c8_i32_89 : i32
    %257 = tpu.assume_multiple %256, 8 : i32
    %258 = arith.index_cast %254 : i32 to index
    %c0_90 = arith.constant 0 : index
    %259 = vector.load %arg9[%258, %c0_90] : memref<64x768xf32, #tpu.memory_space<vmem>>, vector<8x768xf32>
    %c0_91 = arith.constant 0 : index
    %c0_92 = arith.constant 0 : index
    %260 = vector.load %arg3[%c0_91, %c0_92] : memref<256x768xf32, #tpu.memory_space<vmem>>, vector<256x768xf32>
    %cst_93 = arith.constant dense<0.000000e+00> : vector<8x768xf32>
    %261 = tpu.matmul %246, %260, %cst_93 {dimension_numbers = #tpu.dot_dimension_numbers<[1], [0], [0], [1], [0, 0, 1, 1], [], []>} : vector<8x256xf32>, vector<256x768xf32>, vector<8x768xf32> -> vector<8x768xf32>
    %262 = vector.extract_strided_slice %259 {offsets = [0, 0], sizes = [8, 256], strides = [1, 1]} : vector<8x768xf32> to vector<8x256xf32>
    %263 = vector.extract_strided_slice %261 {offsets = [0, 0], sizes = [8, 256], strides = [1, 1]} : vector<8x768xf32> to vector<8x256xf32>
    %264 = arith.addf %262, %263 : vector<8x256xf32>
    %cst_94 = arith.constant 5.000000e-01 : f32
    %265 = vector.broadcast %cst_94 : f32 to vector<8x256xf32>
    %266 = arith.mulf %265, %264 : vector<8x256xf32>
    %267 = math.tanh %266 : vector<8x256xf32>
    %cst_95 = arith.constant 1.000000e+00 : f32
    %268 = vector.broadcast %cst_95 : f32 to vector<8x256xf32>
    %269 = arith.addf %268, %267 : vector<8x256xf32>
    %cst_96 = arith.constant 5.000000e-01 : f32
    %270 = vector.broadcast %cst_96 : f32 to vector<8x256xf32>
    %271 = arith.mulf %270, %269 : vector<8x256xf32>
    %272 = vector.extract_strided_slice %259 {offsets = [0, 256], sizes = [8, 256], strides = [1, 1]} : vector<8x768xf32> to vector<8x256xf32>
    %273 = vector.extract_strided_slice %261 {offsets = [0, 256], sizes = [8, 256], strides = [1, 1]} : vector<8x768xf32> to vector<8x256xf32>
    %274 = arith.addf %272, %273 : vector<8x256xf32>
    %cst_97 = arith.constant 5.000000e-01 : f32
    %275 = vector.broadcast %cst_97 : f32 to vector<8x256xf32>
    %276 = arith.mulf %275, %274 : vector<8x256xf32>
    %277 = math.tanh %276 : vector<8x256xf32>
    %cst_98 = arith.constant 1.000000e+00 : f32
    %278 = vector.broadcast %cst_98 : f32 to vector<8x256xf32>
    %279 = arith.addf %278, %277 : vector<8x256xf32>
    %cst_99 = arith.constant 5.000000e-01 : f32
    %280 = vector.broadcast %cst_99 : f32 to vector<8x256xf32>
    %281 = arith.mulf %280, %279 : vector<8x256xf32>
    %282 = vector.extract_strided_slice %259 {offsets = [0, 512], sizes = [8, 256], strides = [1, 1]} : vector<8x768xf32> to vector<8x256xf32>
    %283 = vector.extract_strided_slice %261 {offsets = [0, 512], sizes = [8, 256], strides = [1, 1]} : vector<8x768xf32> to vector<8x256xf32>
    %284 = arith.addf %283, %21 : vector<8x256xf32>
    %285 = arith.mulf %271, %284 : vector<8x256xf32>
    %286 = arith.addf %282, %285 : vector<8x256xf32>
    %287 = math.tanh %286 : vector<8x256xf32>
    %cst_100 = arith.constant 1.000000e+00 : f32
    %288 = vector.broadcast %cst_100 : f32 to vector<8x256xf32>
    %289 = arith.subf %288, %281 : vector<8x256xf32>
    %290 = arith.mulf %289, %287 : vector<8x256xf32>
    %291 = arith.mulf %281, %246 : vector<8x256xf32>
    %292 = arith.addf %290, %291 : vector<8x256xf32>
    %293 = vector.extract_strided_slice %292 {offsets = [0, 0], sizes = [8, 128], strides = [1, 1]} : vector<8x256xf32> to vector<8x128xf32>
    %294 = arith.index_cast %254 : i32 to index
    %c0_101 = arith.constant 0 : index
    %295 = vector.load %arg7[%294, %c0_101] : memref<64x256xf32, #tpu.memory_space<vmem>>, vector<8x128xf32>
    tpu.vector_store %arg7[%294, %c0_101], %293 {strides = array<i32>} : memref<64x256xf32, #tpu.memory_space<vmem>>, vector<8x128xf32>,
    %296 = vector.extract_strided_slice %292 {offsets = [0, 128], sizes = [8, 128], strides = [1, 1]} : vector<8x256xf32> to vector<8x128xf32>
    %297 = arith.index_cast %257 : i32 to index
    %c128_102 = arith.constant 128 : index
    %298 = vector.load %arg7[%297, %c128_102] : memref<64x256xf32, #tpu.memory_space<vmem>>, vector<8x128xf32>
    tpu.vector_store %arg7[%297, %c128_102], %296 {strides = array<i32>} : memref<64x256xf32, #tpu.memory_space<vmem>>, vector<8x128xf32>,
    %c6_i32 = arith.constant 6 : i32
    %c8_i32_103 = arith.constant 8 : i32
    %299 = arith.muli %c6_i32, %c8_i32_103 : i32
    %300 = tpu.assume_multiple %299, 8 : i32
    %c7_i32_104 = arith.constant 7 : i32
    %301 = arith.subi %c7_i32_104, %c6_i32 : i32
    %c8_i32_105 = arith.constant 8 : i32
    %302 = arith.muli %301, %c8_i32_105 : i32
    %303 = tpu.assume_multiple %302, 8 : i32
    %304 = arith.index_cast %300 : i32 to index
    %c0_106 = arith.constant 0 : index
    %305 = vector.load %arg9[%304, %c0_106] : memref<64x768xf32, #tpu.memory_space<vmem>>, vector<8x768xf32>
    %c0_107 = arith.constant 0 : index
    %c0_108 = arith.constant 0 : index
    %306 = vector.load %arg3[%c0_107, %c0_108] : memref<256x768xf32, #tpu.memory_space<vmem>>, vector<256x768xf32>
    %cst_109 = arith.constant dense<0.000000e+00> : vector<8x768xf32>
    %307 = tpu.matmul %292, %306, %cst_109 {dimension_numbers = #tpu.dot_dimension_numbers<[1], [0], [0], [1], [0, 0, 1, 1], [], []>} : vector<8x256xf32>, vector<256x768xf32>, vector<8x768xf32> -> vector<8x768xf32>
    %308 = vector.extract_strided_slice %305 {offsets = [0, 0], sizes = [8, 256], strides = [1, 1]} : vector<8x768xf32> to vector<8x256xf32>
    %309 = vector.extract_strided_slice %307 {offsets = [0, 0], sizes = [8, 256], strides = [1, 1]} : vector<8x768xf32> to vector<8x256xf32>
    %310 = arith.addf %308, %309 : vector<8x256xf32>
    %cst_110 = arith.constant 5.000000e-01 : f32
    %311 = vector.broadcast %cst_110 : f32 to vector<8x256xf32>
    %312 = arith.mulf %311, %310 : vector<8x256xf32>
    %313 = math.tanh %312 : vector<8x256xf32>
    %cst_111 = arith.constant 1.000000e+00 : f32
    %314 = vector.broadcast %cst_111 : f32 to vector<8x256xf32>
    %315 = arith.addf %314, %313 : vector<8x256xf32>
    %cst_112 = arith.constant 5.000000e-01 : f32
    %316 = vector.broadcast %cst_112 : f32 to vector<8x256xf32>
    %317 = arith.mulf %316, %315 : vector<8x256xf32>
    %318 = vector.extract_strided_slice %305 {offsets = [0, 256], sizes = [8, 256], strides = [1, 1]} : vector<8x768xf32> to vector<8x256xf32>
    %319 = vector.extract_strided_slice %307 {offsets = [0, 256], sizes = [8, 256], strides = [1, 1]} : vector<8x768xf32> to vector<8x256xf32>
    %320 = arith.addf %318, %319 : vector<8x256xf32>
    %cst_113 = arith.constant 5.000000e-01 : f32
    %321 = vector.broadcast %cst_113 : f32 to vector<8x256xf32>
    %322 = arith.mulf %321, %320 : vector<8x256xf32>
    %323 = math.tanh %322 : vector<8x256xf32>
    %cst_114 = arith.constant 1.000000e+00 : f32
    %324 = vector.broadcast %cst_114 : f32 to vector<8x256xf32>
    %325 = arith.addf %324, %323 : vector<8x256xf32>
    %cst_115 = arith.constant 5.000000e-01 : f32
    %326 = vector.broadcast %cst_115 : f32 to vector<8x256xf32>
    %327 = arith.mulf %326, %325 : vector<8x256xf32>
    %328 = vector.extract_strided_slice %305 {offsets = [0, 512], sizes = [8, 256], strides = [1, 1]} : vector<8x768xf32> to vector<8x256xf32>
    %329 = vector.extract_strided_slice %307 {offsets = [0, 512], sizes = [8, 256], strides = [1, 1]} : vector<8x768xf32> to vector<8x256xf32>
    %330 = arith.addf %329, %21 : vector<8x256xf32>
    %331 = arith.mulf %317, %330 : vector<8x256xf32>
    %332 = arith.addf %328, %331 : vector<8x256xf32>
    %333 = math.tanh %332 : vector<8x256xf32>
    %cst_116 = arith.constant 1.000000e+00 : f32
    %334 = vector.broadcast %cst_116 : f32 to vector<8x256xf32>
    %335 = arith.subf %334, %327 : vector<8x256xf32>
    %336 = arith.mulf %335, %333 : vector<8x256xf32>
    %337 = arith.mulf %327, %292 : vector<8x256xf32>
    %338 = arith.addf %336, %337 : vector<8x256xf32>
    %339 = vector.extract_strided_slice %338 {offsets = [0, 0], sizes = [8, 128], strides = [1, 1]} : vector<8x256xf32> to vector<8x128xf32>
    %340 = arith.index_cast %300 : i32 to index
    %c0_117 = arith.constant 0 : index
    %341 = vector.load %arg7[%340, %c0_117] : memref<64x256xf32, #tpu.memory_space<vmem>>, vector<8x128xf32>
    tpu.vector_store %arg7[%340, %c0_117], %339 {strides = array<i32>} : memref<64x256xf32, #tpu.memory_space<vmem>>, vector<8x128xf32>,
    %342 = vector.extract_strided_slice %338 {offsets = [0, 128], sizes = [8, 128], strides = [1, 1]} : vector<8x256xf32> to vector<8x128xf32>
    %343 = arith.index_cast %303 : i32 to index
    %c128_118 = arith.constant 128 : index
    %344 = vector.load %arg7[%343, %c128_118] : memref<64x256xf32, #tpu.memory_space<vmem>>, vector<8x128xf32>
    tpu.vector_store %arg7[%343, %c128_118], %342 {strides = array<i32>} : memref<64x256xf32, #tpu.memory_space<vmem>>, vector<8x128xf32>,
    %c7_i32_119 = arith.constant 7 : i32
    %c8_i32_120 = arith.constant 8 : i32
    %345 = arith.muli %c7_i32_119, %c8_i32_120 : i32
    %346 = tpu.assume_multiple %345, 8 : i32
    %c7_i32_121 = arith.constant 7 : i32
    %347 = arith.subi %c7_i32_121, %c7_i32_119 : i32
    %c8_i32_122 = arith.constant 8 : i32
    %348 = arith.muli %347, %c8_i32_122 : i32
    %349 = tpu.assume_multiple %348, 8 : i32
    %350 = arith.index_cast %346 : i32 to index
    %c0_123 = arith.constant 0 : index
    %351 = vector.load %arg9[%350, %c0_123] : memref<64x768xf32, #tpu.memory_space<vmem>>, vector<8x768xf32>
    %c0_124 = arith.constant 0 : index
    %c0_125 = arith.constant 0 : index
    %352 = vector.load %arg3[%c0_124, %c0_125] : memref<256x768xf32, #tpu.memory_space<vmem>>, vector<256x768xf32>
    %cst_126 = arith.constant dense<0.000000e+00> : vector<8x768xf32>
    %353 = tpu.matmul %338, %352, %cst_126 {dimension_numbers = #tpu.dot_dimension_numbers<[1], [0], [0], [1], [0, 0, 1, 1], [], []>} : vector<8x256xf32>, vector<256x768xf32>, vector<8x768xf32> -> vector<8x768xf32>
    %354 = vector.extract_strided_slice %351 {offsets = [0, 0], sizes = [8, 256], strides = [1, 1]} : vector<8x768xf32> to vector<8x256xf32>
    %355 = vector.extract_strided_slice %353 {offsets = [0, 0], sizes = [8, 256], strides = [1, 1]} : vector<8x768xf32> to vector<8x256xf32>
    %356 = arith.addf %354, %355 : vector<8x256xf32>
    %cst_127 = arith.constant 5.000000e-01 : f32
    %357 = vector.broadcast %cst_127 : f32 to vector<8x256xf32>
    %358 = arith.mulf %357, %356 : vector<8x256xf32>
    %359 = math.tanh %358 : vector<8x256xf32>
    %cst_128 = arith.constant 1.000000e+00 : f32
    %360 = vector.broadcast %cst_128 : f32 to vector<8x256xf32>
    %361 = arith.addf %360, %359 : vector<8x256xf32>
    %cst_129 = arith.constant 5.000000e-01 : f32
    %362 = vector.broadcast %cst_129 : f32 to vector<8x256xf32>
    %363 = arith.mulf %362, %361 : vector<8x256xf32>
    %364 = vector.extract_strided_slice %351 {offsets = [0, 256], sizes = [8, 256], strides = [1, 1]} : vector<8x768xf32> to vector<8x256xf32>
    %365 = vector.extract_strided_slice %353 {offsets = [0, 256], sizes = [8, 256], strides = [1, 1]} : vector<8x768xf32> to vector<8x256xf32>
    %366 = arith.addf %364, %365 : vector<8x256xf32>
    %cst_130 = arith.constant 5.000000e-01 : f32
    %367 = vector.broadcast %cst_130 : f32 to vector<8x256xf32>
    %368 = arith.mulf %367, %366 : vector<8x256xf32>
    %369 = math.tanh %368 : vector<8x256xf32>
    %cst_131 = arith.constant 1.000000e+00 : f32
    %370 = vector.broadcast %cst_131 : f32 to vector<8x256xf32>
    %371 = arith.addf %370, %369 : vector<8x256xf32>
    %cst_132 = arith.constant 5.000000e-01 : f32
    %372 = vector.broadcast %cst_132 : f32 to vector<8x256xf32>
    %373 = arith.mulf %372, %371 : vector<8x256xf32>
    %374 = vector.extract_strided_slice %351 {offsets = [0, 512], sizes = [8, 256], strides = [1, 1]} : vector<8x768xf32> to vector<8x256xf32>
    %375 = vector.extract_strided_slice %353 {offsets = [0, 512], sizes = [8, 256], strides = [1, 1]} : vector<8x768xf32> to vector<8x256xf32>
    %376 = arith.addf %375, %21 : vector<8x256xf32>
    %377 = arith.mulf %363, %376 : vector<8x256xf32>
    %378 = arith.addf %374, %377 : vector<8x256xf32>
    %379 = math.tanh %378 : vector<8x256xf32>
    %cst_133 = arith.constant 1.000000e+00 : f32
    %380 = vector.broadcast %cst_133 : f32 to vector<8x256xf32>
    %381 = arith.subf %380, %373 : vector<8x256xf32>
    %382 = arith.mulf %381, %379 : vector<8x256xf32>
    %383 = arith.mulf %373, %338 : vector<8x256xf32>
    %384 = arith.addf %382, %383 : vector<8x256xf32>
    %385 = vector.extract_strided_slice %384 {offsets = [0, 0], sizes = [8, 128], strides = [1, 1]} : vector<8x256xf32> to vector<8x128xf32>
    %386 = arith.index_cast %346 : i32 to index
    %c0_134 = arith.constant 0 : index
    %387 = vector.load %arg7[%386, %c0_134] : memref<64x256xf32, #tpu.memory_space<vmem>>, vector<8x128xf32>
    tpu.vector_store %arg7[%386, %c0_134], %385 {strides = array<i32>} : memref<64x256xf32, #tpu.memory_space<vmem>>, vector<8x128xf32>,
    %388 = vector.extract_strided_slice %384 {offsets = [0, 128], sizes = [8, 128], strides = [1, 1]} : vector<8x256xf32> to vector<8x128xf32>
    %389 = arith.index_cast %349 : i32 to index
    %c128_135 = arith.constant 128 : index
    %390 = vector.load %arg7[%389, %c128_135] : memref<64x256xf32, #tpu.memory_space<vmem>>, vector<8x128xf32>
    tpu.vector_store %arg7[%389, %c128_135], %388 {strides = array<i32>} : memref<64x256xf32, #tpu.memory_space<vmem>>, vector<8x128xf32>,
    %c8_i32_136 = arith.constant 8 : i32
    %c0_137 = arith.constant 0 : index
    %c0_138 = arith.constant 0 : index
    %391 = vector.load %arg5[%c0_137, %c0_138] : memref<256x128xf32, #tpu.memory_space<vmem>>, vector<256x128xf32>
    %cst_139 = arith.constant dense<0.000000e+00> : vector<8x128xf32>
    %392 = tpu.matmul %384, %391, %cst_139 {dimension_numbers = #tpu.dot_dimension_numbers<[1], [0], [0], [1], [0, 0, 1, 1], [], []>} : vector<8x256xf32>, vector<256x128xf32>, vector<8x128xf32> -> vector<8x128xf32>
    %c0_140 = arith.constant 0 : index
    %c0_141 = arith.constant 0 : index
    %393 = vector.load %arg6[%c0_140, %c0_141] : memref<1x128xf32, #tpu.memory_space<vmem>>, vector<1x128xf32>
    %394 = vector.broadcast %393 : vector<1x128xf32> to vector<8x128xf32>
    %395 = arith.addf %392, %394 : vector<8x128xf32>
    %396 = math.tanh %395 : vector<8x128xf32>
    %c0_142 = arith.constant 0 : index
    %c0_143 = arith.constant 0 : index
    %397 = vector.load %arg8[%c0_142, %c0_143] : memref<8x128xf32, #tpu.memory_space<vmem>>, vector<8x128xf32>
    tpu.vector_store %arg8[%c0_142, %c0_143], %396 {strides = array<i32>} : memref<8x128xf32, #tpu.memory_space<vmem>>, vector<8x128xf32>,
    return
  }
}

</mosaic_0001>

<llo_original>
// kernel: tpu_custom_call.1
$region0: #{tpu_custom_call.1}
  #allocation0 [shape = 'u32[]', space=smem, size = 0x4, offset = 0x4, fixed_abs, tag = 'smem constant byte address 0x4 - core index']
  #allocation1 [shape = 'u32[144,128]{1,0:T(1,128)}', space=vmem, size = 0x12000, scoped, tag = 'internal scratch']
  #allocation2 [shape = 'f32[64,768]{1,0:T(8,128)}', space=vmem, size = 0x30000, scoped, tag = 'scratch operand']
  %s0 = inlined_call_operand.vmem [shape: s32[64,2], index: 0, kind: input, shape index: {}]
  %s1 = inlined_call_operand.hbm [shape: f32[32,768], index: 1, kind: input, shape index: {}]
  %s2 = inlined_call_operand.vmem [shape: f32[1,768], index: 2, kind: input, shape index: {}]
  %s3 = inlined_call_operand.hbm [shape: f32[256,768], index: 3, kind: input, shape index: {}]
  %s4 = inlined_call_operand.vmem [shape: f32[1,256], index: 4, kind: input, shape index: {}]
  %s5 = inlined_call_operand.hbm [shape: f32[256,128], index: 5, kind: input, shape index: {}]
  %s6 = inlined_call_operand.vmem [shape: f32[1,128], index: 6, kind: input, shape index: {}]
  %s7 = inlined_call_operand.hbm [shape: f32[64,256], index: 7, kind: output, shape index: {0}]
  %s8 = inlined_call_operand.hbm [shape: f32[8,128], index: 8, kind: output, shape index: {1}]
  %9 = xla_tuple %s7, %s8
  %s10 = sld [smem:[#allocation0]]
  $region58: #{tpu_custom_call.1} parent=0
    _
  %s12 = ssub.s32 1, %s10
  %s13 = scalar_select 0, %s12, %s10
  $region1: #{tpu_custom_call.1} parent=0
    #allocation3 [shape = 'u8[98304]{0}', space=vmem, size = 0x18000, scoped, tag = 'input window, operand 1, single buffered']
    #allocation4 [shape = 's32[1]{0}', space=sflag, size = 0x4, scoped, tag = 'scoped memory for tpu_custom_call.1']
    #allocation5 [shape = 's32[1]{0}', space=sflag, size = 0x4, scoped, tag = 'scoped memory for tpu_custom_call.1']
    #allocation6 [shape = 'u8[786432]{0}', space=vmem, size = 0xc0000, scoped, tag = 'input window, operand 3, single buffered']
    #allocation7 [shape = 's32[1]{0}', space=sflag, size = 0x4, scoped, tag = 'scoped memory for tpu_custom_call.1']
    #allocation8 [shape = 'u8[131072]{0}', space=vmem, size = 0x20000, scoped, tag = 'input window, operand 5, single buffered']
    #allocation9 [shape = 'u8[65536]{0}', space=vmem, size = 0x10000, scoped, tag = 'output window, operand 0, single buffered']
    #allocation10 [shape = 'u8[4096]{0}', space=vmem, size = 0x1000, scoped, tag = 'output window, operand 1, single buffered']
    #allocation11 [shape = 's32[1]{0}', space=sflag, size = 0x4, scoped, tag = 'scoped memory for tpu_custom_call.1']
    %14 = vsyncpa [#allocation4], 0
    %15 = vsyncpa [#allocation7], 0
    %16 = vsyncpa [#allocation5], 0
    %17 = vsyncpa [#allocation11], 0
    // Predicated region
    $region2: #{tpu_custom_call.1} parent=1 // pred_check
      _
    $region3: #{tpu_custom_call.1} parent=1 // pred_check_branch
      %19 = sbr.rel (0) target = $region5
    $region4: #{tpu_custom_call.1} parent=1 // pred_region
      _
    $region5: #{tpu_custom_call.1} parent=1 // pred_fallthru
      _
    // Predicated region
    $region6: #{tpu_custom_call.1} parent=1 // pred_check
      _
    $region7: #{tpu_custom_call.1} parent=1 // pred_check_branch
      %21 = sbr.rel (0) target = $region9
    $region8: #{tpu_custom_call.1} parent=1 // pred_region
      %s23 = ssub.s32 3072, 3072
      %24 = vsyncadd [#allocation4], %s23
      %s25 = sshll.u32 [#allocation3], 4
      %s26 = int_to_ptr.vmem [resolvable:$true] %s25
      %31 = dma.hbm_to_vmem [thread:$0]  %s1, 3072, %s26, [#allocation4], 768, 768, 48
    $region9: #{tpu_custom_call.1} parent=1 // pred_fallthru
      _
    // Predicated region
    $region10: #{tpu_custom_call.1} parent=1 // pred_check
      _
    $region11: #{tpu_custom_call.1} parent=1 // pred_check_branch
      %33 = sbr.rel (0) target = $region13
    $region12: #{tpu_custom_call.1} parent=1 // pred_region
      _
    $region13: #{tpu_custom_call.1} parent=1 // pred_fallthru
      _
    // Predicated region
    $region14: #{tpu_custom_call.1} parent=1 // pred_check
      _
    $region15: #{tpu_custom_call.1} parent=1 // pred_check_branch
      %35 = sbr.rel (0) target = $region17
    $region16: #{tpu_custom_call.1} parent=1 // pred_region
      %s37 = ssub.s32 24576, 24576
      %38 = vsyncadd [#allocation7], %s37
      %s39 = sshll.u32 [#allocation6], 4
      %s40 = int_to_ptr.vmem [resolvable:$true] %s39
      %45 = dma.hbm_to_vmem [thread:$0]  %s3, 24576, %s40, [#allocation7], 768, 768, 48
    $region17: #{tpu_custom_call.1} parent=1 // pred_fallthru
      _
    // Predicated region
    $region18: #{tpu_custom_call.1} parent=1 // pred_check
      _
    $region19: #{tpu_custom_call.1} parent=1 // pred_check_branch
      %47 = sbr.rel (0) target = $region21
    $region20: #{tpu_custom_call.1} parent=1 // pred_region
      _
    $region21: #{tpu_custom_call.1} parent=1 // pred_fallthru
      _
    // Predicated region
    $region22: #{tpu_custom_call.1} parent=1 // pred_check
      _
    $region23: #{tpu_custom_call.1} parent=1 // pred_check_branch
      %49 = sbr.rel (0) target = $region25
    $region24: #{tpu_custom_call.1} parent=1 // pred_region
      %s51 = ssub.s32 4096, 4096
      %52 = vsyncadd [#allocation7], %s51
      %s53 = sshll.u32 [#allocation8], 4
      %s54 = int_to_ptr.vmem [resolvable:$true] %s53
      %59 = dma.hbm_to_vmem [thread:$0]  %s5, 4096, %s54, [#allocation7], 128, 128, 8
    $region25: #{tpu_custom_call.1} parent=1 // pred_fallthru
      _
    // Predicated region
    $region26: #{tpu_custom_call.1} parent=1 // pred_check
      _
    $region27: #{tpu_custom_call.1} parent=1 // pred_check_branch
      %61 = sbr.rel (0) target = $region29
    $region28: #{tpu_custom_call.1} parent=1 // pred_region
      _
    $region29: #{tpu_custom_call.1} parent=1 // pred_fallthru
      _
    // Predicated region
    $region30: #{tpu_custom_call.1} parent=1 // pred_check
      _
    $region31: #{tpu_custom_call.1} parent=1 // pred_check_branch
      %63 = sbr.rel (0) target = $region33
    $region32: #{tpu_custom_call.1} parent=1 // pred_region
      %64 = dma.done [#allocation4], 3072
    $region33: #{tpu_custom_call.1} parent=1 // pred_fallthru
      _
    // Predicated region
    $region34: #{tpu_custom_call.1} parent=1 // pred_check
      _
    $region35: #{tpu_custom_call.1} parent=1 // pred_check_branch
      %66 = sbr.rel (0) target = $region37
    $region36: #{tpu_custom_call.1} parent=1 // pred_region
      %67 = dma.done [#allocation7], 24576
    $region37: #{tpu_custom_call.1} parent=1 // pred_fallthru
      _
    // Predicated region
    $region38: #{tpu_custom_call.1} parent=1 // pred_check
      _
    $region39: #{tpu_custom_call.1} parent=1 // pred_check_branch
      %69 = sbr.rel (0) target = $region41
    $region40: #{tpu_custom_call.1} parent=1 // pred_region
      %70 = dma.done [#allocation7], 4096
    $region41: #{tpu_custom_call.1} parent=1 // pred_fallthru
      _
    %v71 = vld [vmem:[%s0] sm:$0xff]
    %v72 = vld [vmem:[%s0 + $0x8] sm:$0xff]
    %v73 = vld [vmem:[%s0 + $0x10] sm:$0xff]
    %v74 = vld [vmem:[%s0 + $0x18] sm:$0xff]
    %v75 = vld [vmem:[%s0 + $0x20] sm:$0xff]
    %v76 = vld [vmem:[%s0 + $0x28] sm:$0xff]
    %v77 = vld [vmem:[%s0 + $0x30] sm:$0xff]
    %v78 = vld [vmem:[%s0 + $0x38] sm:$0xff]
    %v79 = vadd.s32 %v71, 16
    %v80 = vadd.s32 %v72, 16
    %v81 = vadd.s32 %v73, 16
    %v82 = vadd.s32 %v74, 16
    %v83 = vadd.s32 %v75, 16
    %v84 = vadd.s32 %v76, 16
    %v85 = vadd.s32 %v77, 16
    %v86 = vadd.s32 %v78, 16
    %v87 = vlaneseq
    %v88 = vand.u32 %v87, 127
    %89 = vset.pattern.permute.xlu0 0
    %90 = vperm.xlu0 %89, %v71
    %v91 = vpop.permute.xlu0 %90
    %92 = vset.pattern.permute.xlu0 0
    %93 = vperm.xlu0 %92, %v72
    %v94 = vpop.permute.xlu0 %93
    %95 = vset.pattern.permute.xlu0 0
    %96 = vperm.xlu0 %95, %v73
    %v97 = vpop.permute.xlu0 %96
    %98 = vset.pattern.permute.xlu0 0
    %99 = vperm.xlu0 %98, %v74
    %v100 = vpop.permute.xlu0 %99
    %101 = vset.pattern.permute.xlu0 0
    %102 = vperm.xlu0 %101, %v75
    %v103 = vpop.permute.xlu0 %102
    %104 = vset.pattern.permute.xlu0 0
    %105 = vperm.xlu0 %104, %v76
    %v106 = vpop.permute.xlu0 %105
    %107 = vset.pattern.permute.xlu0 0
    %108 = vperm.xlu0 %107, %v77
    %v109 = vpop.permute.xlu0 %108
    %110 = vset.pattern.permute.xlu0 0
    %111 = vperm.xlu0 %110, %v78
    %v112 = vpop.permute.xlu0 %111
    %vm113 = vcmp.eq.s32.totalorder %v88, %v91
    %vm114 = vcmp.eq.s32.totalorder %v88, %v94
    %vm115 = vcmp.eq.s32.totalorder %v88, %v97
    %vm116 = vcmp.eq.s32.totalorder %v88, %v100
    %vm117 = vcmp.eq.s32.totalorder %v88, %v103
    %vm118 = vcmp.eq.s32.totalorder %v88, %v106
    %vm119 = vcmp.eq.s32.totalorder %v88, %v109
    %vm120 = vcmp.eq.s32.totalorder %v88, %v112
    %121 = vset.pattern.permute.xlu0 1
    %122 = vperm.xlu0 %121, %v79
    %v123 = vpop.permute.xlu0 %122
    %124 = vset.pattern.permute.xlu0 1
    %125 = vperm.xlu0 %124, %v80
    %v126 = vpop.permute.xlu0 %125
    %127 = vset.pattern.permute.xlu0 1
    %128 = vperm.xlu0 %127, %v81
    %v129 = vpop.permute.xlu0 %128
    %130 = vset.pattern.permute.xlu0 1
    %131 = vperm.xlu0 %130, %v82
    %v132 = vpop.permute.xlu0 %131
    %133 = vset.pattern.permute.xlu0 1
    %134 = vperm.xlu0 %133, %v83
    %v135 = vpop.permute.xlu0 %134
    %136 = vset.pattern.permute.xlu0 1
    %137 = vperm.xlu0 %136, %v84
    %v138 = vpop.permute.xlu0 %137
    %139 = vset.pattern.permute.xlu0 1
    %140 = vperm.xlu0 %139, %v85
    %v141 = vpop.permute.xlu0 %140
    %142 = vset.pattern.permute.xlu0 1
    %143 = vperm.xlu0 %142, %v86
    %v144 = vpop.permute.xlu0 %143
    %vm145 = vcmp.eq.s32.totalorder %v88, %v123
    %vm146 = vcmp.eq.s32.totalorder %v88, %v126
    %vm147 = vcmp.eq.s32.totalorder %v88, %v129
    %vm148 = vcmp.eq.s32.totalorder %v88, %v132
    %vm149 = vcmp.eq.s32.totalorder %v88, %v135
    %vm150 = vcmp.eq.s32.totalorder %v88, %v138
    %vm151 = vcmp.eq.s32.totalorder %v88, %v141
    %vm152 = vcmp.eq.s32.totalorder %v88, %v144
    %vm153 = vmor %vm113, %vm145
    %vm154 = vmor %vm114, %vm146
    %vm155 = vmor %vm115, %vm147
    %vm156 = vmor %vm116, %vm148
    %vm157 = vmor %vm117, %vm149
    %vm158 = vmor %vm118, %vm150
    %vm159 = vmor %vm119, %vm151
    %vm160 = vmor %vm120, %vm152
    %v161 = vsel %vm153, 1, 0
    %v162 = vsel %vm154, 1, 0
    %v163 = vsel %vm155, 1, 0
    %v164 = vsel %vm156, 1, 0
    %v165 = vsel %vm157, 1, 0
    %v166 = vsel %vm158, 1, 0
    %v167 = vsel %vm159, 1, 0
    %v168 = vsel %vm160, 1, 0
    %v169 = vcvt.s32.f32 %v161
    %v170 = vcvt.s32.f32 %v162
    %v171 = vcvt.s32.f32 %v163
    %v172 = vcvt.s32.f32 %v164
    %v173 = vcvt.s32.f32 %v165
    %v174 = vcvt.s32.f32 %v166
    %v175 = vcvt.s32.f32 %v167
    %v176 = vcvt.s32.f32 %v168
    %v177 = vld [vmem:[#allocation3] sm:$0xff]
    %v178 = vld [vmem:[#allocation3 + $0x8] sm:$0xff]
    %v179 = vld [vmem:[#allocation3 + $0x10] sm:$0xff]
    %v180 = vld [vmem:[#allocation3 + $0x18] sm:$0xff]
    %v181 = vld [vmem:[#allocation3 + $0x20] sm:$0xff]
    %v182 = vld [vmem:[#allocation3 + $0x28] sm:$0xff]
    %v183 = vld [vmem:[#allocation3 + $0x30] sm:$0xff]
    %v184 = vld [vmem:[#allocation3 + $0x38] sm:$0xff]
    %v185 = vld [vmem:[#allocation3 + $0x40] sm:$0xff]
    %v186 = vld [vmem:[#allocation3 + $0x48] sm:$0xff]
    %v187 = vld [vmem:[#allocation3 + $0x50] sm:$0xff]
    %v188 = vld [vmem:[#allocation3 + $0x58] sm:$0xff]
    %v189 = vld [vmem:[#allocation3 + $0x60] sm:$0xff]
    %v190 = vld [vmem:[#allocation3 + $0x68] sm:$0xff]
    %v191 = vld [vmem:[#allocation3 + $0x70] sm:$0xff]
    %v192 = vld [vmem:[#allocation3 + $0x78] sm:$0xff]
    %v193 = vld [vmem:[#allocation3 + $0x80] sm:$0xff]
    %v194 = vld [vmem:[#allocation3 + $0x88] sm:$0xff]
    %v195 = vld [vmem:[#allocation3 + $0x90] sm:$0xff]
    %v196 = vld [vmem:[#allocation3 + $0x98] sm:$0xff]
    %v197 = vld [vmem:[#allocation3 + $0xa0] sm:$0xff]
    %v198 = vld [vmem:[#allocation3 + $0xa8] sm:$0xff]
    %v199 = vld [vmem:[#allocation3 + $0xb0] sm:$0xff]
    %v200 = vld [vmem:[#allocation3 + $0xb8] sm:$0xff]
    %v201 = vld [vmem:[%s2] sm:$0x3f]
    %v203 = vlaneseq
    %v204 = vshrl.u32 %v203, 7
    %v205 = vsub.s32 0, %v204
    %v206 = vrot.slane %v201, %v205
    %v207 = vlaneseq
    %v208 = vshrl.u32 %v207, 7
    %v209 = vsub.s32 1, %v208
    %v210 = vrot.slane %v201, %v209
    %v211 = vlaneseq
    %v212 = vshrl.u32 %v211, 7
    %v213 = vsub.s32 2, %v212
    %v214 = vrot.slane %v201, %v213
    %v215 = vlaneseq
    %v216 = vshrl.u32 %v215, 7
    %v217 = vsub.s32 3, %v216
    %v218 = vrot.slane %v201, %v217
    %v219 = vlaneseq
    %v220 = vshrl.u32 %v219, 7
    %v221 = vsub.s32 4, %v220
    %v222 = vrot.slane %v201, %v221
    %v223 = vlaneseq
    %v224 = vshrl.u32 %v223, 7
    %v225 = vsub.s32 5, %v224
    %v226 = vrot.slane %v201, %v225
    %vm233 = vcmask 261120
    %v235 = vsel %vm233, %v169, 0
    %v238 = vsel %vm233, %v170, 0
    %v241 = vsel %vm233, %v171, 0
    %v244 = vsel %vm233, %v172, 0
    %v247 = vsel %vm233, %v173, 0
    %v250 = vsel %vm233, %v174, 0
    %v253 = vsel %vm233, %v175, 0
    %v256 = vsel %vm233, %v176, 0
    %258 = vmatprep.subr.mxu0 0.0
    %259 = vmatpush1.msra.mxu0 0.0
    %260 = vmatprep.subr.mxu0 0.0
    %261 = vmatpush1.msra.mxu0 0.0
    %262 = vmatprep.subr.mxu0 0.0
    %263 = vmatpush1.msra.mxu0 0.0
    %264 = vmatprep.subr.mxu0 0.0
    %265 = vmatpush1.msra.mxu0 0.0
    %266 = vmatprep.subr.mxu0 0.0
    %267 = vmatpush1.msra.mxu0 0.0
    %268 = vmatprep.subr.mxu0 0.0
    %269 = vmatpush1.msra.mxu0 0.0
    %270 = vmatprep.subr.mxu0 0.0
    %271 = vmatpush1.msra.mxu0 0.0
    %272 = vmatprep.subr.mxu0 0.0
    %273 = vmatpush1.msra.mxu0 0.0
    %274 = vmatprep.subr.mxu0 0.0
    %275 = vmatpush1.msra.mxu0 0.0
    %276 = vmatprep.subr.mxu0 0.0
    %277 = vmatpush1.msra.mxu0 0.0
    %278 = vmatprep.subr.mxu0 0.0
    %279 = vmatpush1.msra.mxu0 0.0
    %280 = vmatprep.subr.mxu0 0.0
    %281 = vmatpush1.msra.mxu0 0.0
    %282 = vmatprep.subr.mxu0 %v196
    %283 = vmatpush1.msra.mxu0 %v195
    %284 = vmatprep.subr.mxu0 %v190
    %285 = vmatpush1.msra.mxu0 %v189
    %286 = vmatprep.subr.mxu0 %v184
    %287 = vmatpush1.msra.mxu0 %v183
    %288 = vmatprep.subr.mxu0 %v178
    %289 = vmatpush1.msra.mxu0 %v177
    %290 = vmatprep.subr.mxu0 0.0
    %291 = vmatpush2.msra.mxu0 0.0
    %292 = vmatprep.subr.mxu0 0.0
    %293 = vmatpush2.msra.mxu0 0.0
    %294 = vmatprep.subr.mxu0 0.0
    %295 = vmatpush2.msra.mxu0 0.0
    %296 = vmatprep.subr.mxu0 0.0
    %297 = vmatpush2.msra.mxu0 0.0
    %298 = vmatprep.subr.mxu0 0.0
    %299 = vmatpush2.msra.mxu0 0.0
    %300 = vmatprep.subr.mxu0 0.0
    %301 = vmatpush2.msra.mxu0 0.0
    %302 = vmatprep.subr.mxu0 0.0
    %303 = vmatpush2.msra.mxu0 0.0
    %304 = vmatprep.subr.mxu0 0.0
    %305 = vmatpush2.msra.mxu0 0.0
    %306 = vmatprep.subr.mxu0 0.0
    %307 = vmatpush2.msra.mxu0 0.0
    %308 = vmatprep.subr.mxu0 0.0
    %309 = vmatpush2.msra.mxu0 0.0
    %310 = vmatprep.subr.mxu0 0.0
    %311 = vmatpush2.msra.mxu0 0.0
    %312 = vmatprep.subr.mxu0 0.0
    %313 = vmatpush2.msra.mxu0 0.0
    %314 = vmatprep.subr.mxu0 0.0
    %315 = vmatpush2.msra.mxu0 0.0
    %316 = vmatprep.subr.mxu0 0.0
    %317 = vmatpush2.msra.mxu0 0.0
    %318 = vmatprep.subr.mxu0 0.0
    %319 = vmatpush2.msra.mxu0 0.0
    %320 = vmatprep.subr.mxu0 0.0
    %321 = vmatpush2.msra.mxu0 0.0
    %322 = vmatprep.mubr.f32.mxu0 0.0
    %323 = vmatmul.mubr.f32.gmra.mxu0 %v235
    %v324 = vpop.f32.mrf.mxu0
    %v325 = vadd.f32 %v206, %v324
    %v326 = vpop.f32.mrf.mxu0
    %v327 = vadd.f32 %v210, %v326
    %328 = vmatprep.mubr.f32.mxu0 0.0
    %329 = vmatmul.mubr.f32.gmra.mxu0 %v238
    %v330 = vpop.f32.mrf.mxu0
    %v331 = vadd.f32 %v206, %v330
    %v332 = vpop.f32.mrf.mxu0
    %v333 = vadd.f32 %v210, %v332
    %334 = vmatprep.mubr.f32.mxu0 0.0
    %335 = vmatmul.mubr.f32.gmra.mxu0 %v241
    %v336 = vpop.f32.mrf.mxu0
    %v337 = vadd.f32 %v206, %v336
    %v338 = vpop.f32.mrf.mxu0
    %v339 = vadd.f32 %v210, %v338
    %340 = vmatprep.mubr.f32.mxu0 0.0
    %341 = vmatmul.mubr.f32.gmra.mxu0 %v244
    %v342 = vpop.f32.mrf.mxu0
    %v343 = vadd.f32 %v206, %v342
    %v344 = vpop.f32.mrf.mxu0
    %v345 = vadd.f32 %v210, %v344
    %346 = vmatprep.mubr.f32.mxu0 0.0
    %347 = vmatmul.mubr.f32.gmra.mxu0 %v247
    %v348 = vpop.f32.mrf.mxu0
    %v349 = vadd.f32 %v206, %v348
    %v350 = vpop.f32.mrf.mxu0
    %v351 = vadd.f32 %v210, %v350
    %352 = vmatprep.mubr.f32.mxu0 0.0
    %353 = vmatmul.mubr.f32.gmra.mxu0 %v250
    %v354 = vpop.f32.mrf.mxu0
    %v355 = vadd.f32 %v206, %v354
    %v356 = vpop.f32.mrf.mxu0
    %v357 = vadd.f32 %v210, %v356
    %358 = vmatprep.mubr.f32.mxu0 0.0
    %359 = vmatmul.mubr.f32.gmra.mxu0 %v253
    %v360 = vpop.f32.mrf.mxu0
    %v361 = vadd.f32 %v206, %v360
    %v362 = vpop.f32.mrf.mxu0
    %v363 = vadd.f32 %v210, %v362
    %364 = vmatprep.mubr.f32.mxu0 0.0
    %365 = vmatmul.mubr.f32.gmra.mxu0 %v256
    %v366 = vpop.f32.mrf.mxu0
    %v367 = vadd.f32 %v206, %v366
    %v368 = vpop.f32.mrf.mxu0
    %v369 = vadd.f32 %v210, %v368
    %370 = vdwg.mxu0
    %371 = vmatprep.subr.mxu0 0.0
    %372 = vmatpush1.msra.mxu0 0.0
    %373 = vmatprep.subr.mxu0 0.0
    %374 = vmatpush1.msra.mxu0 0.0
    %375 = vmatprep.subr.mxu0 0.0
    %376 = vmatpush1.msra.mxu0 0.0
    %377 = vmatprep.subr.mxu0 0.0
    %378 = vmatpush1.msra.mxu0 0.0
    %379 = vmatprep.subr.mxu0 0.0
    %380 = vmatpush1.msra.mxu0 0.0
    %381 = vmatprep.subr.mxu0 0.0
    %382 = vmatpush1.msra.mxu0 0.0
    %383 = vmatprep.subr.mxu0 0.0
    %384 = vmatpush1.msra.mxu0 0.0
    %385 = vmatprep.subr.mxu0 0.0
    %386 = vmatpush1.msra.mxu0 0.0
    %387 = vmatprep.subr.mxu0 0.0
    %388 = vmatpush1.msra.mxu0 0.0
    %389 = vmatprep.subr.mxu0 0.0
    %390 = vmatpush1.msra.mxu0 0.0
    %391 = vmatprep.subr.mxu0 0.0
    %392 = vmatpush1.msra.mxu0 0.0
    %393 = vmatprep.subr.mxu0 0.0
    %394 = vmatpush1.msra.mxu0 0.0
    %395 = vmatprep.subr.mxu0 %v198
    %396 = vmatpush1.msra.mxu0 %v197
    %397 = vmatprep.subr.mxu0 %v192
    %398 = vmatpush1.msra.mxu0 %v191
    %399 = vmatprep.subr.mxu0 %v186
    %400 = vmatpush1.msra.mxu0 %v185
    %401 = vmatprep.subr.mxu0 %v180
    %402 = vmatpush1.msra.mxu0 %v179
    %403 = vmatprep.subr.mxu0 0.0
    %404 = vmatpush2.msra.mxu0 0.0
    %405 = vmatprep.subr.mxu0 0.0
    %406 = vmatpush2.msra.mxu0 0.0
    %407 = vmatprep.subr.mxu0 0.0
    %408 = vmatpush2.msra.mxu0 0.0
    %409 = vmatprep.subr.mxu0 0.0
    %410 = vmatpush2.msra.mxu0 0.0
    %411 = vmatprep.subr.mxu0 0.0
    %412 = vmatpush2.msra.mxu0 0.0
    %413 = vmatprep.subr.mxu0 0.0
    %414 = vmatpush2.msra.mxu0 0.0
    %415 = vmatprep.subr.mxu0 0.0
    %416 = vmatpush2.msra.mxu0 0.0
    %417 = vmatprep.subr.mxu0 0.0
    %418 = vmatpush2.msra.mxu0 0.0
    %419 = vmatprep.subr.mxu0 0.0
    %420 = vmatpush2.msra.mxu0 0.0
    %421 = vmatprep.subr.mxu0 0.0
    %422 = vmatpush2.msra.mxu0 0.0
    %423 = vmatprep.subr.mxu0 0.0
    %424 = vmatpush2.msra.mxu0 0.0
    %425 = vmatprep.subr.mxu0 0.0
    %426 = vmatpush2.msra.mxu0 0.0
    %427 = vmatprep.subr.mxu0 0.0
    %428 = vmatpush2.msra.mxu0 0.0
    %429 = vmatprep.subr.mxu0 0.0
    %430 = vmatpush2.msra.mxu0 0.0
    %431 = vmatprep.subr.mxu0 0.0
    %432 = vmatpush2.msra.mxu0 0.0
    %433 = vmatprep.subr.mxu0 0.0
    %434 = vmatpush2.msra.mxu0 0.0
    %435 = vmatprep.mubr.f32.mxu0 0.0
    %436 = vmatmul.mubr.f32.gmra.mxu0 %v235
    %v437 = vpop.f32.mrf.mxu0
    %v438 = vadd.f32 %v214, %v437
    %v439 = vpop.f32.mrf.mxu0
    %v440 = vadd.f32 %v218, %v439
    %441 = vmatprep.mubr.f32.mxu0 0.0
    %442 = vmatmul.mubr.f32.gmra.mxu0 %v238
    %v443 = vpop.f32.mrf.mxu0
    %v444 = vadd.f32 %v214, %v443
    %v445 = vpop.f32.mrf.mxu0
    %v446 = vadd.f32 %v218, %v445
    %447 = vmatprep.mubr.f32.mxu0 0.0
    %448 = vmatmul.mubr.f32.gmra.mxu0 %v241
    %v449 = vpop.f32.mrf.mxu0
    %v450 = vadd.f32 %v214, %v449
    %v451 = vpop.f32.mrf.mxu0
    %v452 = vadd.f32 %v218, %v451
    %453 = vmatprep.mubr.f32.mxu0 0.0
    %454 = vmatmul.mubr.f32.gmra.mxu0 %v244
    %v455 = vpop.f32.mrf.mxu0
    %v456 = vadd.f32 %v214, %v455
    %v457 = vpop.f32.mrf.mxu0
    %v458 = vadd.f32 %v218, %v457
    %459 = vmatprep.mubr.f32.mxu0 0.0
    %460 = vmatmul.mubr.f32.gmra.mxu0 %v247
    %v461 = vpop.f32.mrf.mxu0
    %v462 = vadd.f32 %v214, %v461
    %v463 = vpop.f32.mrf.mxu0
    %v464 = vadd.f32 %v218, %v463
    %465 = vmatprep.mubr.f32.mxu0 0.0
    %466 = vmatmul.mubr.f32.gmra.mxu0 %v250
    %v467 = vpop.f32.mrf.mxu0
    %v468 = vadd.f32 %v214, %v467
    %v469 = vpop.f32.mrf.mxu0
    %v470 = vadd.f32 %v218, %v469
    %471 = vmatprep.mubr.f32.mxu0 0.0
    %472 = vmatmul.mubr.f32.gmra.mxu0 %v253
    %v473 = vpop.f32.mrf.mxu0
    %v474 = vadd.f32 %v214, %v473
    %v475 = vpop.f32.mrf.mxu0
    %v476 = vadd.f32 %v218, %v475
    %477 = vmatprep.mubr.f32.mxu0 0.0
    %478 = vmatmul.mubr.f32.gmra.mxu0 %v256
    %v479 = vpop.f32.mrf.mxu0
    %v480 = vadd.f32 %v214, %v479
    %v481 = vpop.f32.mrf.mxu0
    %v482 = vadd.f32 %v218, %v481
    %483 = vdwg.mxu0
    %484 = vmatprep.subr.mxu0 0.0
    %485 = vmatpush1.msra.mxu0 0.0
    %486 = vmatprep.subr.mxu0 0.0
    %487 = vmatpush1.msra.mxu0 0.0
    %488 = vmatprep.subr.mxu0 0.0
    %489 = vmatpush1.msra.mxu0 0.0
    %490 = vmatprep.subr.mxu0 0.0
    %491 = vmatpush1.msra.mxu0 0.0
    %492 = vmatprep.subr.mxu0 0.0
    %493 = vmatpush1.msra.mxu0 0.0
    %494 = vmatprep.subr.mxu0 0.0
    %495 = vmatpush1.msra.mxu0 0.0
    %496 = vmatprep.subr.mxu0 0.0
    %497 = vmatpush1.msra.mxu0 0.0
    %498 = vmatprep.subr.mxu0 0.0
    %499 = vmatpush1.msra.mxu0 0.0
    %500 = vmatprep.subr.mxu0 0.0
    %501 = vmatpush1.msra.mxu0 0.0
    %502 = vmatprep.subr.mxu0 0.0
    %503 = vmatpush1.msra.mxu0 0.0
    %504 = vmatprep.subr.mxu0 0.0
    %505 = vmatpush1.msra.mxu0 0.0
    %506 = vmatprep.subr.mxu0 0.0
    %507 = vmatpush1.msra.mxu0 0.0
    %508 = vmatprep.subr.mxu0 %v200
    %509 = vmatpush1.msra.mxu0 %v199
    %510 = vmatprep.subr.mxu0 %v194
    %511 = vmatpush1.msra.mxu0 %v193
    %512 = vmatprep.subr.mxu0 %v188
    %513 = vmatpush1.msra.mxu0 %v187
    %514 = vmatprep.subr.mxu0 %v182
    %515 = vmatpush1.msra.mxu0 %v181
    %516 = vmatprep.subr.mxu0 0.0
    %517 = vmatpush2.msra.mxu0 0.0
    %518 = vmatprep.subr.mxu0 0.0
    %519 = vmatpush2.msra.mxu0 0.0
    %520 = vmatprep.subr.mxu0 0.0
    %521 = vmatpush2.msra.mxu0 0.0
    %522 = vmatprep.subr.mxu0 0.0
    %523 = vmatpush2.msra.mxu0 0.0
    %524 = vmatprep.subr.mxu0 0.0
    %525 = vmatpush2.msra.mxu0 0.0
    %526 = vmatprep.subr.mxu0 0.0
    %527 = vmatpush2.msra.mxu0 0.0
    %528 = vmatprep.subr.mxu0 0.0
    %529 = vmatpush2.msra.mxu0 0.0
    %530 = vmatprep.subr.mxu0 0.0
    %531 = vmatpush2.msra.mxu0 0.0
    %532 = vmatprep.subr.mxu0 0.0
    %533 = vmatpush2.msra.mxu0 0.0
    %534 = vmatprep.subr.mxu0 0.0
    %535 = vmatpush2.msra.mxu0 0.0
    %536 = vmatprep.subr.mxu0 0.0
    %537 = vmatpush2.msra.mxu0 0.0
    %538 = vmatprep.subr.mxu0 0.0
    %539 = vmatpush2.msra.mxu0 0.0
    %540 = vmatprep.subr.mxu0 0.0
    %541 = vmatpush2.msra.mxu0 0.0
    %542 = vmatprep.subr.mxu0 0.0
    %543 = vmatpush2.msra.mxu0 0.0
    %544 = vmatprep.subr.mxu0 0.0
    %545 = vmatpush2.msra.mxu0 0.0
    %546 = vmatprep.subr.mxu0 0.0
    %547 = vmatpush2.msra.mxu0 0.0
    %548 = vmatprep.mubr.f32.mxu0 0.0
    %549 = vmatmul.mubr.f32.gmra.mxu0 %v235
    %v550 = vpop.f32.mrf.mxu0
    %v551 = vadd.f32 %v222, %v550
    %v552 = vpop.f32.mrf.mxu0
    %v553 = vadd.f32 %v226, %v552
    %554 = vmatprep.mubr.f32.mxu0 0.0
    %555 = vmatmul.mubr.f32.gmra.mxu0 %v238
    %v556 = vpop.f32.mrf.mxu0
    %v557 = vadd.f32 %v222, %v556
    %v558 = vpop.f32.mrf.mxu0
    %v559 = vadd.f32 %v226, %v558
    %560 = vmatprep.mubr.f32.mxu0 0.0
    %561 = vmatmul.mubr.f32.gmra.mxu0 %v241
    %v562 = vpop.f32.mrf.mxu0
    %v563 = vadd.f32 %v222, %v562
    %v564 = vpop.f32.mrf.mxu0
    %v565 = vadd.f32 %v226, %v564
    %566 = vmatprep.mubr.f32.mxu0 0.0
    %567 = vmatmul.mubr.f32.gmra.mxu0 %v244
    %v568 = vpop.f32.mrf.mxu0
    %v569 = vadd.f32 %v222, %v568
    %v570 = vpop.f32.mrf.mxu0
    %v571 = vadd.f32 %v226, %v570
    %572 = vmatprep.mubr.f32.mxu0 0.0
    %573 = vmatmul.mubr.f32.gmra.mxu0 %v247
    %v574 = vpop.f32.mrf.mxu0
    %v575 = vadd.f32 %v222, %v574
    %v576 = vpop.f32.mrf.mxu0
    %v577 = vadd.f32 %v226, %v576
    %578 = vmatprep.mubr.f32.mxu0 0.0
    %579 = vmatmul.mubr.f32.gmra.mxu0 %v250
    %v580 = vpop.f32.mrf.mxu0
    %v581 = vadd.f32 %v222, %v580
    %v582 = vpop.f32.mrf.mxu0
    %v583 = vadd.f32 %v226, %v582
    %584 = vmatprep.mubr.f32.mxu0 0.0
    %585 = vmatmul.mubr.f32.gmra.mxu0 %v253
    %v586 = vpop.f32.mrf.mxu0
    %v587 = vadd.f32 %v222, %v586
    %v588 = vpop.f32.mrf.mxu0
    %v589 = vadd.f32 %v226, %v588
    %590 = vmatprep.mubr.f32.mxu0 0.0
    %591 = vmatmul.mubr.f32.gmra.mxu0 %v256
    %v592 = vpop.f32.mrf.mxu0
    %v593 = vadd.f32 %v222, %v592
    %v594 = vpop.f32.mrf.mxu0
    %v595 = vadd.f32 %v226, %v594
    %596 = vdwg.mxu0
    %597 = vst [vmem:[#allocation2] sm:$0xff] %v325
    %598 = vst [vmem:[#allocation2 + $0x8] sm:$0xff] %v327
    %599 = vst [vmem:[#allocation2 + $0x10] sm:$0xff] %v438
    %600 = vst [vmem:[#allocation2 + $0x18] sm:$0xff] %v440
    %601 = vst [vmem:[#allocation2 + $0x20] sm:$0xff] %v551
    %602 = vst [vmem:[#allocation2 + $0x28] sm:$0xff] %v553
    %603 = vst [vmem:[#allocation2 + $0x30] sm:$0xff] %v331
    %604 = vst [vmem:[#allocation2 + $0x38] sm:$0xff] %v333
    %605 = vst [vmem:[#allocation2 + $0x40] sm:$0xff] %v444
    %606 = vst [vmem:[#allocation2 + $0x48] sm:$0xff] %v446
    %607 = vst [vmem:[#allocation2 + $0x50] sm:$0xff] %v557
    %608 = vst [vmem:[#allocation2 + $0x58] sm:$0xff] %v559
    %609 = vst [vmem:[#allocation2 + $0x60] sm:$0xff] %v337
    %610 = vst [vmem:[#allocation2 + $0x68] sm:$0xff] %v339
    %611 = vst [vmem:[#allocation2 + $0x70] sm:$0xff] %v450
    %612 = vst [vmem:[#allocation2 + $0x78] sm:$0xff] %v452
    %613 = vst [vmem:[#allocation2 + $0x80] sm:$0xff] %v563
    %614 = vst [vmem:[#allocation2 + $0x88] sm:$0xff] %v565
    %615 = vst [vmem:[#allocation2 + $0x90] sm:$0xff] %v343
    %616 = vst [vmem:[#allocation2 + $0x98] sm:$0xff] %v345
    %617 = vst [vmem:[#allocation2 + $0xa0] sm:$0xff] %v456
    %618 = vst [vmem:[#allocation2 + $0xa8] sm:$0xff] %v458
    %619 = vst [vmem:[#allocation2 + $0xb0] sm:$0xff] %v569
    %620 = vst [vmem:[#allocation2 + $0xb8] sm:$0xff] %v571
    %621 = vst [vmem:[#allocation2 + $0xc0] sm:$0xff] %v349
    %622 = vst [vmem:[#allocation2 + $0xc8] sm:$0xff] %v351
    %623 = vst [vmem:[#allocation2 + $0xd0] sm:$0xff] %v462
    %624 = vst [vmem:[#allocation2 + $0xd8] sm:$0xff] %v464
    %625 = vst [vmem:[#allocation2 + $0xe0] sm:$0xff] %v575
    %626 = vst [vmem:[#allocation2 + $0xe8] sm:$0xff] %v577
    %627 = vst [vmem:[#allocation2 + $0xf0] sm:$0xff] %v355
    %628 = vst [vmem:[#allocation2 + $0xf8] sm:$0xff] %v357
    %629 = vst [vmem:[#allocation2 + $0x100] sm:$0xff] %v468
    %630 = vst [vmem:[#allocation2 + $0x108] sm:$0xff] %v470
    %631 = vst [vmem:[#allocation2 + $0x110] sm:$0xff] %v581
    %632 = vst [vmem:[#allocation2 + $0x118] sm:$0xff] %v583
    %633 = vst [vmem:[#allocation2 + $0x120] sm:$0xff] %v361
    %634 = vst [vmem:[#allocation2 + $0x128] sm:$0xff] %v363
    %635 = vst [vmem:[#allocation2 + $0x130] sm:$0xff] %v474
    %636 = vst [vmem:[#allocation2 + $0x138] sm:$0xff] %v476
    %637 = vst [vmem:[#allocation2 + $0x140] sm:$0xff] %v587
    %638 = vst [vmem:[#allocation2 + $0x148] sm:$0xff] %v589
    %639 = vst [vmem:[#allocation2 + $0x150] sm:$0xff] %v367
    %640 = vst [vmem:[#allocation2 + $0x158] sm:$0xff] %v369
    %641 = vst [vmem:[#allocation2 + $0x160] sm:$0xff] %v480
    %642 = vst [vmem:[#allocation2 + $0x168] sm:$0xff] %v482
    %643 = vst [vmem:[#allocation2 + $0x170] sm:$0xff] %v593
    %644 = vst [vmem:[#allocation2 + $0x178] sm:$0xff] %v595
    %v645 = vld [vmem:[%s4] sm:$0x3]
    %v647 = vlaneseq
    %v648 = vshrl.u32 %v647, 7
    %v649 = vsub.s32 0, %v648
    %v650 = vrot.slane %v645, %v649
    %v651 = vlaneseq
    %v652 = vshrl.u32 %v651, 7
    %v653 = vsub.s32 1, %v652
    %v654 = vrot.slane %v645, %v653
    %s657 = smul.u32 0, 6
    %s658 = smul.addr %s657, 8
    %s659 = scalar_lea.vmem [#allocation2], %s658
    %v660 = vld [vmem:[%s659] sm:$0xff]
    %v661 = vld [vmem:[%s659 + $0x8] sm:$0xff]
    %v662 = vld [vmem:[%s659 + $0x10] sm:$0xff]
    %v663 = vld [vmem:[%s659 + $0x18] sm:$0xff]
    %v664 = vld [vmem:[%s659 + $0x20] sm:$0xff]
    %v665 = vld [vmem:[%s659 + $0x28] sm:$0xff]
    %v666 = vld [vmem:[#allocation6] sm:$0xff]
    %v667 = vld [vmem:[#allocation6 + $0x8] sm:$0xff]
    %v668 = vld [vmem:[#allocation6 + $0x10] sm:$0xff]
    %v669 = vld [vmem:[#allocation6 + $0x18] sm:$0xff]
    %v670 = vld [vmem:[#allocation6 + $0x20] sm:$0xff]
    %v671 = vld [vmem:[#allocation6 + $0x28] sm:$0xff]
    %v672 = vld [vmem:[#allocation6 + $0x30] sm:$0xff]
    %v673 = vld [vmem:[#allocation6 + $0x38] sm:$0xff]
    %v674 = vld [vmem:[#allocation6 + $0x40] sm:$0xff]
    %v675 = vld [vmem:[#allocation6 + $0x48] sm:$0xff]
    %v676 = vld [vmem:[#allocation6 + $0x50] sm:$0xff]
    %v677 = vld [vmem:[#allocation6 + $0x58] sm:$0xff]
    %v678 = vld [vmem:[#allocation6 + $0x60] sm:$0xff]
    %v679 = vld [vmem:[#allocation6 + $0x68] sm:$0xff]
    %v680 = vld [vmem:[#allocation6 + $0x70] sm:$0xff]
    %v681 = vld [vmem:[#allocation6 + $0x78] sm:$0xff]
    %v682 = vld [vmem:[#allocation6 + $0x80] sm:$0xff]
    %v683 = vld [vmem:[#allocation6 + $0x88] sm:$0xff]
    %v684 = vld [vmem:[#allocation6 + $0x90] sm:$0xff]
    %v685 = vld [vmem:[#allocation6 + $0x98] sm:$0xff]
    %v686 = vld [vmem:[#allocation6 + $0xa0] sm:$0xff]
    %v687 = vld [vmem:[#allocation6 + $0xa8] sm:$0xff]
    %v688 = vld [vmem:[#allocation6 + $0xb0] sm:$0xff]
    %v689 = vld [vmem:[#allocation6 + $0xb8] sm:$0xff]
    %v690 = vld [vmem:[#allocation6 + $0xc0] sm:$0xff]
    %v691 = vld [vmem:[#allocation6 + $0xc8] sm:$0xff]
    %v692 = vld [vmem:[#allocation6 + $0xd0] sm:$0xff]
    %v693 = vld [vmem:[#allocation6 + $0xd8] sm:$0xff]
    %v694 = vld [vmem:[#allocation6 + $0xe0] sm:$0xff]
    %v695 = vld [vmem:[#allocation6 + $0xe8] sm:$0xff]
    %v696 = vld [vmem:[#allocation6 + $0xf0] sm:$0xff]
    %v697 = vld [vmem:[#allocation6 + $0xf8] sm:$0xff]
    %v698 = vld [vmem:[#allocation6 + $0x100] sm:$0xff]
    %v699 = vld [vmem:[#allocation6 + $0x108] sm:$0xff]
    %v700 = vld [vmem:[#allocation6 + $0x110] sm:$0xff]
    %v701 = vld [vmem:[#allocation6 + $0x118] sm:$0xff]
    %v702 = vld [vmem:[#allocation6 + $0x120] sm:$0xff]
    %v703 = vld [vmem:[#allocation6 + $0x128] sm:$0xff]
    %v704 = vld [vmem:[#allocation6 + $0x130] sm:$0xff]
    %v705 = vld [vmem:[#allocation6 + $0x138] sm:$0xff]
    %v706 = vld [vmem:[#allocation6 + $0x140] sm:$0xff]
    %v707 = vld [vmem:[#allocation6 + $0x148] sm:$0xff]
    %v708 = vld [vmem:[#allocation6 + $0x150] sm:$0xff]
    %v709 = vld [vmem:[#allocation6 + $0x158] sm:$0xff]
    %v710 = vld [vmem:[#allocation6 + $0x160] sm:$0xff]
    %v711 = vld [vmem:[#allocation6 + $0x168] sm:$0xff]
    %v712 = vld [vmem:[#allocation6 + $0x170] sm:$0xff]
    %v713 = vld [vmem:[#allocation6 + $0x178] sm:$0xff]
    %v714 = vld [vmem:[#allocation6 + $0x180] sm:$0xff]
    %v715 = vld [vmem:[#allocation6 + $0x188] sm:$0xff]
    %v716 = vld [vmem:[#allocation6 + $0x190] sm:$0xff]
    %v717 = vld [vmem:[#allocation6 + $0x198] sm:$0xff]
    %v718 = vld [vmem:[#allocation6 + $0x1a0] sm:$0xff]
    %v719 = vld [vmem:[#allocation6 + $0x1a8] sm:$0xff]
    %v720 = vld [vmem:[#allocation6 + $0x1b0] sm:$0xff]
    %v721 = vld [vmem:[#allocation6 + $0x1b8] sm:$0xff]
    %v722 = vld [vmem:[#allocation6 + $0x1c0] sm:$0xff]
    %v723 = vld [vmem:[#allocation6 + $0x1c8] sm:$0xff]
    %v724 = vld [vmem:[#allocation6 + $0x1d0] sm:$0xff]
    %v725 = vld [vmem:[#allocation6 + $0x1d8] sm:$0xff]
    %v726 = vld [vmem:[#allocation6 + $0x1e0] sm:$0xff]
    %v727 = vld [vmem:[#allocation6 + $0x1e8] sm:$0xff]
    %v728 = vld [vmem:[#allocation6 + $0x1f0] sm:$0xff]
    %v729 = vld [vmem:[#allocation6 + $0x1f8] sm:$0xff]
    %v730 = vld [vmem:[#allocation6 + $0x200] sm:$0xff]
    %v731 = vld [vmem:[#allocation6 + $0x208] sm:$0xff]
    %v732 = vld [vmem:[#allocation6 + $0x210] sm:$0xff]
    %v733 = vld [vmem:[#allocation6 + $0x218] sm:$0xff]
    %v734 = vld [vmem:[#allocation6 + $0x220] sm:$0xff]
    %v735 = vld [vmem:[#allocation6 + $0x228] sm:$0xff]
    %v736 = vld [vmem:[#allocation6 + $0x230] sm:$0xff]
    %v737 = vld [vmem:[#allocation6 + $0x238] sm:$0xff]
    %v738 = vld [vmem:[#allocation6 + $0x240] sm:$0xff]
    %v739 = vld [vmem:[#allocation6 + $0x248] sm:$0xff]
    %v740 = vld [vmem:[#allocation6 + $0x250] sm:$0xff]
    %v741 = vld [vmem:[#allocation6 + $0x258] sm:$0xff]
    %v742 = vld [vmem:[#allocation6 + $0x260] sm:$0xff]
    %v743 = vld [vmem:[#allocation6 + $0x268] sm:$0xff]
    %v744 = vld [vmem:[#allocation6 + $0x270] sm:$0xff]
    %v745 = vld [vmem:[#allocation6 + $0x278] sm:$0xff]
    %v746 = vld [vmem:[#allocation6 + $0x280] sm:$0xff]
    %v747 = vld [vmem:[#allocation6 + $0x288] sm:$0xff]
    %v748 = vld [vmem:[#allocation6 + $0x290] sm:$0xff]
    %v749 = vld [vmem:[#allocation6 + $0x298] sm:$0xff]
    %v750 = vld [vmem:[#allocation6 + $0x2a0] sm:$0xff]
    %v751 = vld [vmem:[#allocation6 + $0x2a8] sm:$0xff]
    %v752 = vld [vmem:[#allocation6 + $0x2b0] sm:$0xff]
    %v753 = vld [vmem:[#allocation6 + $0x2b8] sm:$0xff]
    %v754 = vld [vmem:[#allocation6 + $0x2c0] sm:$0xff]
    %v755 = vld [vmem:[#allocation6 + $0x2c8] sm:$0xff]
    %v756 = vld [vmem:[#allocation6 + $0x2d0] sm:$0xff]
    %v757 = vld [vmem:[#allocation6 + $0x2d8] sm:$0xff]
    %v758 = vld [vmem:[#allocation6 + $0x2e0] sm:$0xff]
    %v759 = vld [vmem:[#allocation6 + $0x2e8] sm:$0xff]
    %v760 = vld [vmem:[#allocation6 + $0x2f0] sm:$0xff]
    %v761 = vld [vmem:[#allocation6 + $0x2f8] sm:$0xff]
    %v762 = vld [vmem:[#allocation6 + $0x300] sm:$0xff]
    %v763 = vld [vmem:[#allocation6 + $0x308] sm:$0xff]
    %v764 = vld [vmem:[#allocation6 + $0x310] sm:$0xff]
    %v765 = vld [vmem:[#allocation6 + $0x318] sm:$0xff]
    %v766 = vld [vmem:[#allocation6 + $0x320] sm:$0xff]
    %v767 = vld [vmem:[#allocation6 + $0x328] sm:$0xff]
    %v768 = vld [vmem:[#allocation6 + $0x330] sm:$0xff]
    %v769 = vld [vmem:[#allocation6 + $0x338] sm:$0xff]
    %v770 = vld [vmem:[#allocation6 + $0x340] sm:$0xff]
    %v771 = vld [vmem:[#allocation6 + $0x348] sm:$0xff]
    %v772 = vld [vmem:[#allocation6 + $0x350] sm:$0xff]
    %v773 = vld [vmem:[#allocation6 + $0x358] sm:$0xff]
    %v774 = vld [vmem:[#allocation6 + $0x360] sm:$0xff]
    %v775 = vld [vmem:[#allocation6 + $0x368] sm:$0xff]
    %v776 = vld [vmem:[#allocation6 + $0x370] sm:$0xff]
    %v777 = vld [vmem:[#allocation6 + $0x378] sm:$0xff]
    %v778 = vld [vmem:[#allocation6 + $0x380] sm:$0xff]
    %v779 = vld [vmem:[#allocation6 + $0x388] sm:$0xff]
    %v780 = vld [vmem:[#allocation6 + $0x390] sm:$0xff]
    %v781 = vld [vmem:[#allocation6 + $0x398] sm:$0xff]
    %v782 = vld [vmem:[#allocation6 + $0x3a0] sm:$0xff]
    %v783 = vld [vmem:[#allocation6 + $0x3a8] sm:$0xff]
    %v784 = vld [vmem:[#allocation6 + $0x3b0] sm:$0xff]
    %v785 = vld [vmem:[#allocation6 + $0x3b8] sm:$0xff]
    %v786 = vld [vmem:[#allocation6 + $0x3c0] sm:$0xff]
    %v787 = vld [vmem:[#allocation6 + $0x3c8] sm:$0xff]
    %v788 = vld [vmem:[#allocation6 + $0x3d0] sm:$0xff]
    %v789 = vld [vmem:[#allocation6 + $0x3d8] sm:$0xff]
    %v790 = vld [vmem:[#allocation6 + $0x3e0] sm:$0xff]
    %v791 = vld [vmem:[#allocation6 + $0x3e8] sm:$0xff]
    %v792 = vld [vmem:[#allocation6 + $0x3f0] sm:$0xff]
    %v793 = vld [vmem:[#allocation6 + $0x3f8] sm:$0xff]
    %v794 = vld [vmem:[#allocation6 + $0x400] sm:$0xff]
    %v795 = vld [vmem:[#allocation6 + $0x408] sm:$0xff]
    %v796 = vld [vmem:[#allocation6 + $0x410] sm:$0xff]
    %v797 = vld [vmem:[#allocation6 + $0x418] sm:$0xff]
    %v798 = vld [vmem:[#allocation6 + $0x420] sm:$0xff]
    %v799 = vld [vmem:[#allocation6 + $0x428] sm:$0xff]
    %v800 = vld [vmem:[#allocation6 + $0x430] sm:$0xff]
    %v801 = vld [vmem:[#allocation6 + $0x438] sm:$0xff]
    %v802 = vld [vmem:[#allocation6 + $0x440] sm:$0xff]
    %v803 = vld [vmem:[#allocation6 + $0x448] sm:$0xff]
    %v804 = vld [vmem:[#allocation6 + $0x450] sm:$0xff]
    %v805 = vld [vmem:[#allocation6 + $0x458] sm:$0xff]
    %v806 = vld [vmem:[#allocation6 + $0x460] sm:$0xff]
    %v807 = vld [vmem:[#allocation6 + $0x468] sm:$0xff]
    %v808 = vld [vmem:[#allocation6 + $0x470] sm:$0xff]
    %v809 = vld [vmem:[#allocation6 + $0x478] sm:$0xff]
    %v810 = vld [vmem:[#allocation6 + $0x480] sm:$0xff]
    %v811 = vld [vmem:[#allocation6 + $0x488] sm:$0xff]
    %v812 = vld [vmem:[#allocation6 + $0x490] sm:$0xff]
    %v813 = vld [vmem:[#allocation6 + $0x498] sm:$0xff]
    %v814 = vld [vmem:[#allocation6 + $0x4a0] sm:$0xff]
    %v815 = vld [vmem:[#allocation6 + $0x4a8] sm:$0xff]
    %v816 = vld [vmem:[#allocation6 + $0x4b0] sm:$0xff]
    %v817 = vld [vmem:[#allocation6 + $0x4b8] sm:$0xff]
    %v818 = vld [vmem:[#allocation6 + $0x4c0] sm:$0xff]
    %v819 = vld [vmem:[#allocation6 + $0x4c8] sm:$0xff]
    %v820 = vld [vmem:[#allocation6 + $0x4d0] sm:$0xff]
    %v821 = vld [vmem:[#allocation6 + $0x4d8] sm:$0xff]
    %v822 = vld [vmem:[#allocation6 + $0x4e0] sm:$0xff]
    %v823 = vld [vmem:[#allocation6 + $0x4e8] sm:$0xff]
    %v824 = vld [vmem:[#allocation6 + $0x4f0] sm:$0xff]
    %v825 = vld [vmem:[#allocation6 + $0x4f8] sm:$0xff]
    %v826 = vld [vmem:[#allocation6 + $0x500] sm:$0xff]
    %v827 = vld [vmem:[#allocation6 + $0x508] sm:$0xff]
    %v828 = vld [vmem:[#allocation6 + $0x510] sm:$0xff]
    %v829 = vld [vmem:[#allocation6 + $0x518] sm:$0xff]
    %v830 = vld [vmem:[#allocation6 + $0x520] sm:$0xff]
    %v831 = vld [vmem:[#allocation6 + $0x528] sm:$0xff]
    %v832 = vld [vmem:[#allocation6 + $0x530] sm:$0xff]
    %v833 = vld [vmem:[#allocation6 + $0x538] sm:$0xff]
    %v834 = vld [vmem:[#allocation6 + $0x540] sm:$0xff]
    %v835 = vld [vmem:[#allocation6 + $0x548] sm:$0xff]
    %v836 = vld [vmem:[#allocation6 + $0x550] sm:$0xff]
    %v837 = vld [vmem:[#allocation6 + $0x558] sm:$0xff]
    %v838 = vld [vmem:[#allocation6 + $0x560] sm:$0xff]
    %v839 = vld [vmem:[#allocation6 + $0x568] sm:$0xff]
    %v840 = vld [vmem:[#allocation6 + $0x570] sm:$0xff]
    %v841 = vld [vmem:[#allocation6 + $0x578] sm:$0xff]
    %v842 = vld [vmem:[#allocation6 + $0x580] sm:$0xff]
    %v843 = vld [vmem:[#allocation6 + $0x588] sm:$0xff]
    %v844 = vld [vmem:[#allocation6 + $0x590] sm:$0xff]
    %v845 = vld [vmem:[#allocation6 + $0x598] sm:$0xff]
    %v846 = vld [vmem:[#allocation6 + $0x5a0] sm:$0xff]
    %v847 = vld [vmem:[#allocation6 + $0x5a8] sm:$0xff]
    %v848 = vld [vmem:[#allocation6 + $0x5b0] sm:$0xff]
    %v849 = vld [vmem:[#allocation6 + $0x5b8] sm:$0xff]
    %v850 = vld [vmem:[#allocation6 + $0x5c0] sm:$0xff]
    %v851 = vld [vmem:[#allocation6 + $0x5c8] sm:$0xff]
    %v852 = vld [vmem:[#allocation6 + $0x5d0] sm:$0xff]
    %v853 = vld [vmem:[#allocation6 + $0x5d8] sm:$0xff]
    %v854 = vld [vmem:[#allocation6 + $0x5e0] sm:$0xff]
    %v855 = vld [vmem:[#allocation6 + $0x5e8] sm:$0xff]
    %v856 = vld [vmem:[#allocation6 + $0x5f0] sm:$0xff]
    %v857 = vld [vmem:[#allocation6 + $0x5f8] sm:$0xff]
    %858 = vmatprep.subr.mxu0 %v757
    %859 = vmatpush1.msra.mxu0 %v756
    %860 = vmatprep.subr.mxu0 %v751
    %861 = vmatpush1.msra.mxu0 %v750
    %862 = vmatprep.subr.mxu0 %v745
    %863 = vmatpush1.msra.mxu0 %v744
    %864 = vmatprep.subr.mxu0 %v739
    %865 = vmatpush1.msra.mxu0 %v738
    %866 = vmatprep.subr.mxu0 %v733
    %867 = vmatpush1.msra.mxu0 %v732
    %868 = vmatprep.subr.mxu0 %v727
    %869 = vmatpush1.msra.mxu0 %v726
    %870 = vmatprep.subr.mxu0 %v721
    %871 = vmatpush1.msra.mxu0 %v720
    %872 = vmatprep.subr.mxu0 %v715
    %873 = vmatpush1.msra.mxu0 %v714
    %874 = vmatprep.subr.mxu0 %v709
    %875 = vmatpush1.msra.mxu0 %v708
    %876 = vmatprep.subr.mxu0 %v703
    %877 = vmatpush1.msra.mxu0 %v702
    %878 = vmatprep.subr.mxu0 %v697
    %879 = vmatpush1.msra.mxu0 %v696
    %880 = vmatprep.subr.mxu0 %v691
    %881 = vmatpush1.msra.mxu0 %v690
    %882 = vmatprep.subr.mxu0 %v685
    %883 = vmatpush1.msra.mxu0 %v684
    %884 = vmatprep.subr.mxu0 %v679
    %885 = vmatpush1.msra.mxu0 %v678
    %886 = vmatprep.subr.mxu0 %v673
    %887 = vmatpush1.msra.mxu0 %v672
    %888 = vmatprep.subr.mxu0 %v667
    %889 = vmatpush1.msra.mxu0 %v666
    %890 = vmatprep.subr.mxu0 %v853
    %891 = vmatpush2.msra.mxu0 %v852
    %892 = vmatprep.subr.mxu0 %v847
    %893 = vmatpush2.msra.mxu0 %v846
    %894 = vmatprep.subr.mxu0 %v841
    %895 = vmatpush2.msra.mxu0 %v840
    %896 = vmatprep.subr.mxu0 %v835
    %897 = vmatpush2.msra.mxu0 %v834
    %898 = vmatprep.subr.mxu0 %v829
    %899 = vmatpush2.msra.mxu0 %v828
    %900 = vmatprep.subr.mxu0 %v823
    %901 = vmatpush2.msra.mxu0 %v822
    %902 = vmatprep.subr.mxu0 %v817
    %903 = vmatpush2.msra.mxu0 %v816
    %904 = vmatprep.subr.mxu0 %v811
    %905 = vmatpush2.msra.mxu0 %v810
    %906 = vmatprep.subr.mxu0 %v805
    %907 = vmatpush2.msra.mxu0 %v804
    %908 = vmatprep.subr.mxu0 %v799
    %909 = vmatpush2.msra.mxu0 %v798
    %910 = vmatprep.subr.mxu0 %v793
    %911 = vmatpush2.msra.mxu0 %v792
    %912 = vmatprep.subr.mxu0 %v787
    %913 = vmatpush2.msra.mxu0 %v786
    %914 = vmatprep.subr.mxu0 %v781
    %915 = vmatpush2.msra.mxu0 %v780
    %916 = vmatprep.subr.mxu0 %v775
    %917 = vmatpush2.msra.mxu0 %v774
    %918 = vmatprep.subr.mxu0 %v769
    %919 = vmatpush2.msra.mxu0 %v768
    %920 = vmatprep.subr.mxu0 %v763
    %921 = vmatpush2.msra.mxu0 %v762
    %922 = vmatprep.mubr.f32.mxu0 0.0
    %923 = vmatmul.mubr.f32.gmra.mxu0 0.0
    %v924 = vpop.f32.mrf.mxu0
    %v925 = vadd.f32 0.0, %v924
    %v926 = vpop.f32.mrf.mxu0
    %v927 = vadd.f32 0.0, %v926
    %928 = vdwg.mxu0
    %929 = vmatprep.subr.mxu0 %v759
    %930 = vmatpush1.msra.mxu0 %v758
    %931 = vmatprep.subr.mxu0 %v753
    %932 = vmatpush1.msra.mxu0 %v752
    %933 = vmatprep.subr.mxu0 %v747
    %934 = vmatpush1.msra.mxu0 %v746
    %935 = vmatprep.subr.mxu0 %v741
    %936 = vmatpush1.msra.mxu0 %v740
    %937 = vmatprep.subr.mxu0 %v735
    %938 = vmatpush1.msra.mxu0 %v734
    %939 = vmatprep.subr.mxu0 %v729
    %940 = vmatpush1.msra.mxu0 %v728
    %941 = vmatprep.subr.mxu0 %v723
    %942 = vmatpush1.msra.mxu0 %v722
    %943 = vmatprep.subr.mxu0 %v717
    %944 = vmatpush1.msra.mxu0 %v716
    %945 = vmatprep.subr.mxu0 %v711
    %946 = vmatpush1.msra.mxu0 %v710
    %947 = vmatprep.subr.mxu0 %v705
    %948 = vmatpush1.msra.mxu0 %v704
    %949 = vmatprep.subr.mxu0 %v699
    %950 = vmatpush1.msra.mxu0 %v698
    %951 = vmatprep.subr.mxu0 %v693
    %952 = vmatpush1.msra.mxu0 %v692
    %953 = vmatprep.subr.mxu0 %v687
    %954 = vmatpush1.msra.mxu0 %v686
    %955 = vmatprep.subr.mxu0 %v681
    %956 = vmatpush1.msra.mxu0 %v680
    %957 = vmatprep.subr.mxu0 %v675
    %958 = vmatpush1.msra.mxu0 %v674
    %959 = vmatprep.subr.mxu0 %v669
    %960 = vmatpush1.msra.mxu0 %v668
    %961 = vmatprep.subr.mxu0 %v855
    %962 = vmatpush2.msra.mxu0 %v854
    %963 = vmatprep.subr.mxu0 %v849
    %964 = vmatpush2.msra.mxu0 %v848
    %965 = vmatprep.subr.mxu0 %v843
    %966 = vmatpush2.msra.mxu0 %v842
    %967 = vmatprep.subr.mxu0 %v837
    %968 = vmatpush2.msra.mxu0 %v836
    %969 = vmatprep.subr.mxu0 %v831
    %970 = vmatpush2.msra.mxu0 %v830
    %971 = vmatprep.subr.mxu0 %v825
    %972 = vmatpush2.msra.mxu0 %v824
    %973 = vmatprep.subr.mxu0 %v819
    %974 = vmatpush2.msra.mxu0 %v818
    %975 = vmatprep.subr.mxu0 %v813
    %976 = vmatpush2.msra.mxu0 %v812
    %977 = vmatprep.subr.mxu0 %v807
    %978 = vmatpush2.msra.mxu0 %v806
    %979 = vmatprep.subr.mxu0 %v801
    %980 = vmatpush2.msra.mxu0 %v800
    %981 = vmatprep.subr.mxu0 %v795
    %982 = vmatpush2.msra.mxu0 %v794
    %983 = vmatprep.subr.mxu0 %v789
    %984 = vmatpush2.msra.mxu0 %v788
    %985 = vmatprep.subr.mxu0 %v783
    %986 = vmatpush2.msra.mxu0 %v782
    %987 = vmatprep.subr.mxu0 %v777
    %988 = vmatpush2.msra.mxu0 %v776
    %989 = vmatprep.subr.mxu0 %v771
    %990 = vmatpush2.msra.mxu0 %v770
    %991 = vmatprep.subr.mxu0 %v765
    %992 = vmatpush2.msra.mxu0 %v764
    %993 = vmatprep.mubr.f32.mxu0 0.0
    %994 = vmatmul.mubr.f32.gmra.mxu0 0.0
    %v995 = vpop.f32.mrf.mxu0
    %v996 = vadd.f32 0.0, %v995
    %v997 = vpop.f32.mrf.mxu0
    %v998 = vadd.f32 0.0, %v997
    %999 = vdwg.mxu0
    %1000 = vmatprep.subr.mxu0 %v761
    %1001 = vmatpush1.msra.mxu0 %v760
    %1002 = vmatprep.subr.mxu0 %v755
    %1003 = vmatpush1.msra.mxu0 %v754
    %1004 = vmatprep.subr.mxu0 %v749
    %1005 = vmatpush1.msra.mxu0 %v748
    %1006 = vmatprep.subr.mxu0 %v743
    %1007 = vmatpush1.msra.mxu0 %v742
    %1008 = vmatprep.subr.mxu0 %v737
    %1009 = vmatpush1.msra.mxu0 %v736
    %1010 = vmatprep.subr.mxu0 %v731
    %1011 = vmatpush1.msra.mxu0 %v730
    %1012 = vmatprep.subr.mxu0 %v725
    %1013 = vmatpush1.msra.mxu0 %v724
    %1014 = vmatprep.subr.mxu0 %v719
    %1015 = vmatpush1.msra.mxu0 %v718
    %1016 = vmatprep.subr.mxu0 %v713
    %1017 = vmatpush1.msra.mxu0 %v712
    %1018 = vmatprep.subr.mxu0 %v707
    %1019 = vmatpush1.msra.mxu0 %v706
    %1020 = vmatprep.subr.mxu0 %v701
    %1021 = vmatpush1.msra.mxu0 %v700
    %1022 = vmatprep.subr.mxu0 %v695
    %1023 = vmatpush1.msra.mxu0 %v694
    %1024 = vmatprep.subr.mxu0 %v689
    %1025 = vmatpush1.msra.mxu0 %v688
    %1026 = vmatprep.subr.mxu0 %v683
    %1027 = vmatpush1.msra.mxu0 %v682
    %1028 = vmatprep.subr.mxu0 %v677
    %1029 = vmatpush1.msra.mxu0 %v676
    %1030 = vmatprep.subr.mxu0 %v671
    %1031 = vmatpush1.msra.mxu0 %v670
    %1032 = vmatprep.subr.mxu0 %v857
    %1033 = vmatpush2.msra.mxu0 %v856
    %1034 = vmatprep.subr.mxu0 %v851
    %1035 = vmatpush2.msra.mxu0 %v850
    %1036 = vmatprep.subr.mxu0 %v845
    %1037 = vmatpush2.msra.mxu0 %v844
    %1038 = vmatprep.subr.mxu0 %v839
    %1039 = vmatpush2.msra.mxu0 %v838
    %1040 = vmatprep.subr.mxu0 %v833
    %1041 = vmatpush2.msra.mxu0 %v832
    %1042 = vmatprep.subr.mxu0 %v827
    %1043 = vmatpush2.msra.mxu0 %v826
    %1044 = vmatprep.subr.mxu0 %v821
    %1045 = vmatpush2.msra.mxu0 %v820
    %1046 = vmatprep.subr.mxu0 %v815
    %1047 = vmatpush2.msra.mxu0 %v814
    %1048 = vmatprep.subr.mxu0 %v809
    %1049 = vmatpush2.msra.mxu0 %v808
    %1050 = vmatprep.subr.mxu0 %v803
    %1051 = vmatpush2.msra.mxu0 %v802
    %1052 = vmatprep.subr.mxu0 %v797
    %1053 = vmatpush2.msra.mxu0 %v796
    %1054 = vmatprep.subr.mxu0 %v791
    %1055 = vmatpush2.msra.mxu0 %v790
    %1056 = vmatprep.subr.mxu0 %v785
    %1057 = vmatpush2.msra.mxu0 %v784
    %1058 = vmatprep.subr.mxu0 %v779
    %1059 = vmatpush2.msra.mxu0 %v778
    %1060 = vmatprep.subr.mxu0 %v773
    %1061 = vmatpush2.msra.mxu0 %v772
    %1062 = vmatprep.subr.mxu0 %v767
    %1063 = vmatpush2.msra.mxu0 %v766
    %1064 = vmatprep.mubr.f32.mxu0 0.0
    %1065 = vmatmul.mubr.f32.gmra.mxu0 0.0
    %v1066 = vpop.f32.mrf.mxu0
    %v1067 = vadd.f32 0.0, %v1066
    %v1068 = vpop.f32.mrf.mxu0
    %v1069 = vadd.f32 0.0, %v1068
    %1070 = vdwg.mxu0
    %v1071 = vadd.f32 %v660, %v925
    %v1072 = vadd.f32 %v661, %v927
    %v1073 = vmul.f32 %v1071, 0.5
    %v1074 = vmul.f32 %v1072, 0.5
    %v1075 = vtanh.pop %v1073
    %v1076 = vtanh.pop %v1074
    %v1077 = vadd.f32 %v1075, 1.0
    %v1078 = vadd.f32 %v1076, 1.0
    %v1079 = vmul.f32 %v1077, 0.5
    %v1080 = vmul.f32 %v1078, 0.5
    %v1081 = vadd.f32 %v662, %v996
    %v1082 = vadd.f32 %v663, %v998
    %v1083 = vmul.f32 %v1081, 0.5
    %v1084 = vmul.f32 %v1082, 0.5
    %v1085 = vtanh.pop %v1083
    %v1086 = vtanh.pop %v1084
    %v1087 = vadd.f32 %v1085, 1.0
    %v1088 = vadd.f32 %v1086, 1.0
    %v1089 = vmul.f32 %v1087, 0.5
    %v1090 = vmul.f32 %v1088, 0.5
    %v1091 = vadd.f32 %v1067, %v650
    %v1092 = vadd.f32 %v1069, %v654
    %v1093 = vmul.f32 %v1079, %v1091
    %v1094 = vmul.f32 %v1080, %v1092
    %v1095 = vadd.f32 %v664, %v1093
    %v1096 = vadd.f32 %v665, %v1094
    %v1097 = vtanh.pop %v1095
    %v1098 = vtanh.pop %v1096
    %v1099 = vsub.f32 1.0, %v1089
    %v1100 = vsub.f32 1.0, %v1090
    %v1101 = vmul.f32 %v1099, %v1097
    %v1102 = vmul.f32 %v1100, %v1098
    %v1103 = vmul.f32 %v1089, 0.0
    %v1104 = vmul.f32 %v1090, 0.0
    %v1105 = vadd.f32 %v1101, %v1103
    %v1106 = vadd.f32 %v1102, %v1104
    %s1107 = smul.u32 0, 2
    %s1108 = smul.addr %s1107, 8
    %s1109 = scalar_lea.vmem [#allocation9], %s1108
    %1110 = vst [vmem:[%s1109] sm:$0xff] %v1105
    %s1111 = smul.u32 7, 2
    %s1112 = smul.addr %s1111, 8
    %s1113 = scalar_lea.vmem [#allocation9], %s1112
    %1114 = vst [vmem:[%s1113 + $0x8] sm:$0xff] %v1106
    %s1115 = smul.u32 1, 6
    %s1116 = smul.addr %s1115, 8
    %s1117 = scalar_lea.vmem [#allocation2], %s1116
    %v1118 = vld [vmem:[%s1117] sm:$0xff]
    %v1119 = vld [vmem:[%s1117 + $0x8] sm:$0xff]
    %v1120 = vld [vmem:[%s1117 + $0x10] sm:$0xff]
    %v1121 = vld [vmem:[%s1117 + $0x18] sm:$0xff]
    %v1122 = vld [vmem:[%s1117 + $0x20] sm:$0xff]
    %v1123 = vld [vmem:[%s1117 + $0x28] sm:$0xff]
    %v1124 = vld [vmem:[#allocation6] sm:$0xff]
    %v1125 = vld [vmem:[#allocation6 + $0x8] sm:$0xff]
    %v1126 = vld [vmem:[#allocation6 + $0x10] sm:$0xff]
    %v1127 = vld [vmem:[#allocation6 + $0x18] sm:$0xff]
    %v1128 = vld [vmem:[#allocation6 + $0x20] sm:$0xff]
    %v1129 = vld [vmem:[#allocation6 + $0x28] sm:$0xff]
    %v1130 = vld [vmem:[#allocation6 + $0x30] sm:$0xff]
    %v1131 = vld [vmem:[#allocation6 + $0x38] sm:$0xff]
    %v1132 = vld [vmem:[#allocation6 + $0x40] sm:$0xff]
    %v1133 = vld [vmem:[#allocation6 + $0x48] sm:$0xff]
    %v1134 = vld [vmem:[#allocation6 + $0x50] sm:$0xff]
    %v1135 = vld [vmem:[#allocation6 + $0x58] sm:$0xff]
    %v1136 = vld [vmem:[#allocation6 + $0x60] sm:$0xff]
    %v1137 = vld [vmem:[#allocation6 + $0x68] sm:$0xff]
    %v1138 = vld [vmem:[#allocation6 + $0x70] sm:$0xff]
    %v1139 = vld [vmem:[#allocation6 + $0x78] sm:$0xff]
    %v1140 = vld [vmem:[#allocation6 + $0x80] sm:$0xff]
    %v1141 = vld [vmem:[#allocation6 + $0x88] sm:$0xff]
    %v1142 = vld [vmem:[#allocation6 + $0x90] sm:$0xff]
    %v1143 = vld [vmem:[#allocation6 + $0x98] sm:$0xff]
    %v1144 = vld [vmem:[#allocation6 + $0xa0] sm:$0xff]
    %v1145 = vld [vmem:[#allocation6 + $0xa8] sm:$0xff]
    %v1146 = vld [vmem:[#allocation6 + $0xb0] sm:$0xff]
    %v1147 = vld [vmem:[#allocation6 + $0xb8] sm:$0xff]
    %v1148 = vld [vmem:[#allocation6 + $0xc0] sm:$0xff]
    %v1149 = vld [vmem:[#allocation6 + $0xc8] sm:$0xff]
    %v1150 = vld [vmem:[#allocation6 + $0xd0] sm:$0xff]
    %v1151 = vld [vmem:[#allocation6 + $0xd8] sm:$0xff]
    %v1152 = vld [vmem:[#allocation6 + $0xe0] sm:$0xff]
    %v1153 = vld [vmem:[#allocation6 + $0xe8] sm:$0xff]
    %v1154 = vld [vmem:[#allocation6 + $0xf0] sm:$0xff]
    %v1155 = vld [vmem:[#allocation6 + $0xf8] sm:$0xff]
    %v1156 = vld [vmem:[#allocation6 + $0x100] sm:$0xff]
    %v1157 = vld [vmem:[#allocation6 + $0x108] sm:$0xff]
    %v1158 = vld [vmem:[#allocation6 + $0x110] sm:$0xff]
    %v1159 = vld [vmem:[#allocation6 + $0x118] sm:$0xff]
    %v1160 = vld [vmem:[#allocation6 + $0x120] sm:$0xff]
    %v1161 = vld [vmem:[#allocation6 + $0x128] sm:$0xff]
    %v1162 = vld [vmem:[#allocation6 + $0x130] sm:$0xff]
    %v1163 = vld [vmem:[#allocation6 + $0x138] sm:$0xff]
    %v1164 = vld [vmem:[#allocation6 + $0x140] sm:$0xff]
    %v1165 = vld [vmem:[#allocation6 + $0x148] sm:$0xff]
    %v1166 = vld [vmem:[#allocation6 + $0x150] sm:$0xff]
    %v1167 = vld [vmem:[#allocation6 + $0x158] sm:$0xff]
    %v1168 = vld [vmem:[#allocation6 + $0x160] sm:$0xff]
    %v1169 = vld [vmem:[#allocation6 + $0x168] sm:$0xff]
    %v1170 = vld [vmem:[#allocation6 + $0x170] sm:$0xff]
    %v1171 = vld [vmem:[#allocation6 + $0x178] sm:$0xff]
    %v1172 = vld [vmem:[#allocation6 + $0x180] sm:$0xff]
    %v1173 = vld [vmem:[#allocation6 + $0x188] sm:$0xff]
    %v1174 = vld [vmem:[#allocation6 + $0x190] sm:$0xff]
    %v1175 = vld [vmem:[#allocation6 + $0x198] sm:$0xff]
    %v1176 = vld [vmem:[#allocation6 + $0x1a0] sm:$0xff]
    %v1177 = vld [vmem:[#allocation6 + $0x1a8] sm:$0xff]
    %v1178 = vld [vmem:[#allocation6 + $0x1b0] sm:$0xff]
    %v1179 = vld [vmem:[#allocation6 + $0x1b8] sm:$0xff]
    %v1180 = vld [vmem:[#allocation6 + $0x1c0] sm:$0xff]
    %v1181 = vld [vmem:[#allocation6 + $0x1c8] sm:$0xff]
    %v1182 = vld [vmem:[#allocation6 + $0x1d0] sm:$0xff]
    %v1183 = vld [vmem:[#allocation6 + $0x1d8] sm:$0xff]
    %v1184 = vld [vmem:[#allocation6 + $0x1e0] sm:$0xff]
    %v1185 = vld [vmem:[#allocation6 + $0x1e8] sm:$0xff]
    %v1186 = vld [vmem:[#allocation6 + $0x1f0] sm:$0xff]
    %v1187 = vld [vmem:[#allocation6 + $0x1f8] sm:$0xff]
    %v1188 = vld [vmem:[#allocation6 + $0x200] sm:$0xff]
    %v1189 = vld [vmem:[#allocation6 + $0x208] sm:$0xff]
    %v1190 = vld [vmem:[#allocation6 + $0x210] sm:$0xff]
    %v1191 = vld [vmem:[#allocation6 + $0x218] sm:$0xff]
    %v1192 = vld [vmem:[#allocation6 + $0x220] sm:$0xff]
    %v1193 = vld [vmem:[#allocation6 + $0x228] sm:$0xff]
    %v1194 = vld [vmem:[#allocation6 + $0x230] sm:$0xff]
    %v1195 = vld [vmem:[#allocation6 + $0x238] sm:$0xff]
    %v1196 = vld [vmem:[#allocation6 + $0x240] sm:$0xff]
    %v1197 = vld [vmem:[#allocation6 + $0x248] sm:$0xff]
    %v1198 = vld [vmem:[#allocation6 + $0x250] sm:$0xff]
    %v1199 = vld [vmem:[#allocation6 + $0x258] sm:$0xff]
    %v1200 = vld [vmem:[#allocation6 + $0x260] sm:$0xff]
    %v1201 = vld [vmem:[#allocation6 + $0x268] sm:$0xff]
    %v1202 = vld [vmem:[#allocation6 + $0x270] sm:$0xff]
    %v1203 = vld [vmem:[#allocation6 + $0x278] sm:$0xff]
    %v1204 = vld [vmem:[#allocation6 + $0x280] sm:$0xff]
    %v1205 = vld [vmem:[#allocation6 + $0x288] sm:$0xff]
    %v1206 = vld [vmem:[#allocation6 + $0x290] sm:$0xff]
    %v1207 = vld [vmem:[#allocation6 + $0x298] sm:$0xff]
    %v1208 = vld [vmem:[#allocation6 + $0x2a0] sm:$0xff]
    %v1209 = vld [vmem:[#allocation6 + $0x2a8] sm:$0xff]
    %v1210 = vld [vmem:[#allocation6 + $0x2b0] sm:$0xff]
    %v1211 = vld [vmem:[#allocation6 + $0x2b8] sm:$0xff]
    %v1212 = vld [vmem:[#allocation6 + $0x2c0] sm:$0xff]
    %v1213 = vld [vmem:[#allocation6 + $0x2c8] sm:$0xff]
    %v1214 = vld [vmem:[#allocation6 + $0x2d0] sm:$0xff]
    %v1215 = vld [vmem:[#allocation6 + $0x2d8] sm:$0xff]
    %v1216 = vld [vmem:[#allocation6 + $0x2e0] sm:$0xff]
    %v1217 = vld [vmem:[#allocation6 + $0x2e8] sm:$0xff]
    %v1218 = vld [vmem:[#allocation6 + $0x2f0] sm:$0xff]
    %v1219 = vld [vmem:[#allocation6 + $0x2f8] sm:$0xff]
    %v1220 = vld [vmem:[#allocation6 + $0x300] sm:$0xff]
    %v1221 = vld [vmem:[#allocation6 + $0x308] sm:$0xff]
    %v1222 = vld [vmem:[#allocation6 + $0x310] sm:$0xff]
    %v1223 = vld [vmem:[#allocation6 + $0x318] sm:$0xff]
    %v1224 = vld [vmem:[#allocation6 + $0x320] sm:$0xff]
    %v1225 = vld [vmem:[#allocation6 + $0x328] sm:$0xff]
    %v1226 = vld [vmem:[#allocation6 + $0x330] sm:$0xff]
    %v1227 = vld [vmem:[#allocation6 + $0x338] sm:$0xff]
    %v1228 = vld [vmem:[#allocation6 + $0x340] sm:$0xff]
    %v1229 = vld [vmem:[#allocation6 + $0x348] sm:$0xff]
    %v1230 = vld [vmem:[#allocation6 + $0x350] sm:$0xff]
    %v1231 = vld [vmem:[#allocation6 + $0x358] sm:$0xff]
    %v1232 = vld [vmem:[#allocation6 + $0x360] sm:$0xff]
    %v1233 = vld [vmem:[#allocation6 + $0x368] sm:$0xff]
    %v1234 = vld [vmem:[#allocation6 + $0x370] sm:$0xff]
    %v1235 = vld [vmem:[#allocation6 + $0x378] sm:$0xff]
    %v1236 = vld [vmem:[#allocation6 + $0x380] sm:$0xff]
    %v1237 = vld [vmem:[#allocation6 + $0x388] sm:$0xff]
    %v1238 = vld [vmem:[#allocation6 + $0x390] sm:$0xff]
    %v1239 = vld [vmem:[#allocation6 + $0x398] sm:$0xff]
    %v1240 = vld [vmem:[#allocation6 + $0x3a0] sm:$0xff]
    %v1241 = vld [vmem:[#allocation6 + $0x3a8] sm:$0xff]
    %v1242 = vld [vmem:[#allocation6 + $0x3b0] sm:$0xff]
    %v1243 = vld [vmem:[#allocation6 + $0x3b8] sm:$0xff]
    %v1244 = vld [vmem:[#allocation6 + $0x3c0] sm:$0xff]
    %v1245 = vld [vmem:[#allocation6 + $0x3c8] sm:$0xff]
    %v1246 = vld [vmem:[#allocation6 + $0x3d0] sm:$0xff]
    %v1247 = vld [vmem:[#allocation6 + $0x3d8] sm:$0xff]
    %v1248 = vld [vmem:[#allocation6 + $0x3e0] sm:$0xff]
    %v1249 = vld [vmem:[#allocation6 + $0x3e8] sm:$0xff]
    %v1250 = vld [vmem:[#allocation6 + $0x3f0] sm:$0xff]
    %v1251 = vld [vmem:[#allocation6 + $0x3f8] sm:$0xff]
    %v1252 = vld [vmem:[#allocation6 + $0x400] sm:$0xff]
    %v1253 = vld [vmem:[#allocation6 + $0x408] sm:$0xff]
    %v1254 = vld [vmem:[#allocation6 + $0x410] sm:$0xff]
    %v1255 = vld [vmem:[#allocation6 + $0x418] sm:$0xff]
    %v1256 = vld [vmem:[#allocation6 + $0x420] sm:$0xff]
    %v1257 = vld [vmem:[#allocation6 + $0x428] sm:$0xff]
    %v1258 = vld [vmem:[#allocation6 + $0x430] sm:$0xff]
    %v1259 = vld [vmem:[#allocation6 + $0x438] sm:$0xff]
    %v1260 = vld [vmem:[#allocation6 + $0x440] sm:$0xff]
    %v1261 = vld [vmem:[#allocation6 + $0x448] sm:$0xff]
    %v1262 = vld [vmem:[#allocation6 + $0x450] sm:$0xff]
    %v1263 = vld [vmem:[#allocation6 + $0x458] sm:$0xff]
    %v1264 = vld [vmem:[#allocation6 + $0x460] sm:$0xff]
    %v1265 = vld [vmem:[#allocation6 + $0x468] sm:$0xff]
    %v1266 = vld [vmem:[#allocation6 + $0x470] sm:$0xff]
    %v1267 = vld [vmem:[#allocation6 + $0x478] sm:$0xff]
    %v1268 = vld [vmem:[#allocation6 + $0x480] sm:$0xff]
    %v1269 = vld [vmem:[#allocation6 + $0x488] sm:$0xff]
    %v1270 = vld [vmem:[#allocation6 + $0x490] sm:$0xff]
    %v1271 = vld [vmem:[#allocation6 + $0x498] sm:$0xff]
    %v1272 = vld [vmem:[#allocation6 + $0x4a0] sm:$0xff]
    %v1273 = vld [vmem:[#allocation6 + $0x4a8] sm:$0xff]
    %v1274 = vld [vmem:[#allocation6 + $0x4b0] sm:$0xff]
    %v1275 = vld [vmem:[#allocation6 + $0x4b8] sm:$0xff]
    %v1276 = vld [vmem:[#allocation6 + $0x4c0] sm:$0xff]
    %v1277 = vld [vmem:[#allocation6 + $0x4c8] sm:$0xff]
    %v1278 = vld [vmem:[#allocation6 + $0x4d0] sm:$0xff]
    %v1279 = vld [vmem:[#allocation6 + $0x4d8] sm:$0xff]
    %v1280 = vld [vmem:[#allocation6 + $0x4e0] sm:$0xff]
    %v1281 = vld [vmem:[#allocation6 + $0x4e8] sm:$0xff]
    %v1282 = vld [vmem:[#allocation6 + $0x4f0] sm:$0xff]
    %v1283 = vld [vmem:[#allocation6 + $0x4f8] sm:$0xff]
    %v1284 = vld [vmem:[#allocation6 + $0x500] sm:$0xff]
    %v1285 = vld [vmem:[#allocation6 + $0x508] sm:$0xff]
    %v1286 = vld [vmem:[#allocation6 + $0x510] sm:$0xff]
    %v1287 = vld [vmem:[#allocation6 + $0x518] sm:$0xff]
    %v1288 = vld [vmem:[#allocation6 + $0x520] sm:$0xff]
    %v1289 = vld [vmem:[#allocation6 + $0x528] sm:$0xff]
    %v1290 = vld [vmem:[#allocation6 + $0x530] sm:$0xff]
    %v1291 = vld [vmem:[#allocation6 + $0x538] sm:$0xff]
    %v1292 = vld [vmem:[#allocation6 + $0x540] sm:$0xff]
    %v1293 = vld [vmem:[#allocation6 + $0x548] sm:$0xff]
    %v1294 = vld [vmem:[#allocation6 + $0x550] sm:$0xff]
    %v1295 = vld [vmem:[#allocation6 + $0x558] sm:$0xff]
    %v1296 = vld [vmem:[#allocation6 + $0x560] sm:$0xff]
    %v1297 = vld [vmem:[#allocation6 + $0x568] sm:$0xff]
    %v1298 = vld [vmem:[#allocation6 + $0x570] sm:$0xff]
    %v1299 = vld [vmem:[#allocation6 + $0x578] sm:$0xff]
    %v1300 = vld [vmem:[#allocation6 + $0x580] sm:$0xff]
    %v1301 = vld [vmem:[#allocation6 + $0x588] sm:$0xff]
    %v1302 = vld [vmem:[#allocation6 + $0x590] sm:$0xff]
    %v1303 = vld [vmem:[#allocation6 + $0x598] sm:$0xff]
    %v1304 = vld [vmem:[#allocation6 + $0x5a0] sm:$0xff]
    %v1305 = vld [vmem:[#allocation6 + $0x5a8] sm:$0xff]
    %v1306 = vld [vmem:[#allocation6 + $0x5b0] sm:$0xff]
    %v1307 = vld [vmem:[#allocation6 + $0x5b8] sm:$0xff]
    %v1308 = vld [vmem:[#allocation6 + $0x5c0] sm:$0xff]
    %v1309 = vld [vmem:[#allocation6 + $0x5c8] sm:$0xff]
    %v1310 = vld [vmem:[#allocation6 + $0x5d0] sm:$0xff]
    %v1311 = vld [vmem:[#allocation6 + $0x5d8] sm:$0xff]
    %v1312 = vld [vmem:[#allocation6 + $0x5e0] sm:$0xff]
    %v1313 = vld [vmem:[#allocation6 + $0x5e8] sm:$0xff]
    %v1314 = vld [vmem:[#allocation6 + $0x5f0] sm:$0xff]
    %v1315 = vld [vmem:[#allocation6 + $0x5f8] sm:$0xff]
    %1316 = vmatprep.subr.mxu0 %v1215
    %1317 = vmatpush1.msra.mxu0 %v1214
    %1318 = vmatprep.subr.mxu0 %v1209
    %1319 = vmatpush1.msra.mxu0 %v1208
    %1320 = vmatprep.subr.mxu0 %v1203
    %1321 = vmatpush1.msra.mxu0 %v1202
    %1322 = vmatprep.subr.mxu0 %v1197
    %1323 = vmatpush1.msra.mxu0 %v1196
    %1324 = vmatprep.subr.mxu0 %v1191
    %1325 = vmatpush1.msra.mxu0 %v1190
    %1326 = vmatprep.subr.mxu0 %v1185
    %1327 = vmatpush1.msra.mxu0 %v1184
    %1328 = vmatprep.subr.mxu0 %v1179
    %1329 = vmatpush1.msra.mxu0 %v1178
    %1330 = vmatprep.subr.mxu0 %v1173
    %1331 = vmatpush1.msra.mxu0 %v1172
    %1332 = vmatprep.subr.mxu0 %v1167
    %1333 = vmatpush1.msra.mxu0 %v1166
    %1334 = vmatprep.subr.mxu0 %v1161
    %1335 = vmatpush1.msra.mxu0 %v1160
    %1336 = vmatprep.subr.mxu0 %v1155
    %1337 = vmatpush1.msra.mxu0 %v1154
    %1338 = vmatprep.subr.mxu0 %v1149
    %1339 = vmatpush1.msra.mxu0 %v1148
    %1340 = vmatprep.subr.mxu0 %v1143
    %1341 = vmatpush1.msra.mxu0 %v1142
    %1342 = vmatprep.subr.mxu0 %v1137
    %1343 = vmatpush1.msra.mxu0 %v1136
    %1344 = vmatprep.subr.mxu0 %v1131
    %1345 = vmatpush1.msra.mxu0 %v1130
    %1346 = vmatprep.subr.mxu0 %v1125
    %1347 = vmatpush1.msra.mxu0 %v1124
    %1348 = vmatprep.subr.mxu0 %v1311
    %1349 = vmatpush2.msra.mxu0 %v1310
    %1350 = vmatprep.subr.mxu0 %v1305
    %1351 = vmatpush2.msra.mxu0 %v1304
    %1352 = vmatprep.subr.mxu0 %v1299
    %1353 = vmatpush2.msra.mxu0 %v1298
    %1354 = vmatprep.subr.mxu0 %v1293
    %1355 = vmatpush2.msra.mxu0 %v1292
    %1356 = vmatprep.subr.mxu0 %v1287
    %1357 = vmatpush2.msra.mxu0 %v1286
    %1358 = vmatprep.subr.mxu0 %v1281
    %1359 = vmatpush2.msra.mxu0 %v1280
    %1360 = vmatprep.subr.mxu0 %v1275
    %1361 = vmatpush2.msra.mxu0 %v1274
    %1362 = vmatprep.subr.mxu0 %v1269
    %1363 = vmatpush2.msra.mxu0 %v1268
    %1364 = vmatprep.subr.mxu0 %v1263
    %1365 = vmatpush2.msra.mxu0 %v1262
    %1366 = vmatprep.subr.mxu0 %v1257
    %1367 = vmatpush2.msra.mxu0 %v1256
    %1368 = vmatprep.subr.mxu0 %v1251
    %1369 = vmatpush2.msra.mxu0 %v1250
    %1370 = vmatprep.subr.mxu0 %v1245
    %1371 = vmatpush2.msra.mxu0 %v1244
    %1372 = vmatprep.subr.mxu0 %v1239
    %1373 = vmatpush2.msra.mxu0 %v1238
    %1374 = vmatprep.subr.mxu0 %v1233
    %1375 = vmatpush2.msra.mxu0 %v1232
    %1376 = vmatprep.subr.mxu0 %v1227
    %1377 = vmatpush2.msra.mxu0 %v1226
    %1378 = vmatprep.subr.mxu0 %v1221
    %1379 = vmatpush2.msra.mxu0 %v1220
    %1380 = vmatprep.mubr.f32.mxu0 %v1106
    %1381 = vmatmul.mubr.f32.gmra.mxu0 %v1105
    %v1382 = vpop.f32.mrf.mxu0
    %v1383 = vadd.f32 0.0, %v1382
    %v1384 = vpop.f32.mrf.mxu0
    %v1385 = vadd.f32 0.0, %v1384
    %1386 = vdwg.mxu0
    %1387 = vmatprep.subr.mxu0 %v1217
    %1388 = vmatpush1.msra.mxu0 %v1216
    %1389 = vmatprep.subr.mxu0 %v1211
    %1390 = vmatpush1.msra.mxu0 %v1210
    %1391 = vmatprep.subr.mxu0 %v1205
    %1392 = vmatpush1.msra.mxu0 %v1204
    %1393 = vmatprep.subr.mxu0 %v1199
    %1394 = vmatpush1.msra.mxu0 %v1198
    %1395 = vmatprep.subr.mxu0 %v1193
    %1396 = vmatpush1.msra.mxu0 %v1192
    %1397 = vmatprep.subr.mxu0 %v1187
    %1398 = vmatpush1.msra.mxu0 %v1186
    %1399 = vmatprep.subr.mxu0 %v1181
    %1400 = vmatpush1.msra.mxu0 %v1180
    %1401 = vmatprep.subr.mxu0 %v1175
    %1402 = vmatpush1.msra.mxu0 %v1174
    %1403 = vmatprep.subr.mxu0 %v1169
    %1404 = vmatpush1.msra.mxu0 %v1168
    %1405 = vmatprep.subr.mxu0 %v1163
    %1406 = vmatpush1.msra.mxu0 %v1162
    %1407 = vmatprep.subr.mxu0 %v1157
    %1408 = vmatpush1.msra.mxu0 %v1156
    %1409 = vmatprep.subr.mxu0 %v1151
    %1410 = vmatpush1.msra.mxu0 %v1150
    %1411 = vmatprep.subr.mxu0 %v1145
    %1412 = vmatpush1.msra.mxu0 %v1144
    %1413 = vmatprep.subr.mxu0 %v1139
    %1414 = vmatpush1.msra.mxu0 %v1138
    %1415 = vmatprep.subr.mxu0 %v1133
    %1416 = vmatpush1.msra.mxu0 %v1132
    %1417 = vmatprep.subr.mxu0 %v1127
    %1418 = vmatpush1.msra.mxu0 %v1126
    %1419 = vmatprep.subr.mxu0 %v1313
    %1420 = vmatpush2.msra.mxu0 %v1312
    %1421 = vmatprep.subr.mxu0 %v1307
    %1422 = vmatpush2.msra.mxu0 %v1306
    %1423 = vmatprep.subr.mxu0 %v1301
    %1424 = vmatpush2.msra.mxu0 %v1300
    %1425 = vmatprep.subr.mxu0 %v1295
    %1426 = vmatpush2.msra.mxu0 %v1294
    %1427 = vmatprep.subr.mxu0 %v1289
    %1428 = vmatpush2.msra.mxu0 %v1288
    %1429 = vmatprep.subr.mxu0 %v1283
    %1430 = vmatpush2.msra.mxu0 %v1282
    %1431 = vmatprep.subr.mxu0 %v1277
    %1432 = vmatpush2.msra.mxu0 %v1276
    %1433 = vmatprep.subr.mxu0 %v1271
    %1434 = vmatpush2.msra.mxu0 %v1270
    %1435 = vmatprep.subr.mxu0 %v1265
    %1436 = vmatpush2.msra.mxu0 %v1264
    %1437 = vmatprep.subr.mxu0 %v1259
    %1438 = vmatpush2.msra.mxu0 %v1258
    %1439 = vmatprep.subr.mxu0 %v1253
    %1440 = vmatpush2.msra.mxu0 %v1252
    %1441 = vmatprep.subr.mxu0 %v1247
    %1442 = vmatpush2.msra.mxu0 %v1246
    %1443 = vmatprep.subr.mxu0 %v1241
    %1444 = vmatpush2.msra.mxu0 %v1240
    %1445 = vmatprep.subr.mxu0 %v1235
    %1446 = vmatpush2.msra.mxu0 %v1234
    %1447 = vmatprep.subr.mxu0 %v1229
    %1448 = vmatpush2.msra.mxu0 %v1228
    %1449 = vmatprep.subr.mxu0 %v1223
    %1450 = vmatpush2.msra.mxu0 %v1222
    %1451 = vmatprep.mubr.f32.mxu0 %v1106
    %1452 = vmatmul.mubr.f32.gmra.mxu0 %v1105
    %v1453 = vpop.f32.mrf.mxu0
    %v1454 = vadd.f32 0.0, %v1453
    %v1455 = vpop.f32.mrf.mxu0
    %v1456 = vadd.f32 0.0, %v1455
    %1457 = vdwg.mxu0
    %1458 = vmatprep.subr.mxu0 %v1219
    %1459 = vmatpush1.msra.mxu0 %v1218
    %1460 = vmatprep.subr.mxu0 %v1213
    %1461 = vmatpush1.msra.mxu0 %v1212
    %1462 = vmatprep.subr.mxu0 %v1207
    %1463 = vmatpush1.msra.mxu0 %v1206
    %1464 = vmatprep.subr.mxu0 %v1201
    %1465 = vmatpush1.msra.mxu0 %v1200
    %1466 = vmatprep.subr.mxu0 %v1195
    %1467 = vmatpush1.msra.mxu0 %v1194
    %1468 = vmatprep.subr.mxu0 %v1189
    %1469 = vmatpush1.msra.mxu0 %v1188
    %1470 = vmatprep.subr.mxu0 %v1183
    %1471 = vmatpush1.msra.mxu0 %v1182
    %1472 = vmatprep.subr.mxu0 %v1177
    %1473 = vmatpush1.msra.mxu0 %v1176
    %1474 = vmatprep.subr.mxu0 %v1171
    %1475 = vmatpush1.msra.mxu0 %v1170
    %1476 = vmatprep.subr.mxu0 %v1165
    %1477 = vmatpush1.msra.mxu0 %v1164
    %1478 = vmatprep.subr.mxu0 %v1159
    %1479 = vmatpush1.msra.mxu0 %v1158
    %1480 = vmatprep.subr.mxu0 %v1153
    %1481 = vmatpush1.msra.mxu0 %v1152
    %1482 = vmatprep.subr.mxu0 %v1147
    %1483 = vmatpush1.msra.mxu0 %v1146
    %1484 = vmatprep.subr.mxu0 %v1141
    %1485 = vmatpush1.msra.mxu0 %v1140
    %1486 = vmatprep.subr.mxu0 %v1135
    %1487 = vmatpush1.msra.mxu0 %v1134
    %1488 = vmatprep.subr.mxu0 %v1129
    %1489 = vmatpush1.msra.mxu0 %v1128
    %1490 = vmatprep.subr.mxu0 %v1315
    %1491 = vmatpush2.msra.mxu0 %v1314
    %1492 = vmatprep.subr.mxu0 %v1309
    %1493 = vmatpush2.msra.mxu0 %v1308
    %1494 = vmatprep.subr.mxu0 %v1303
    %1495 = vmatpush2.msra.mxu0 %v1302
    %1496 = vmatprep.subr.mxu0 %v1297
    %1497 = vmatpush2.msra.mxu0 %v1296
    %1498 = vmatprep.subr.mxu0 %v1291
    %1499 = vmatpush2.msra.mxu0 %v1290
    %1500 = vmatprep.subr.mxu0 %v1285
    %1501 = vmatpush2.msra.mxu0 %v1284
    %1502 = vmatprep.subr.mxu0 %v1279
    %1503 = vmatpush2.msra.mxu0 %v1278
    %1504 = vmatprep.subr.mxu0 %v1273
    %1505 = vmatpush2.msra.mxu0 %v1272
    %1506 = vmatprep.subr.mxu0 %v1267
    %1507 = vmatpush2.msra.mxu0 %v1266
    %1508 = vmatprep.subr.mxu0 %v1261
    %1509 = vmatpush2.msra.mxu0 %v1260
    %1510 = vmatprep.subr.mxu0 %v1255
    %1511 = vmatpush2.msra.mxu0 %v1254
    %1512 = vmatprep.subr.mxu0 %v1249
    %1513 = vmatpush2.msra.mxu0 %v1248
    %1514 = vmatprep.subr.mxu0 %v1243
    %1515 = vmatpush2.msra.mxu0 %v1242
    %1516 = vmatprep.subr.mxu0 %v1237
    %1517 = vmatpush2.msra.mxu0 %v1236
    %1518 = vmatprep.subr.mxu0 %v1231
    %1519 = vmatpush2.msra.mxu0 %v1230
    %1520 = vmatprep.subr.mxu0 %v1225
    %1521 = vmatpush2.msra.mxu0 %v1224
    %1522 = vmatprep.mubr.f32.mxu0 %v1106
    %1523 = vmatmul.mubr.f32.gmra.mxu0 %v1105
    %v1524 = vpop.f32.mrf.mxu0
    %v1525 = vadd.f32 0.0, %v1524
    %v1526 = vpop.f32.mrf.mxu0
    %v1527 = vadd.f32 0.0, %v1526
    %1528 = vdwg.mxu0
    %v1529 = vadd.f32 %v1118, %v1383
    %v1530 = vadd.f32 %v1119, %v1385
    %v1531 = vmul.f32 %v1529, 0.5
    %v1532 = vmul.f32 %v1530, 0.5
    %v1533 = vtanh.pop %v1531
    %v1534 = vtanh.pop %v1532
    %v1535 = vadd.f32 %v1533, 1.0
    %v1536 = vadd.f32 %v1534, 1.0
    %v1537 = vmul.f32 %v1535, 0.5
    %v1538 = vmul.f32 %v1536, 0.5
    %v1539 = vadd.f32 %v1120, %v1454
    %v1540 = vadd.f32 %v1121, %v1456
    %v1541 = vmul.f32 %v1539, 0.5
    %v1542 = vmul.f32 %v1540, 0.5
    %v1543 = vtanh.pop %v1541
    %v1544 = vtanh.pop %v1542
    %v1545 = vadd.f32 %v1543, 1.0
    %v1546 = vadd.f32 %v1544, 1.0
    %v1547 = vmul.f32 %v1545, 0.5
    %v1548 = vmul.f32 %v1546, 0.5
    %v1549 = vadd.f32 %v1525, %v650
    %v1550 = vadd.f32 %v1527, %v654
    %v1551 = vmul.f32 %v1537, %v1549
    %v1552 = vmul.f32 %v1538, %v1550
    %v1553 = vadd.f32 %v1122, %v1551
    %v1554 = vadd.f32 %v1123, %v1552
    %v1555 = vtanh.pop %v1553
    %v1556 = vtanh.pop %v1554
    %v1557 = vsub.f32 1.0, %v1547
    %v1558 = vsub.f32 1.0, %v1548
    %v1559 = vmul.f32 %v1557, %v1555
    %v1560 = vmul.f32 %v1558, %v1556
    %v1561 = vmul.f32 %v1547, %v1105
    %v1562 = vmul.f32 %v1548, %v1106
    %v1563 = vadd.f32 %v1559, %v1561
    %v1564 = vadd.f32 %v1560, %v1562
    %s1565 = smul.u32 1, 2
    %s1566 = smul.addr %s1565, 8
    %s1567 = scalar_lea.vmem [#allocation9], %s1566
    %1568 = vst [vmem:[%s1567] sm:$0xff] %v1563
    %s1569 = smul.u32 6, 2
    %s1570 = smul.addr %s1569, 8
    %s1571 = scalar_lea.vmem [#allocation9], %s1570
    %1572 = vst [vmem:[%s1571 + $0x8] sm:$0xff] %v1564
    %s1573 = smul.u32 2, 6
    %s1574 = smul.addr %s1573, 8
    %s1575 = scalar_lea.vmem [#allocation2], %s1574
    %v1576 = vld [vmem:[%s1575] sm:$0xff]
    %v1577 = vld [vmem:[%s1575 + $0x8] sm:$0xff]
    %v1578 = vld [vmem:[%s1575 + $0x10] sm:$0xff]
    %v1579 = vld [vmem:[%s1575 + $0x18] sm:$0xff]
    %v1580 = vld [vmem:[%s1575 + $0x20] sm:$0xff]
    %v1581 = vld [vmem:[%s1575 + $0x28] sm:$0xff]
    %v1582 = vld [vmem:[#allocation6] sm:$0xff]
    %v1583 = vld [vmem:[#allocation6 + $0x8] sm:$0xff]
    %v1584 = vld [vmem:[#allocation6 + $0x10] sm:$0xff]
    %v1585 = vld [vmem:[#allocation6 + $0x18] sm:$0xff]
    %v1586 = vld [vmem:[#allocation6 + $0x20] sm:$0xff]
    %v1587 = vld [vmem:[#allocation6 + $0x28] sm:$0xff]
    %v1588 = vld [vmem:[#allocation6 + $0x30] sm:$0xff]
    %v1589 = vld [vmem:[#allocation6 + $0x38] sm:$0xff]
    %v1590 = vld [vmem:[#allocation6 + $0x40] sm:$0xff]
    %v1591 = vld [vmem:[#allocation6 + $0x48] sm:$0xff]
    %v1592 = vld [vmem:[#allocation6 + $0x50] sm:$0xff]
    %v1593 = vld [vmem:[#allocation6 + $0x58] sm:$0xff]
    %v1594 = vld [vmem:[#allocation6 + $0x60] sm:$0xff]
    %v1595 = vld [vmem:[#allocation6 + $0x68] sm:$0xff]
    %v1596 = vld [vmem:[#allocation6 + $0x70] sm:$0xff]
    %v1597 = vld [vmem:[#allocation6 + $0x78] sm:$0xff]
    %v1598 = vld [vmem:[#allocation6 + $0x80] sm:$0xff]
    %v1599 = vld [vmem:[#allocation6 + $0x88] sm:$0xff]
    %v1600 = vld [vmem:[#allocation6 + $0x90] sm:$0xff]
    %v1601 = vld [vmem:[#allocation6 + $0x98] sm:$0xff]
    %v1602 = vld [vmem:[#allocation6 + $0xa0] sm:$0xff]
    %v1603 = vld [vmem:[#allocation6 + $0xa8] sm:$0xff]
    %v1604 = vld [vmem:[#allocation6 + $0xb0] sm:$0xff]
    %v1605 = vld [vmem:[#allocation6 + $0xb8] sm:$0xff]
    %v1606 = vld [vmem:[#allocation6 + $0xc0] sm:$0xff]
    %v1607 = vld [vmem:[#allocation6 + $0xc8] sm:$0xff]
    %v1608 = vld [vmem:[#allocation6 + $0xd0] sm:$0xff]
    %v1609 = vld [vmem:[#allocation6 + $0xd8] sm:$0xff]
    %v1610 = vld [vmem:[#allocation6 + $0xe0] sm:$0xff]
    %v1611 = vld [vmem:[#allocation6 + $0xe8] sm:$0xff]
    %v1612 = vld [vmem:[#allocation6 + $0xf0] sm:$0xff]
    %v1613 = vld [vmem:[#allocation6 + $0xf8] sm:$0xff]
    %v1614 = vld [vmem:[#allocation6 + $0x100] sm:$0xff]
    %v1615 = vld [vmem:[#allocation6 + $0x108] sm:$0xff]
    %v1616 = vld [vmem:[#allocation6 + $0x110] sm:$0xff]
    %v1617 = vld [vmem:[#allocation6 + $0x118] sm:$0xff]
    %v1618 = vld [vmem:[#allocation6 + $0x120] sm:$0xff]
    %v1619 = vld [vmem:[#allocation6 + $0x128] sm:$0xff]
    %v1620 = vld [vmem:[#allocation6 + $0x130] sm:$0xff]
    %v1621 = vld [vmem:[#allocation6 + $0x138] sm:$0xff]
    %v1622 = vld [vmem:[#allocation6 + $0x140] sm:$0xff]
    %v1623 = vld [vmem:[#allocation6 + $0x148] sm:$0xff]
    %v1624 = vld [vmem:[#allocation6 + $0x150] sm:$0xff]
    %v1625 = vld [vmem:[#allocation6 + $0x158] sm:$0xff]
    %v1626 = vld [vmem:[#allocation6 + $0x160] sm:$0xff]
    %v1627 = vld [vmem:[#allocation6 + $0x168] sm:$0xff]
    %v1628 = vld [vmem:[#allocation6 + $0x170] sm:$0xff]
    %v1629 = vld [vmem:[#allocation6 + $0x178] sm:$0xff]
    %v1630 = vld [vmem:[#allocation6 + $0x180] sm:$0xff]
    %v1631 = vld [vmem:[#allocation6 + $0x188] sm:$0xff]
    %v1632 = vld [vmem:[#allocation6 + $0x190] sm:$0xff]
    %v1633 = vld [vmem:[#allocation6 + $0x198] sm:$0xff]
    %v1634 = vld [vmem:[#allocation6 + $0x1a0] sm:$0xff]
    %v1635 = vld [vmem:[#allocation6 + $0x1a8] sm:$0xff]
    %v1636 = vld [vmem:[#allocation6 + $0x1b0] sm:$0xff]
    %v1637 = vld [vmem:[#allocation6 + $0x1b8] sm:$0xff]
    %v1638 = vld [vmem:[#allocation6 + $0x1c0] sm:$0xff]
    %v1639 = vld [vmem:[#allocation6 + $0x1c8] sm:$0xff]
    %v1640 = vld [vmem:[#allocation6 + $0x1d0] sm:$0xff]
    %v1641 = vld [vmem:[#allocation6 + $0x1d8] sm:$0xff]
    %v1642 = vld [vmem:[#allocation6 + $0x1e0] sm:$0xff]
    %v1643 = vld [vmem:[#allocation6 + $0x1e8] sm:$0xff]
    %v1644 = vld [vmem:[#allocation6 + $0x1f0] sm:$0xff]
    %v1645 = vld [vmem:[#allocation6 + $0x1f8] sm:$0xff]
    %v1646 = vld [vmem:[#allocation6 + $0x200] sm:$0xff]
    %v1647 = vld [vmem:[#allocation6 + $0x208] sm:$0xff]
    %v1648 = vld [vmem:[#allocation6 + $0x210] sm:$0xff]
    %v1649 = vld [vmem:[#allocation6 + $0x218] sm:$0xff]
    %v1650 = vld [vmem:[#allocation6 + $0x220] sm:$0xff]
    %v1651 = vld [vmem:[#allocation6 + $0x228] sm:$0xff]
    %v1652 = vld [vmem:[#allocation6 + $0x230] sm:$0xff]
    %v1653 = vld [vmem:[#allocation6 + $0x238] sm:$0xff]
    %v1654 = vld [vmem:[#allocation6 + $0x240] sm:$0xff]
    %v1655 = vld [vmem:[#allocation6 + $0x248] sm:$0xff]
    %v1656 = vld [vmem:[#allocation6 + $0x250] sm:$0xff]
    %v1657 = vld [vmem:[#allocation6 + $0x258] sm:$0xff]
    %v1658 = vld [vmem:[#allocation6 + $0x260] sm:$0xff]
    %v1659 = vld [vmem:[#allocation6 + $0x268] sm:$0xff]
    %v1660 = vld [vmem:[#allocation6 + $0x270] sm:$0xff]
    %v1661 = vld [vmem:[#allocation6 + $0x278] sm:$0xff]
    %v1662 = vld [vmem:[#allocation6 + $0x280] sm:$0xff]
    %v1663 = vld [vmem:[#allocation6 + $0x288] sm:$0xff]
    %v1664 = vld [vmem:[#allocation6 + $0x290] sm:$0xff]
    %v1665 = vld [vmem:[#allocation6 + $0x298] sm:$0xff]
    %v1666 = vld [vmem:[#allocation6 + $0x2a0] sm:$0xff]
    %v1667 = vld [vmem:[#allocation6 + $0x2a8] sm:$0xff]
    %v1668 = vld [vmem:[#allocation6 + $0x2b0] sm:$0xff]
    %v1669 = vld [vmem:[#allocation6 + $0x2b8] sm:$0xff]
    %v1670 = vld [vmem:[#allocation6 + $0x2c0] sm:$0xff]
    %v1671 = vld [vmem:[#allocation6 + $0x2c8] sm:$0xff]
    %v1672 = vld [vmem:[#allocation6 + $0x2d0] sm:$0xff]
    %v1673 = vld [vmem:[#allocation6 + $0x2d8] sm:$0xff]
    %v1674 = vld [vmem:[#allocation6 + $0x2e0] sm:$0xff]
    %v1675 = vld [vmem:[#allocation6 + $0x2e8] sm:$0xff]
    %v1676 = vld [vmem:[#allocation6 + $0x2f0] sm:$0xff]
    %v1677 = vld [vmem:[#allocation6 + $0x2f8] sm:$0xff]
    %v1678 = vld [vmem:[#allocation6 + $0x300] sm:$0xff]
    %v1679 = vld [vmem:[#allocation6 + $0x308] sm:$0xff]
    %v1680 = vld [vmem:[#allocation6 + $0x310] sm:$0xff]
    %v1681 = vld [vmem:[#allocation6 + $0x318] sm:$0xff]
    %v1682 = vld [vmem:[#allocation6 + $0x320] sm:$0xff]
    %v1683 = vld [vmem:[#allocation6 + $0x328] sm:$0xff]
    %v1684 = vld [vmem:[#allocation6 + $0x330] sm:$0xff]
    %v1685 = vld [vmem:[#allocation6 + $0x338] sm:$0xff]
    %v1686 = vld [vmem:[#allocation6 + $0x340] sm:$0xff]
    %v1687 = vld [vmem:[#allocation6 + $0x348] sm:$0xff]
    %v1688 = vld [vmem:[#allocation6 + $0x350] sm:$0xff]
    %v1689 = vld [vmem:[#allocation6 + $0x358] sm:$0xff]
    %v1690 = vld [vmem:[#allocation6 + $0x360] sm:$0xff]
    %v1691 = vld [vmem:[#allocation6 + $0x368] sm:$0xff]
    %v1692 = vld [vmem:[#allocation6 + $0x370] sm:$0xff]
    %v1693 = vld [vmem:[#allocation6 + $0x378] sm:$0xff]
    %v1694 = vld [vmem:[#allocation6 + $0x380] sm:$0xff]
    %v1695 = vld [vmem:[#allocation6 + $0x388] sm:$0xff]
    %v1696 = vld [vmem:[#allocation6 + $0x390] sm:$0xff]
    %v1697 = vld [vmem:[#allocation6 + $0x398] sm:$0xff]
    %v1698 = vld [vmem:[#allocation6 + $0x3a0] sm:$0xff]
    %v1699 = vld [vmem:[#allocation6 + $0x3a8] sm:$0xff]
    %v1700 = vld [vmem:[#allocation6 + $0x3b0] sm:$0xff]
    %v1701 = vld [vmem:[#allocation6 + $0x3b8] sm:$0xff]
    %v1702 = vld [vmem:[#allocation6 + $0x3c0] sm:$0xff]
    %v1703 = vld [vmem:[#allocation6 + $0x3c8] sm:$0xff]
    %v1704 = vld [vmem:[#allocation6 + $0x3d0] sm:$0xff]
    %v1705 = vld [vmem:[#allocation6 + $0x3d8] sm:$0xff]
    %v1706 = vld [vmem:[#allocation6 + $0x3e0] sm:$0xff]
    %v1707 = vld [vmem:[#allocation6 + $0x3e8] sm:$0xff]
    %v1708 = vld [vmem:[#allocation6 + $0x3f0] sm:$0xff]
    %v1709 = vld [vmem:[#allocation6 + $0x3f8] sm:$0xff]
    %v1710 = vld [vmem:[#allocation6 + $0x400] sm:$0xff]
    %v1711 = vld [vmem:[#allocation6 + $0x408] sm:$0xff]
    %v1712 = vld [vmem:[#allocation6 + $0x410] sm:$0xff]
    %v1713 = vld [vmem:[#allocation6 + $0x418] sm:$0xff]
    %v1714 = vld [vmem:[#allocation6 + $0x420] sm:$0xff]
    %v1715 = vld [vmem:[#allocation6 + $0x428] sm:$0xff]
    %v1716 = vld [vmem:[#allocation6 + $0x430] sm:$0xff]
    %v1717 = vld [vmem:[#allocation6 + $0x438] sm:$0xff]
    %v1718 = vld [vmem:[#allocation6 + $0x440] sm:$0xff]
    %v1719 = vld [vmem:[#allocation6 + $0x448] sm:$0xff]
    %v1720 = vld [vmem:[#allocation6 + $0x450] sm:$0xff]
    %v1721 = vld [vmem:[#allocation6 + $0x458] sm:$0xff]
    %v1722 = vld [vmem:[#allocation6 + $0x460] sm:$0xff]
    %v1723 = vld [vmem:[#allocation6 + $0x468] sm:$0xff]
    %v1724 = vld [vmem:[#allocation6 + $0x470] sm:$0xff]
    %v1725 = vld [vmem:[#allocation6 + $0x478] sm:$0xff]
    %v1726 = vld [vmem:[#allocation6 + $0x480] sm:$0xff]
    %v1727 = vld [vmem:[#allocation6 + $0x488] sm:$0xff]
    %v1728 = vld [vmem:[#allocation6 + $0x490] sm:$0xff]
    %v1729 = vld [vmem:[#allocation6 + $0x498] sm:$0xff]
    %v1730 = vld [vmem:[#allocation6 + $0x4a0] sm:$0xff]
    %v1731 = vld [vmem:[#allocation6 + $0x4a8] sm:$0xff]
    %v1732 = vld [vmem:[#allocation6 + $0x4b0] sm:$0xff]
    %v1733 = vld [vmem:[#allocation6 + $0x4b8] sm:$0xff]
    %v1734 = vld [vmem:[#allocation6 + $0x4c0] sm:$0xff]
    %v1735 = vld [vmem:[#allocation6 + $0x4c8] sm:$0xff]
    %v1736 = vld [vmem:[#allocation6 + $0x4d0] sm:$0xff]
    %v1737 = vld [vmem:[#allocation6 + $0x4d8] sm:$0xff]
    %v1738 = vld [vmem:[#allocation6 + $0x4e0] sm:$0xff]
    %v1739 = vld [vmem:[#allocation6 + $0x4e8] sm:$0xff]
    %v1740 = vld [vmem:[#allocation6 + $0x4f0] sm:$0xff]
    %v1741 = vld [vmem:[#allocation6 + $0x4f8] sm:$0xff]
    %v1742 = vld [vmem:[#allocation6 + $0x500] sm:$0xff]
    %v1743 = vld [vmem:[#allocation6 + $0x508] sm:$0xff]
    %v1744 = vld [vmem:[#allocation6 + $0x510] sm:$0xff]
    %v1745 = vld [vmem:[#allocation6 + $0x518] sm:$0xff]
    %v1746 = vld [vmem:[#allocation6 + $0x520] sm:$0xff]
    %v1747 = vld [vmem:[#allocation6 + $0x528] sm:$0xff]
    %v1748 = vld [vmem:[#allocation6 + $0x530] sm:$0xff]
    %v1749 = vld [vmem:[#allocation6 + $0x538] sm:$0xff]
    %v1750 = vld [vmem:[#allocation6 + $0x540] sm:$0xff]
    %v1751 = vld [vmem:[#allocation6 + $0x548] sm:$0xff]
    %v1752 = vld [vmem:[#allocation6 + $0x550] sm:$0xff]
    %v1753 = vld [vmem:[#allocation6 + $0x558] sm:$0xff]
    %v1754 = vld [vmem:[#allocation6 + $0x560] sm:$0xff]
    %v1755 = vld [vmem:[#allocation6 + $0x568] sm:$0xff]
    %v1756 = vld [vmem:[#allocation6 + $0x570] sm:$0xff]
    %v1757 = vld [vmem:[#allocation6 + $0x578] sm:$0xff]
    %v1758 = vld [vmem:[#allocation6 + $0x580] sm:$0xff]
    %v1759 = vld [vmem:[#allocation6 + $0x588] sm:$0xff]
    %v1760 = vld [vmem:[#allocation6 + $0x590] sm:$0xff]
    %v1761 = vld [vmem:[#allocation6 + $0x598] sm:$0xff]
    %v1762 = vld [vmem:[#allocation6 + $0x5a0] sm:$0xff]
    %v1763 = vld [vmem:[#allocation6 + $0x5a8] sm:$0xff]
    %v1764 = vld [vmem:[#allocation6 + $0x5b0] sm:$0xff]
    %v1765 = vld [vmem:[#allocation6 + $0x5b8] sm:$0xff]
    %v1766 = vld [vmem:[#allocation6 + $0x5c0] sm:$0xff]
    %v1767 = vld [vmem:[#allocation6 + $0x5c8] sm:$0xff]
    %v1768 = vld [vmem:[#allocation6 + $0x5d0] sm:$0xff]
    %v1769 = vld [vmem:[#allocation6 + $0x5d8] sm:$0xff]
    %v1770 = vld [vmem:[#allocation6 + $0x5e0] sm:$0xff]
    %v1771 = vld [vmem:[#allocation6 + $0x5e8] sm:$0xff]
    %v1772 = vld [vmem:[#allocation6 + $0x5f0] sm:$0xff]
    %v1773 = vld [vmem:[#allocation6 + $0x5f8] sm:$0xff]
    %1774 = vmatprep.subr.mxu0 %v1673
    %1775 = vmatpush1.msra.mxu0 %v1672
    %1776 = vmatprep.subr.mxu0 %v1667
    %1777 = vmatpush1.msra.mxu0 %v1666
    %1778 = vmatprep.subr.mxu0 %v1661
    %1779 = vmatpush1.msra.mxu0 %v1660
    %1780 = vmatprep.subr.mxu0 %v1655
    %1781 = vmatpush1.msra.mxu0 %v1654
    %1782 = vmatprep.subr.mxu0 %v1649
    %1783 = vmatpush1.msra.mxu0 %v1648
    %1784 = vmatprep.subr.mxu0 %v1643
    %1785 = vmatpush1.msra.mxu0 %v1642
    %1786 = vmatprep.subr.mxu0 %v1637
    %1787 = vmatpush1.msra.mxu0 %v1636
    %1788 = vmatprep.subr.mxu0 %v1631
    %1789 = vmatpush1.msra.mxu0 %v1630
    %1790 = vmatprep.subr.mxu0 %v1625
    %1791 = vmatpush1.msra.mxu0 %v1624
    %1792 = vmatprep.subr.mxu0 %v1619
    %1793 = vmatpush1.msra.mxu0 %v1618
    %1794 = vmatprep.subr.mxu0 %v1613
    %1795 = vmatpush1.msra.mxu0 %v1612
    %1796 = vmatprep.subr.mxu0 %v1607
    %1797 = vmatpush1.msra.mxu0 %v1606
    %1798 = vmatprep.subr.mxu0 %v1601
    %1799 = vmatpush1.msra.mxu0 %v1600
    %1800 = vmatprep.subr.mxu0 %v1595
    %1801 = vmatpush1.msra.mxu0 %v1594
    %1802 = vmatprep.subr.mxu0 %v1589
    %1803 = vmatpush1.msra.mxu0 %v1588
    %1804 = vmatprep.subr.mxu0 %v1583
    %1805 = vmatpush1.msra.mxu0 %v1582
    %1806 = vmatprep.subr.mxu0 %v1769
    %1807 = vmatpush2.msra.mxu0 %v1768
    %1808 = vmatprep.subr.mxu0 %v1763
    %1809 = vmatpush2.msra.mxu0 %v1762
    %1810 = vmatprep.subr.mxu0 %v1757
    %1811 = vmatpush2.msra.mxu0 %v1756
    %1812 = vmatprep.subr.mxu0 %v1751
    %1813 = vmatpush2.msra.mxu0 %v1750
    %1814 = vmatprep.subr.mxu0 %v1745
    %1815 = vmatpush2.msra.mxu0 %v1744
    %1816 = vmatprep.subr.mxu0 %v1739
    %1817 = vmatpush2.msra.mxu0 %v1738
    %1818 = vmatprep.subr.mxu0 %v1733
    %1819 = vmatpush2.msra.mxu0 %v1732
    %1820 = vmatprep.subr.mxu0 %v1727
    %1821 = vmatpush2.msra.mxu0 %v1726
    %1822 = vmatprep.subr.mxu0 %v1721
    %1823 = vmatpush2.msra.mxu0 %v1720
    %1824 = vmatprep.subr.mxu0 %v1715
    %1825 = vmatpush2.msra.mxu0 %v1714
    %1826 = vmatprep.subr.mxu0 %v1709
    %1827 = vmatpush2.msra.mxu0 %v1708
    %1828 = vmatprep.subr.mxu0 %v1703
    %1829 = vmatpush2.msra.mxu0 %v1702
    %1830 = vmatprep.subr.mxu0 %v1697
    %1831 = vmatpush2.msra.mxu0 %v1696
    %1832 = vmatprep.subr.mxu0 %v1691
    %1833 = vmatpush2.msra.mxu0 %v1690
    %1834 = vmatprep.subr.mxu0 %v1685
    %1835 = vmatpush2.msra.mxu0 %v1684
    %1836 = vmatprep.subr.mxu0 %v1679
    %1837 = vmatpush2.msra.mxu0 %v1678
    %1838 = vmatprep.mubr.f32.mxu0 %v1564
    %1839 = vmatmul.mubr.f32.gmra.mxu0 %v1563
    %v1840 = vpop.f32.mrf.mxu0
    %v1841 = vadd.f32 0.0, %v1840
    %v1842 = vpop.f32.mrf.mxu0
    %v1843 = vadd.f32 0.0, %v1842
    %1844 = vdwg.mxu0
    %1845 = vmatprep.subr.mxu0 %v1675
    %1846 = vmatpush1.msra.mxu0 %v1674
    %1847 = vmatprep.subr.mxu0 %v1669
    %1848 = vmatpush1.msra.mxu0 %v1668
    %1849 = vmatprep.subr.mxu0 %v1663
    %1850 = vmatpush1.msra.mxu0 %v1662
    %1851 = vmatprep.subr.mxu0 %v1657
    %1852 = vmatpush1.msra.mxu0 %v1656
    %1853 = vmatprep.subr.mxu0 %v1651
    %1854 = vmatpush1.msra.mxu0 %v1650
    %1855 = vmatprep.subr.mxu0 %v1645
    %1856 = vmatpush1.msra.mxu0 %v1644
    %1857 = vmatprep.subr.mxu0 %v1639
    %1858 = vmatpush1.msra.mxu0 %v1638
    %1859 = vmatprep.subr.mxu0 %v1633
    %1860 = vmatpush1.msra.mxu0 %v1632
    %1861 = vmatprep.subr.mxu0 %v1627
    %1862 = vmatpush1.msra.mxu0 %v1626
    %1863 = vmatprep.subr.mxu0 %v1621
    %1864 = vmatpush1.msra.mxu0 %v1620
    %1865 = vmatprep.subr.mxu0 %v1615
    %1866 = vmatpush1.msra.mxu0 %v1614
    %1867 = vmatprep.subr.mxu0 %v1609
    %1868 = vmatpush1.msra.mxu0 %v1608
    %1869 = vmatprep.subr.mxu0 %v1603
    %1870 = vmatpush1.msra.mxu0 %v1602
    %1871 = vmatprep.subr.mxu0 %v1597
    %1872 = vmatpush1.msra.mxu0 %v1596
    %1873 = vmatprep.subr.mxu0 %v1591
    %1874 = vmatpush1.msra.mxu0 %v1590
    %1875 = vmatprep.subr.mxu0 %v1585
    %1876 = vmatpush1.msra.mxu0 %v1584
    %1877 = vmatprep.subr.mxu0 %v1771
    %1878 = vmatpush2.msra.mxu0 %v1770
    %1879 = vmatprep.subr.mxu0 %v1765
    %1880 = vmatpush2.msra.mxu0 %v1764
    %1881 = vmatprep.subr.mxu0 %v1759
    %1882 = vmatpush2.msra.mxu0 %v1758
    %1883 = vmatprep.subr.mxu0 %v1753
    %1884 = vmatpush2.msra.mxu0 %v1752
    %1885 = vmatprep.subr.mxu0 %v1747
    %1886 = vmatpush2.msra.mxu0 %v1746
    %1887 = vmatprep.subr.mxu0 %v1741
    %1888 = vmatpush2.msra.mxu0 %v1740
    %1889 = vmatprep.subr.mxu0 %v1735
    %1890 = vmatpush2.msra.mxu0 %v1734
    %1891 = vmatprep.subr.mxu0 %v1729
    %1892 = vmatpush2.msra.mxu0 %v1728
    %1893 = vmatprep.subr.mxu0 %v1723
    %1894 = vmatpush2.msra.mxu0 %v1722
    %1895 = vmatprep.subr.mxu0 %v1717
    %1896 = vmatpush2.msra.mxu0 %v1716
    %1897 = vmatprep.subr.mxu0 %v1711
    %1898 = vmatpush2.msra.mxu0 %v1710
    %1899 = vmatprep.subr.mxu0 %v1705
    %1900 = vmatpush2.msra.mxu0 %v1704
    %1901 = vmatprep.subr.mxu0 %v1699
    %1902 = vmatpush2.msra.mxu0 %v1698
    %1903 = vmatprep.subr.mxu0 %v1693
    %1904 = vmatpush2.msra.mxu0 %v1692
    %1905 = vmatprep.subr.mxu0 %v1687
    %1906 = vmatpush2.msra.mxu0 %v1686
    %1907 = vmatprep.subr.mxu0 %v1681
    %1908 = vmatpush2.msra.mxu0 %v1680
    %1909 = vmatprep.mubr.f32.mxu0 %v1564
    %1910 = vmatmul.mubr.f32.gmra.mxu0 %v1563
    %v1911 = vpop.f32.mrf.mxu0
    %v1912 = vadd.f32 0.0, %v1911
    %v1913 = vpop.f32.mrf.mxu0
    %v1914 = vadd.f32 0.0, %v1913
    %1915 = vdwg.mxu0
    %1916 = vmatprep.subr.mxu0 %v1677
    %1917 = vmatpush1.msra.mxu0 %v1676
    %1918 = vmatprep.subr.mxu0 %v1671
    %1919 = vmatpush1.msra.mxu0 %v1670
    %1920 = vmatprep.subr.mxu0 %v1665
    %1921 = vmatpush1.msra.mxu0 %v1664
    %1922 = vmatprep.subr.mxu0 %v1659
    %1923 = vmatpush1.msra.mxu0 %v1658
    %1924 = vmatprep.subr.mxu0 %v1653
    %1925 = vmatpush1.msra.mxu0 %v1652
    %1926 = vmatprep.subr.mxu0 %v1647
    %1927 = vmatpush1.msra.mxu0 %v1646
    %1928 = vmatprep.subr.mxu0 %v1641
    %1929 = vmatpush1.msra.mxu0 %v1640
    %1930 = vmatprep.subr.mxu0 %v1635
    %1931 = vmatpush1.msra.mxu0 %v1634
    %1932 = vmatprep.subr.mxu0 %v1629
    %1933 = vmatpush1.msra.mxu0 %v1628
    %1934 = vmatprep.subr.mxu0 %v1623
    %1935 = vmatpush1.msra.mxu0 %v1622
    %1936 = vmatprep.subr.mxu0 %v1617
    %1937 = vmatpush1.msra.mxu0 %v1616
    %1938 = vmatprep.subr.mxu0 %v1611
    %1939 = vmatpush1.msra.mxu0 %v1610
    %1940 = vmatprep.subr.mxu0 %v1605
    %1941 = vmatpush1.msra.mxu0 %v1604
    %1942 = vmatprep.subr.mxu0 %v1599
    %1943 = vmatpush1.msra.mxu0 %v1598
    %1944 = vmatprep.subr.mxu0 %v1593
    %1945 = vmatpush1.msra.mxu0 %v1592
    %1946 = vmatprep.subr.mxu0 %v1587
    %1947 = vmatpush1.msra.mxu0 %v1586
    %1948 = vmatprep.subr.mxu0 %v1773
    %1949 = vmatpush2.msra.mxu0 %v1772
    %1950 = vmatprep.subr.mxu0 %v1767
    %1951 = vmatpush2.msra.mxu0 %v1766
    %1952 = vmatprep.subr.mxu0 %v1761
    %1953 = vmatpush2.msra.mxu0 %v1760
    %1954 = vmatprep.subr.mxu0 %v1755
    %1955 = vmatpush2.msra.mxu0 %v1754
    %1956 = vmatprep.subr.mxu0 %v1749
    %1957 = vmatpush2.msra.mxu0 %v1748
    %1958 = vmatprep.subr.mxu0 %v1743
    %1959 = vmatpush2.msra.mxu0 %v1742
    %1960 = vmatprep.subr.mxu0 %v1737
    %1961 = vmatpush2.msra.mxu0 %v1736
    %1962 = vmatprep.subr.mxu0 %v1731
    %1963 = vmatpush2.msra.mxu0 %v1730
    %1964 = vmatprep.subr.mxu0 %v1725
    %1965 = vmatpush2.msra.mxu0 %v1724
    %1966 = vmatprep.subr.mxu0 %v1719
    %1967 = vmatpush2.msra.mxu0 %v1718
    %1968 = vmatprep.subr.mxu0 %v1713
    %1969 = vmatpush2.msra.mxu0 %v1712
    %1970 = vmatprep.subr.mxu0 %v1707
    %1971 = vmatpush2.msra.mxu0 %v1706
    %1972 = vmatprep.subr.mxu0 %v1701
    %1973 = vmatpush2.msra.mxu0 %v1700
    %1974 = vmatprep.subr.mxu0 %v1695
    %1975 = vmatpush2.msra.mxu0 %v1694
    %1976 = vmatprep.subr.mxu0 %v1689
    %1977 = vmatpush2.msra.mxu0 %v1688
    %1978 = vmatprep.subr.mxu0 %v1683
    %1979 = vmatpush2.msra.mxu0 %v1682
    %1980 = vmatprep.mubr.f32.mxu0 %v1564
    %1981 = vmatmul.mubr.f32.gmra.mxu0 %v1563
    %v1982 = vpop.f32.mrf.mxu0
    %v1983 = vadd.f32 0.0, %v1982
    %v1984 = vpop.f32.mrf.mxu0
    %v1985 = vadd.f32 0.0, %v1984
    %1986 = vdwg.mxu0
    %v1987 = vadd.f32 %v1576, %v1841
    %v1988 = vadd.f32 %v1577, %v1843
    %v1989 = vmul.f32 %v1987, 0.5
    %v1990 = vmul.f32 %v1988, 0.5
    %v1991 = vtanh.pop %v1989
    %v1992 = vtanh.pop %v1990
    %v1993 = vadd.f32 %v1991, 1.0
    %v1994 = vadd.f32 %v1992, 1.0
    %v1995 = vmul.f32 %v1993, 0.5
    %v1996 = vmul.f32 %v1994, 0.5
    %v1997 = vadd.f32 %v1578, %v1912
    %v1998 = vadd.f32 %v1579, %v1914
    %v1999 = vmul.f32 %v1997, 0.5
    %v2000 = vmul.f32 %v1998, 0.5
    %v2001 = vtanh.pop %v1999
    %v2002 = vtanh.pop %v2000
    %v2003 = vadd.f32 %v2001, 1.0
    %v2004 = vadd.f32 %v2002, 1.0
    %v2005 = vmul.f32 %v2003, 0.5
    %v2006 = vmul.f32 %v2004, 0.5
    %v2007 = vadd.f32 %v1983, %v650
    %v2008 = vadd.f32 %v1985, %v654
    %v2009 = vmul.f32 %v1995, %v2007
    %v2010 = vmul.f32 %v1996, %v2008
    %v2011 = vadd.f32 %v1580, %v2009
    %v2012 = vadd.f32 %v1581, %v2010
    %v2013 = vtanh.pop %v2011
    %v2014 = vtanh.pop %v2012
    %v2015 = vsub.f32 1.0, %v2005
    %v2016 = vsub.f32 1.0, %v2006
    %v2017 = vmul.f32 %v2015, %v2013
    %v2018 = vmul.f32 %v2016, %v2014
    %v2019 = vmul.f32 %v2005, %v1563
    %v2020 = vmul.f32 %v2006, %v1564
    %v2021 = vadd.f32 %v2017, %v2019
    %v2022 = vadd.f32 %v2018, %v2020
    %s2023 = smul.u32 2, 2
    %s2024 = smul.addr %s2023, 8
    %s2025 = scalar_lea.vmem [#allocation9], %s2024
    %2026 = vst [vmem:[%s2025] sm:$0xff] %v2021
    %s2027 = smul.u32 5, 2
    %s2028 = smul.addr %s2027, 8
    %s2029 = scalar_lea.vmem [#allocation9], %s2028
    %2030 = vst [vmem:[%s2029 + $0x8] sm:$0xff] %v2022
    %s2031 = smul.u32 3, 6
    %s2032 = smul.addr %s2031, 8
    %s2033 = scalar_lea.vmem [#allocation2], %s2032
    %v2034 = vld [vmem:[%s2033] sm:$0xff]
    %v2035 = vld [vmem:[%s2033 + $0x8] sm:$0xff]
    %v2036 = vld [vmem:[%s2033 + $0x10] sm:$0xff]
    %v2037 = vld [vmem:[%s2033 + $0x18] sm:$0xff]
    %v2038 = vld [vmem:[%s2033 + $0x20] sm:$0xff]
    %v2039 = vld [vmem:[%s2033 + $0x28] sm:$0xff]
    %v2040 = vld [vmem:[#allocation6] sm:$0xff]
    %v2041 = vld [vmem:[#allocation6 + $0x8] sm:$0xff]
    %v2042 = vld [vmem:[#allocation6 + $0x10] sm:$0xff]
    %v2043 = vld [vmem:[#allocation6 + $0x18] sm:$0xff]
    %v2044 = vld [vmem:[#allocation6 + $0x20] sm:$0xff]
    %v2045 = vld [vmem:[#allocation6 + $0x28] sm:$0xff]
    %v2046 = vld [vmem:[#allocation6 + $0x30] sm:$0xff]
    %v2047 = vld [vmem:[#allocation6 + $0x38] sm:$0xff]
    %v2048 = vld [vmem:[#allocation6 + $0x40] sm:$0xff]
    %v2049 = vld [vmem:[#allocation6 + $0x48] sm:$0xff]
    %v2050 = vld [vmem:[#allocation6 + $0x50] sm:$0xff]
    %v2051 = vld [vmem:[#allocation6 + $0x58] sm:$0xff]
    %v2052 = vld [vmem:[#allocation6 + $0x60] sm:$0xff]
    %v2053 = vld [vmem:[#allocation6 + $0x68] sm:$0xff]
    %v2054 = vld [vmem:[#allocation6 + $0x70] sm:$0xff]
    %v2055 = vld [vmem:[#allocation6 + $0x78] sm:$0xff]
    %v2056 = vld [vmem:[#allocation6 + $0x80] sm:$0xff]
    %v2057 = vld [vmem:[#allocation6 + $0x88] sm:$0xff]
    %v2058 = vld [vmem:[#allocation6 + $0x90] sm:$0xff]
    %v2059 = vld [vmem:[#allocation6 + $0x98] sm:$0xff]
    %v2060 = vld [vmem:[#allocation6 + $0xa0] sm:$0xff]
    %v2061 = vld [vmem:[#allocation6 + $0xa8] sm:$0xff]
    %v2062 = vld [vmem:[#allocation6 + $0xb0] sm:$0xff]
    %v2063 = vld [vmem:[#allocation6 + $0xb8] sm:$0xff]
    %v2064 = vld [vmem:[#allocation6 + $0xc0] sm:$0xff]
    %v2065 = vld [vmem:[#allocation6 + $0xc8] sm:$0xff]
    %v2066 = vld [vmem:[#allocation6 + $0xd0] sm:$0xff]
    %v2067 = vld [vmem:[#allocation6 + $0xd8] sm:$0xff]
    %v2068 = vld [vmem:[#allocation6 + $0xe0] sm:$0xff]
    %v2069 = vld [vmem:[#allocation6 + $0xe8] sm:$0xff]
    %v2070 = vld [vmem:[#allocation6 + $0xf0] sm:$0xff]
    %v2071 = vld [vmem:[#allocation6 + $0xf8] sm:$0xff]
    %v2072 = vld [vmem:[#allocation6 + $0x100] sm:$0xff]
    %v2073 = vld [vmem:[#allocation6 + $0x108] sm:$0xff]
    %v2074 = vld [vmem:[#allocation6 + $0x110] sm:$0xff]
    %v2075 = vld [vmem:[#allocation6 + $0x118] sm:$0xff]
    %v2076 = vld [vmem:[#allocation6 + $0x120] sm:$0xff]
    %v2077 = vld [vmem:[#allocation6 + $0x128] sm:$0xff]
    %v2078 = vld [vmem:[#allocation6 + $0x130] sm:$0xff]
    %v2079 = vld [vmem:[#allocation6 + $0x138] sm:$0xff]
    %v2080 = vld [vmem:[#allocation6 + $0x140] sm:$0xff]
    %v2081 = vld [vmem:[#allocation6 + $0x148] sm:$0xff]
    %v2082 = vld [vmem:[#allocation6 + $0x150] sm:$0xff]
    %v2083 = vld [vmem:[#allocation6 + $0x158] sm:$0xff]
    %v2084 = vld [vmem:[#allocation6 + $0x160] sm:$0xff]
    %v2085 = vld [vmem:[#allocation6 + $0x168] sm:$0xff]
    %v2086 = vld [vmem:[#allocation6 + $0x170] sm:$0xff]
    %v2087 = vld [vmem:[#allocation6 + $0x178] sm:$0xff]
    %v2088 = vld [vmem:[#allocation6 + $0x180] sm:$0xff]
    %v2089 = vld [vmem:[#allocation6 + $0x188] sm:$0xff]
    %v2090 = vld [vmem:[#allocation6 + $0x190] sm:$0xff]
    %v2091 = vld [vmem:[#allocation6 + $0x198] sm:$0xff]
    %v2092 = vld [vmem:[#allocation6 + $0x1a0] sm:$0xff]
    %v2093 = vld [vmem:[#allocation6 + $0x1a8] sm:$0xff]
    %v2094 = vld [vmem:[#allocation6 + $0x1b0] sm:$0xff]
    %v2095 = vld [vmem:[#allocation6 + $0x1b8] sm:$0xff]
    %v2096 = vld [vmem:[#allocation6 + $0x1c0] sm:$0xff]
    %v2097 = vld [vmem:[#allocation6 + $0x1c8] sm:$0xff]
    %v2098 = vld [vmem:[#allocation6 + $0x1d0] sm:$0xff]
    %v2099 = vld [vmem:[#allocation6 + $0x1d8] sm:$0xff]
    %v2100 = vld [vmem:[#allocation6 + $0x1e0] sm:$0xff]
    %v2101 = vld [vmem:[#allocation6 + $0x1e8] sm:$0xff]
    %v2102 = vld [vmem:[#allocation6 + $0x1f0] sm:$0xff]
    %v2103 = vld [vmem:[#allocation6 + $0x1f8] sm:$0xff]
    %v2104 = vld [vmem:[#allocation6 + $0x200] sm:$0xff]
    %v2105 = vld [vmem:[#allocation6 + $0x208] sm:$0xff]
    %v2106 = vld [vmem:[#allocation6 + $0x210] sm:$0xff]
    %v2107 = vld [vmem:[#allocation6 + $0x218] sm:$0xff]
    %v2108 = vld [vmem:[#allocation6 + $0x220] sm:$0xff]
    %v2109 = vld [vmem:[#allocation6 + $0x228] sm:$0xff]
    %v2110 = vld [vmem:[#allocation6 + $0x230] sm:$0xff]
    %v2111 = vld [vmem:[#allocation6 + $0x238] sm:$0xff]
    %v2112 = vld [vmem:[#allocation6 + $0x240] sm:$0xff]
    %v2113 = vld [vmem:[#allocation6 + $0x248] sm:$0xff]
    %v2114 = vld [vmem:[#allocation6 + $0x250] sm:$0xff]
    %v2115 = vld [vmem:[#allocation6 + $0x258] sm:$0xff]
    %v2116 = vld [vmem:[#allocation6 + $0x260] sm:$0xff]
    %v2117 = vld [vmem:[#allocation6 + $0x268] sm:$0xff]
    %v2118 = vld [vmem:[#allocation6 + $0x270] sm:$0xff]
    %v2119 = vld [vmem:[#allocation6 + $0x278] sm:$0xff]
    %v2120 = vld [vmem:[#allocation6 + $0x280] sm:$0xff]
    %v2121 = vld [vmem:[#allocation6 + $0x288] sm:$0xff]
    %v2122 = vld [vmem:[#allocation6 + $0x290] sm:$0xff]
    %v2123 = vld [vmem:[#allocation6 + $0x298] sm:$0xff]
    %v2124 = vld [vmem:[#allocation6 + $0x2a0] sm:$0xff]
    %v2125 = vld [vmem:[#allocation6 + $0x2a8] sm:$0xff]
    %v2126 = vld [vmem:[#allocation6 + $0x2b0] sm:$0xff]
    %v2127 = vld [vmem:[#allocation6 + $0x2b8] sm:$0xff]
    %v2128 = vld [vmem:[#allocation6 + $0x2c0] sm:$0xff]
    %v2129 = vld [vmem:[#allocation6 + $0x2c8] sm:$0xff]
    %v2130 = vld [vmem:[#allocation6 + $0x2d0] sm:$0xff]
    %v2131 = vld [vmem:[#allocation6 + $0x2d8] sm:$0xff]
    %v2132 = vld [vmem:[#allocation6 + $0x2e0] sm:$0xff]
    %v2133 = vld [vmem:[#allocation6 + $0x2e8] sm:$0xff]
    %v2134 = vld [vmem:[#allocation6 + $0x2f0] sm:$0xff]
    %v2135 = vld [vmem:[#allocation6 + $0x2f8] sm:$0xff]
    %v2136 = vld [vmem:[#allocation6 + $0x300] sm:$0xff]
    %v2137 = vld [vmem:[#allocation6 + $0x308] sm:$0xff]
    %v2138 = vld [vmem:[#allocation6 + $0x310] sm:$0xff]
    %v2139 = vld [vmem:[#allocation6 + $0x318] sm:$0xff]
    %v2140 = vld [vmem:[#allocation6 + $0x320] sm:$0xff]
    %v2141 = vld [vmem:[#allocation6 + $0x328] sm:$0xff]
    %v2142 = vld [vmem:[#allocation6 + $0x330] sm:$0xff]
    %v2143 = vld [vmem:[#allocation6 + $0x338] sm:$0xff]
    %v2144 = vld [vmem:[#allocation6 + $0x340] sm:$0xff]
    %v2145 = vld [vmem:[#allocation6 + $0x348] sm:$0xff]
    %v2146 = vld [vmem:[#allocation6 + $0x350] sm:$0xff]
    %v2147 = vld [vmem:[#allocation6 + $0x358] sm:$0xff]
    %v2148 = vld [vmem:[#allocation6 + $0x360] sm:$0xff]
    %v2149 = vld [vmem:[#allocation6 + $0x368] sm:$0xff]
    %v2150 = vld [vmem:[#allocation6 + $0x370] sm:$0xff]
    %v2151 = vld [vmem:[#allocation6 + $0x378] sm:$0xff]
    %v2152 = vld [vmem:[#allocation6 + $0x380] sm:$0xff]
    %v2153 = vld [vmem:[#allocation6 + $0x388] sm:$0xff]
    %v2154 = vld [vmem:[#allocation6 + $0x390] sm:$0xff]
    %v2155 = vld [vmem:[#allocation6 + $0x398] sm:$0xff]
    %v2156 = vld [vmem:[#allocation6 + $0x3a0] sm:$0xff]
    %v2157 = vld [vmem:[#allocation6 + $0x3a8] sm:$0xff]
    %v2158 = vld [vmem:[#allocation6 + $0x3b0] sm:$0xff]
    %v2159 = vld [vmem:[#allocation6 + $0x3b8] sm:$0xff]
    %v2160 = vld [vmem:[#allocation6 + $0x3c0] sm:$0xff]
    %v2161 = vld [vmem:[#allocation6 + $0x3c8] sm:$0xff]
    %v2162 = vld [vmem:[#allocation6 + $0x3d0] sm:$0xff]
    %v2163 = vld [vmem:[#allocation6 + $0x3d8] sm:$0xff]
    %v2164 = vld [vmem:[#allocation6 + $0x3e0] sm:$0xff]
    %v2165 = vld [vmem:[#allocation6 + $0x3e8] sm:$0xff]
    %v2166 = vld [vmem:[#allocation6 + $0x3f0] sm:$0xff]
    %v2167 = vld [vmem:[#allocation6 + $0x3f8] sm:$0xff]
    %v2168 = vld [vmem:[#allocation6 + $0x400] sm:$0xff]
    %v2169 = vld [vmem:[#allocation6 + $0x408] sm:$0xff]
    %v2170 = vld [vmem:[#allocation6 + $0x410] sm:$0xff]
    %v2171 = vld [vmem:[#allocation6 + $0x418] sm:$0xff]
    %v2172 = vld [vmem:[#allocation6 + $0x420] sm:$0xff]
    %v2173 = vld [vmem:[#allocation6 + $0x428] sm:$0xff]
    %v2174 = vld [vmem:[#allocation6 + $0x430] sm:$0xff]
    %v2175 = vld [vmem:[#allocation6 + $0x438] sm:$0xff]
    %v2176 = vld [vmem:[#allocation6 + $0x440] sm:$0xff]
    %v2177 = vld [vmem:[#allocation6 + $0x448] sm:$0xff]
    %v2178 = vld [vmem:[#allocation6 + $0x450] sm:$0xff]
    %v2179 = vld [vmem:[#allocation6 + $0x458] sm:$0xff]
    %v2180 = vld [vmem:[#allocation6 + $0x460] sm:$0xff]
    %v2181 = vld [vmem:[#allocation6 + $0x468] sm:$0xff]
    %v2182 = vld [vmem:[#allocation6 + $0x470] sm:$0xff]
    %v2183 = vld [vmem:[#allocation6 + $0x478] sm:$0xff]
    %v2184 = vld [vmem:[#allocation6 + $0x480] sm:$0xff]
    %v2185 = vld [vmem:[#allocation6 + $0x488] sm:$0xff]
    %v2186 = vld [vmem:[#allocation6 + $0x490] sm:$0xff]
    %v2187 = vld [vmem:[#allocation6 + $0x498] sm:$0xff]
    %v2188 = vld [vmem:[#allocation6 + $0x4a0] sm:$0xff]
    %v2189 = vld [vmem:[#allocation6 + $0x4a8] sm:$0xff]
    %v2190 = vld [vmem:[#allocation6 + $0x4b0] sm:$0xff]
    %v2191 = vld [vmem:[#allocation6 + $0x4b8] sm:$0xff]
    %v2192 = vld [vmem:[#allocation6 + $0x4c0] sm:$0xff]
    %v2193 = vld [vmem:[#allocation6 + $0x4c8] sm:$0xff]
    %v2194 = vld [vmem:[#allocation6 + $0x4d0] sm:$0xff]
    %v2195 = vld [vmem:[#allocation6 + $0x4d8] sm:$0xff]
    %v2196 = vld [vmem:[#allocation6 + $0x4e0] sm:$0xff]
    %v2197 = vld [vmem:[#allocation6 + $0x4e8] sm:$0xff]
    %v2198 = vld [vmem:[#allocation6 + $0x4f0] sm:$0xff]
    %v2199 = vld [vmem:[#allocation6 + $0x4f8] sm:$0xff]
    %v2200 = vld [vmem:[#allocation6 + $0x500] sm:$0xff]
    %v2201 = vld [vmem:[#allocation6 + $0x508] sm:$0xff]
    %v2202 = vld [vmem:[#allocation6 + $0x510] sm:$0xff]
    %v2203 = vld [vmem:[#allocation6 + $0x518] sm:$0xff]
    %v2204 = vld [vmem:[#allocation6 + $0x520] sm:$0xff]
    %v2205 = vld [vmem:[#allocation6 + $0x528] sm:$0xff]
    %v2206 = vld [vmem:[#allocation6 + $0x530] sm:$0xff]
    %v2207 = vld [vmem:[#allocation6 + $0x538] sm:$0xff]
    %v2208 = vld [vmem:[#allocation6 + $0x540] sm:$0xff]
    %v2209 = vld [vmem:[#allocation6 + $0x548] sm:$0xff]
    %v2210 = vld [vmem:[#allocation6 + $0x550] sm:$0xff]
    %v2211 = vld [vmem:[#allocation6 + $0x558] sm:$0xff]
    %v2212 = vld [vmem:[#allocation6 + $0x560] sm:$0xff]
    %v2213 = vld [vmem:[#allocation6 + $0x568] sm:$0xff]
    %v2214 = vld [vmem:[#allocation6 + $0x570] sm:$0xff]
    %v2215 = vld [vmem:[#allocation6 + $0x578] sm:$0xff]
    %v2216 = vld [vmem:[#allocation6 + $0x580] sm:$0xff]
    %v2217 = vld [vmem:[#allocation6 + $0x588] sm:$0xff]
    %v2218 = vld [vmem:[#allocation6 + $0x590] sm:$0xff]
    %v2219 = vld [vmem:[#allocation6 + $0x598] sm:$0xff]
    %v2220 = vld [vmem:[#allocation6 + $0x5a0] sm:$0xff]
    %v2221 = vld [vmem:[#allocation6 + $0x5a8] sm:$0xff]
    %v2222 = vld [vmem:[#allocation6 + $0x5b0] sm:$0xff]
    %v2223 = vld [vmem:[#allocation6 + $0x5b8] sm:$0xff]
    %v2224 = vld [vmem:[#allocation6 + $0x5c0] sm:$0xff]
    %v2225 = vld [vmem:[#allocation6 + $0x5c8] sm:$0xff]
    %v2226 = vld [vmem:[#allocation6 + $0x5d0] sm:$0xff]
    %v2227 = vld [vmem:[#allocation6 + $0x5d8] sm:$0xff]
    %v2228 = vld [vmem:[#allocation6 + $0x5e0] sm:$0xff]
    %v2229 = vld [vmem:[#allocation6 + $0x5e8] sm:$0xff]
    %v2230 = vld [vmem:[#allocation6 + $0x5f0] sm:$0xff]
    %v2231 = vld [vmem:[#allocation6 + $0x5f8] sm:$0xff]
    %2232 = vmatprep.subr.mxu0 %v2131
    %2233 = vmatpush1.msra.mxu0 %v2130
    %2234 = vmatprep.subr.mxu0 %v2125
    %2235 = vmatpush1.msra.mxu0 %v2124
    %2236 = vmatprep.subr.mxu0 %v2119
    %2237 = vmatpush1.msra.mxu0 %v2118
    %2238 = vmatprep.subr.mxu0 %v2113
    %2239 = vmatpush1.msra.mxu0 %v2112
    %2240 = vmatprep.subr.mxu0 %v2107
    %2241 = vmatpush1.msra.mxu0 %v2106
    %2242 = vmatprep.subr.mxu0 %v2101
    %2243 = vmatpush1.msra.mxu0 %v2100
    %2244 = vmatprep.subr.mxu0 %v2095
    %2245 = vmatpush1.msra.mxu0 %v2094
    %2246 = vmatprep.subr.mxu0 %v2089
    %2247 = vmatpush1.msra.mxu0 %v2088
    %2248 = vmatprep.subr.mxu0 %v2083
    %2249 = vmatpush1.msra.mxu0 %v2082
    %2250 = vmatprep.subr.mxu0 %v2077
    %2251 = vmatpush1.msra.mxu0 %v2076
    %2252 = vmatprep.subr.mxu0 %v2071
    %2253 = vmatpush1.msra.mxu0 %v2070
    %2254 = vmatprep.subr.mxu0 %v2065
    %2255 = vmatpush1.msra.mxu0 %v2064
    %2256 = vmatprep.subr.mxu0 %v2059
    %2257 = vmatpush1.msra.mxu0 %v2058
    %2258 = vmatprep.subr.mxu0 %v2053
    %2259 = vmatpush1.msra.mxu0 %v2052
    %2260 = vmatprep.subr.mxu0 %v2047
    %2261 = vmatpush1.msra.mxu0 %v2046
    %2262 = vmatprep.subr.mxu0 %v2041
    %2263 = vmatpush1.msra.mxu0 %v2040
    %2264 = vmatprep.subr.mxu0 %v2227
    %2265 = vmatpush2.msra.mxu0 %v2226
    %2266 = vmatprep.subr.mxu0 %v2221
    %2267 = vmatpush2.msra.mxu0 %v2220
    %2268 = vmatprep.subr.mxu0 %v2215
    %2269 = vmatpush2.msra.mxu0 %v2214
    %2270 = vmatprep.subr.mxu0 %v2209
    %2271 = vmatpush2.msra.mxu0 %v2208
    %2272 = vmatprep.subr.mxu0 %v2203
    %2273 = vmatpush2.msra.mxu0 %v2202
    %2274 = vmatprep.subr.mxu0 %v2197
    %2275 = vmatpush2.msra.mxu0 %v2196
    %2276 = vmatprep.subr.mxu0 %v2191
    %2277 = vmatpush2.msra.mxu0 %v2190
    %2278 = vmatprep.subr.mxu0 %v2185
    %2279 = vmatpush2.msra.mxu0 %v2184
    %2280 = vmatprep.subr.mxu0 %v2179
    %2281 = vmatpush2.msra.mxu0 %v2178
    %2282 = vmatprep.subr.mxu0 %v2173
    %2283 = vmatpush2.msra.mxu0 %v2172
    %2284 = vmatprep.subr.mxu0 %v2167
    %2285 = vmatpush2.msra.mxu0 %v2166
    %2286 = vmatprep.subr.mxu0 %v2161
    %2287 = vmatpush2.msra.mxu0 %v2160
    %2288 = vmatprep.subr.mxu0 %v2155
    %2289 = vmatpush2.msra.mxu0 %v2154
    %2290 = vmatprep.subr.mxu0 %v2149
    %2291 = vmatpush2.msra.mxu0 %v2148
    %2292 = vmatprep.subr.mxu0 %v2143
    %2293 = vmatpush2.msra.mxu0 %v2142
    %2294 = vmatprep.subr.mxu0 %v2137
    %2295 = vmatpush2.msra.mxu0 %v2136
    %2296 = vmatprep.mubr.f32.mxu0 %v2022
    %2297 = vmatmul.mubr.f32.gmra.mxu0 %v2021
    %v2298 = vpop.f32.mrf.mxu0
    %v2299 = vadd.f32 0.0, %v2298
    %v2300 = vpop.f32.mrf.mxu0
    %v2301 = vadd.f32 0.0, %v2300
    %2302 = vdwg.mxu0
    %2303 = vmatprep.subr.mxu0 %v2133
    %2304 = vmatpush1.msra.mxu0 %v2132
    %2305 = vmatprep.subr.mxu0 %v2127
    %2306 = vmatpush1.msra.mxu0 %v2126
    %2307 = vmatprep.subr.mxu0 %v2121
    %2308 = vmatpush1.msra.mxu0 %v2120
    %2309 = vmatprep.subr.mxu0 %v2115
    %2310 = vmatpush1.msra.mxu0 %v2114
    %2311 = vmatprep.subr.mxu0 %v2109
    %2312 = vmatpush1.msra.mxu0 %v2108
    %2313 = vmatprep.subr.mxu0 %v2103
    %2314 = vmatpush1.msra.mxu0 %v2102
    %2315 = vmatprep.subr.mxu0 %v2097
    %2316 = vmatpush1.msra.mxu0 %v2096
    %2317 = vmatprep.subr.mxu0 %v2091
    %2318 = vmatpush1.msra.mxu0 %v2090
    %2319 = vmatprep.subr.mxu0 %v2085
    %2320 = vmatpush1.msra.mxu0 %v2084
    %2321 = vmatprep.subr.mxu0 %v2079
    %2322 = vmatpush1.msra.mxu0 %v2078
    %2323 = vmatprep.subr.mxu0 %v2073
    %2324 = vmatpush1.msra.mxu0 %v2072
    %2325 = vmatprep.subr.mxu0 %v2067
    %2326 = vmatpush1.msra.mxu0 %v2066
    %2327 = vmatprep.subr.mxu0 %v2061
    %2328 = vmatpush1.msra.mxu0 %v2060
    %2329 = vmatprep.subr.mxu0 %v2055
    %2330 = vmatpush1.msra.mxu0 %v2054
    %2331 = vmatprep.subr.mxu0 %v2049
    %2332 = vmatpush1.msra.mxu0 %v2048
    %2333 = vmatprep.subr.mxu0 %v2043
    %2334 = vmatpush1.msra.mxu0 %v2042
    %2335 = vmatprep.subr.mxu0 %v2229
    %2336 = vmatpush2.msra.mxu0 %v2228
    %2337 = vmatprep.subr.mxu0 %v2223
    %2338 = vmatpush2.msra.mxu0 %v2222
    %2339 = vmatprep.subr.mxu0 %v2217
    %2340 = vmatpush2.msra.mxu0 %v2216
    %2341 = vmatprep.subr.mxu0 %v2211
    %2342 = vmatpush2.msra.mxu0 %v2210
    %2343 = vmatprep.subr.mxu0 %v2205
    %2344 = vmatpush2.msra.mxu0 %v2204
    %2345 = vmatprep.subr.mxu0 %v2199
    %2346 = vmatpush2.msra.mxu0 %v2198
    %2347 = vmatprep.subr.mxu0 %v2193
    %2348 = vmatpush2.msra.mxu0 %v2192
    %2349 = vmatprep.subr.mxu0 %v2187
    %2350 = vmatpush2.msra.mxu0 %v2186
    %2351 = vmatprep.subr.mxu0 %v2181
    %2352 = vmatpush2.msra.mxu0 %v2180
    %2353 = vmatprep.subr.mxu0 %v2175
    %2354 = vmatpush2.msra.mxu0 %v2174
    %2355 = vmatprep.subr.mxu0 %v2169
    %2356 = vmatpush2.msra.mxu0 %v2168
    %2357 = vmatprep.subr.mxu0 %v2163
    %2358 = vmatpush2.msra.mxu0 %v2162
    %2359 = vmatprep.subr.mxu0 %v2157
    %2360 = vmatpush2.msra.mxu0 %v2156
    %2361 = vmatprep.subr.mxu0 %v2151
    %2362 = vmatpush2.msra.mxu0 %v2150
    %2363 = vmatprep.subr.mxu0 %v2145
    %2364 = vmatpush2.msra.mxu0 %v2144
    %2365 = vmatprep.subr.mxu0 %v2139
    %2366 = vmatpush2.msra.mxu0 %v2138
    %2367 = vmatprep.mubr.f32.mxu0 %v2022
    %2368 = vmatmul.mubr.f32.gmra.mxu0 %v2021
    %v2369 = vpop.f32.mrf.mxu0
    %v2370 = vadd.f32 0.0, %v2369
    %v2371 = vpop.f32.mrf.mxu0
    %v2372 = vadd.f32 0.0, %v2371
    %2373 = vdwg.mxu0
    %2374 = vmatprep.subr.mxu0 %v2135
    %2375 = vmatpush1.msra.mxu0 %v2134
    %2376 = vmatprep.subr.mxu0 %v2129
    %2377 = vmatpush1.msra.mxu0 %v2128
    %2378 = vmatprep.subr.mxu0 %v2123
    %2379 = vmatpush1.msra.mxu0 %v2122
    %2380 = vmatprep.subr.mxu0 %v2117
    %2381 = vmatpush1.msra.mxu0 %v2116
    %2382 = vmatprep.subr.mxu0 %v2111
    %2383 = vmatpush1.msra.mxu0 %v2110
    %2384 = vmatprep.subr.mxu0 %v2105
    %2385 = vmatpush1.msra.mxu0 %v2104
    %2386 = vmatprep.subr.mxu0 %v2099
    %2387 = vmatpush1.msra.mxu0 %v2098
    %2388 = vmatprep.subr.mxu0 %v2093
    %2389 = vmatpush1.msra.mxu0 %v2092
    %2390 = vmatprep.subr.mxu0 %v2087
    %2391 = vmatpush1.msra.mxu0 %v2086
    %2392 = vmatprep.subr.mxu0 %v2081
    %2393 = vmatpush1.msra.mxu0 %v2080
    %2394 = vmatprep.subr.mxu0 %v2075
    %2395 = vmatpush1.msra.mxu0 %v2074
    %2396 = vmatprep.subr.mxu0 %v2069
    %2397 = vmatpush1.msra.mxu0 %v2068
    %2398 = vmatprep.subr.mxu0 %v2063
    %2399 = vmatpush1.msra.mxu0 %v2062
    %2400 = vmatprep.subr.mxu0 %v2057
    %2401 = vmatpush1.msra.mxu0 %v2056
    %2402 = vmatprep.subr.mxu0 %v2051
    %2403 = vmatpush1.msra.mxu0 %v2050
    %2404 = vmatprep.subr.mxu0 %v2045
    %2405 = vmatpush1.msra.mxu0 %v2044
    %2406 = vmatprep.subr.mxu0 %v2231
    %2407 = vmatpush2.msra.mxu0 %v2230
    %2408 = vmatprep.subr.mxu0 %v2225
    %2409 = vmatpush2.msra.mxu0 %v2224
    %2410 = vmatprep.subr.mxu0 %v2219
    %2411 = vmatpush2.msra.mxu0 %v2218
    %2412 = vmatprep.subr.mxu0 %v2213
    %2413 = vmatpush2.msra.mxu0 %v2212
    %2414 = vmatprep.subr.mxu0 %v2207
    %2415 = vmatpush2.msra.mxu0 %v2206
    %2416 = vmatprep.subr.mxu0 %v2201
    %2417 = vmatpush2.msra.mxu0 %v2200
    %2418 = vmatprep.subr.mxu0 %v2195
    %2419 = vmatpush2.msra.mxu0 %v2194
    %2420 = vmatprep.subr.mxu0 %v2189
    %2421 = vmatpush2.msra.mxu0 %v2188
    %2422 = vmatprep.subr.mxu0 %v2183
    %2423 = vmatpush2.msra.mxu0 %v2182
    %2424 = vmatprep.subr.mxu0 %v2177
    %2425 = vmatpush2.msra.mxu0 %v2176
    %2426 = vmatprep.subr.mxu0 %v2171
    %2427 = vmatpush2.msra.mxu0 %v2170
    %2428 = vmatprep.subr.mxu0 %v2165
    %2429 = vmatpush2.msra.mxu0 %v2164
    %2430 = vmatprep.subr.mxu0 %v2159
    %2431 = vmatpush2.msra.mxu0 %v2158
    %2432 = vmatprep.subr.mxu0 %v2153
    %2433 = vmatpush2.msra.mxu0 %v2152
    %2434 = vmatprep.subr.mxu0 %v2147
    %2435 = vmatpush2.msra.mxu0 %v2146
    %2436 = vmatprep.subr.mxu0 %v2141
    %2437 = vmatpush2.msra.mxu0 %v2140
    %2438 = vmatprep.mubr.f32.mxu0 %v2022
    %2439 = vmatmul.mubr.f32.gmra.mxu0 %v2021
    %v2440 = vpop.f32.mrf.mxu0
    %v2441 = vadd.f32 0.0, %v2440
    %v2442 = vpop.f32.mrf.mxu0
    %v2443 = vadd.f32 0.0, %v2442
    %2444 = vdwg.mxu0
    %v2445 = vadd.f32 %v2034, %v2299
    %v2446 = vadd.f32 %v2035, %v2301
    %v2447 = vmul.f32 %v2445, 0.5
    %v2448 = vmul.f32 %v2446, 0.5
    %v2449 = vtanh.pop %v2447
    %v2450 = vtanh.pop %v2448
    %v2451 = vadd.f32 %v2449, 1.0
    %v2452 = vadd.f32 %v2450, 1.0
    %v2453 = vmul.f32 %v2451, 0.5
    %v2454 = vmul.f32 %v2452, 0.5
    %v2455 = vadd.f32 %v2036, %v2370
    %v2456 = vadd.f32 %v2037, %v2372
    %v2457 = vmul.f32 %v2455, 0.5
    %v2458 = vmul.f32 %v2456, 0.5
    %v2459 = vtanh.pop %v2457
    %v2460 = vtanh.pop %v2458
    %v2461 = vadd.f32 %v2459, 1.0
    %v2462 = vadd.f32 %v2460, 1.0
    %v2463 = vmul.f32 %v2461, 0.5
    %v2464 = vmul.f32 %v2462, 0.5
    %v2465 = vadd.f32 %v2441, %v650
    %v2466 = vadd.f32 %v2443, %v654
    %v2467 = vmul.f32 %v2453, %v2465
    %v2468 = vmul.f32 %v2454, %v2466
    %v2469 = vadd.f32 %v2038, %v2467
    %v2470 = vadd.f32 %v2039, %v2468
    %v2471 = vtanh.pop %v2469
    %v2472 = vtanh.pop %v2470
    %v2473 = vsub.f32 1.0, %v2463
    %v2474 = vsub.f32 1.0, %v2464
    %v2475 = vmul.f32 %v2473, %v2471
    %v2476 = vmul.f32 %v2474, %v2472
    %v2477 = vmul.f32 %v2463, %v2021
    %v2478 = vmul.f32 %v2464, %v2022
    %v2479 = vadd.f32 %v2475, %v2477
    %v2480 = vadd.f32 %v2476, %v2478
    %s2481 = smul.u32 3, 2
    %s2482 = smul.addr %s2481, 8
    %s2483 = scalar_lea.vmem [#allocation9], %s2482
    %2484 = vst [vmem:[%s2483] sm:$0xff] %v2479
    %s2485 = smul.u32 4, 2
    %s2486 = smul.addr %s2485, 8
    %s2487 = scalar_lea.vmem [#allocation9], %s2486
    %2488 = vst [vmem:[%s2487 + $0x8] sm:$0xff] %v2480
    %s2489 = smul.u32 4, 6
    %s2490 = smul.addr %s2489, 8
    %s2491 = scalar_lea.vmem [#allocation2], %s2490
    %v2492 = vld [vmem:[%s2491] sm:$0xff]
    %v2493 = vld [vmem:[%s2491 + $0x8] sm:$0xff]
    %v2494 = vld [vmem:[%s2491 + $0x10] sm:$0xff]
    %v2495 = vld [vmem:[%s2491 + $0x18] sm:$0xff]
    %v2496 = vld [vmem:[%s2491 + $0x20] sm:$0xff]
    %v2497 = vld [vmem:[%s2491 + $0x28] sm:$0xff]
    %v2498 = vld [vmem:[#allocation6] sm:$0xff]
    %v2499 = vld [vmem:[#allocation6 + $0x8] sm:$0xff]
    %v2500 = vld [vmem:[#allocation6 + $0x10] sm:$0xff]
    %v2501 = vld [vmem:[#allocation6 + $0x18] sm:$0xff]
    %v2502 = vld [vmem:[#allocation6 + $0x20] sm:$0xff]
    %v2503 = vld [vmem:[#allocation6 + $0x28] sm:$0xff]
    %v2504 = vld [vmem:[#allocation6 + $0x30] sm:$0xff]
    %v2505 = vld [vmem:[#allocation6 + $0x38] sm:$0xff]
    %v2506 = vld [vmem:[#allocation6 + $0x40] sm:$0xff]
    %v2507 = vld [vmem:[#allocation6 + $0x48] sm:$0xff]
    %v2508 = vld [vmem:[#allocation6 + $0x50] sm:$0xff]
    %v2509 = vld [vmem:[#allocation6 + $0x58] sm:$0xff]
    %v2510 = vld [vmem:[#allocation6 + $0x60] sm:$0xff]
    %v2511 = vld [vmem:[#allocation6 + $0x68] sm:$0xff]
    %v2512 = vld [vmem:[#allocation6 + $0x70] sm:$0xff]
    %v2513 = vld [vmem:[#allocation6 + $0x78] sm:$0xff]
    %v2514 = vld [vmem:[#allocation6 + $0x80] sm:$0xff]
    %v2515 = vld [vmem:[#allocation6 + $0x88] sm:$0xff]
    %v2516 = vld [vmem:[#allocation6 + $0x90] sm:$0xff]
    %v2517 = vld [vmem:[#allocation6 + $0x98] sm:$0xff]
    %v2518 = vld [vmem:[#allocation6 + $0xa0] sm:$0xff]
    %v2519 = vld [vmem:[#allocation6 + $0xa8] sm:$0xff]
    %v2520 = vld [vmem:[#allocation6 + $0xb0] sm:$0xff]
    %v2521 = vld [vmem:[#allocation6 + $0xb8] sm:$0xff]
    %v2522 = vld [vmem:[#allocation6 + $0xc0] sm:$0xff]
    %v2523 = vld [vmem:[#allocation6 + $0xc8] sm:$0xff]
    %v2524 = vld [vmem:[#allocation6 + $0xd0] sm:$0xff]
    %v2525 = vld [vmem:[#allocation6 + $0xd8] sm:$0xff]
    %v2526 = vld [vmem:[#allocation6 + $0xe0] sm:$0xff]
    %v2527 = vld [vmem:[#allocation6 + $0xe8] sm:$0xff]
    %v2528 = vld [vmem:[#allocation6 + $0xf0] sm:$0xff]
    %v2529 = vld [vmem:[#allocation6 + $0xf8] sm:$0xff]
    %v2530 = vld [vmem:[#allocation6 + $0x100] sm:$0xff]
    %v2531 = vld [vmem:[#allocation6 + $0x108] sm:$0xff]
    %v2532 = vld [vmem:[#allocation6 + $0x110] sm:$0xff]
    %v2533 = vld [vmem:[#allocation6 + $0x118] sm:$0xff]
    %v2534 = vld [vmem:[#allocation6 + $0x120] sm:$0xff]
    %v2535 = vld [vmem:[#allocation6 + $0x128] sm:$0xff]
    %v2536 = vld [vmem:[#allocation6 + $0x130] sm:$0xff]
    %v2537 = vld [vmem:[#allocation6 + $0x138] sm:$0xff]
    %v2538 = vld [vmem:[#allocation6 + $0x140] sm:$0xff]
    %v2539 = vld [vmem:[#allocation6 + $0x148] sm:$0xff]
    %v2540 = vld [vmem:[#allocation6 + $0x150] sm:$0xff]
    %v2541 = vld [vmem:[#allocation6 + $0x158] sm:$0xff]
    %v2542 = vld [vmem:[#allocation6 + $0x160] sm:$0xff]
    %v2543 = vld [vmem:[#allocation6 + $0x168] sm:$0xff]
    %v2544 = vld [vmem:[#allocation6 + $0x170] sm:$0xff]
    %v2545 = vld [vmem:[#allocation6 + $0x178] sm:$0xff]
    %v2546 = vld [vmem:[#allocation6 + $0x180] sm:$0xff]
    %v2547 = vld [vmem:[#allocation6 + $0x188] sm:$0xff]
    %v2548 = vld [vmem:[#allocation6 + $0x190] sm:$0xff]
    %v2549 = vld [vmem:[#allocation6 + $0x198] sm:$0xff]
    %v2550 = vld [vmem:[#allocation6 + $0x1a0] sm:$0xff]
    %v2551 = vld [vmem:[#allocation6 + $0x1a8] sm:$0xff]
    %v2552 = vld [vmem:[#allocation6 + $0x1b0] sm:$0xff]
    %v2553 = vld [vmem:[#allocation6 + $0x1b8] sm:$0xff]
    %v2554 = vld [vmem:[#allocation6 + $0x1c0] sm:$0xff]
    %v2555 = vld [vmem:[#allocation6 + $0x1c8] sm:$0xff]
    %v2556 = vld [vmem:[#allocation6 + $0x1d0] sm:$0xff]
    %v2557 = vld [vmem:[#allocation6 + $0x1d8] sm:$0xff]
    %v2558 = vld [vmem:[#allocation6 + $0x1e0] sm:$0xff]
    %v2559 = vld [vmem:[#allocation6 + $0x1e8] sm:$0xff]
    %v2560 = vld [vmem:[#allocation6 + $0x1f0] sm:$0xff]
    %v2561 = vld [vmem:[#allocation6 + $0x1f8] sm:$0xff]
    %v2562 = vld [vmem:[#allocation6 + $0x200] sm:$0xff]
    %v2563 = vld [vmem:[#allocation6 + $0x208] sm:$0xff]
    %v2564 = vld [vmem:[#allocation6 + $0x210] sm:$0xff]
    %v2565 = vld [vmem:[#allocation6 + $0x218] sm:$0xff]
    %v2566 = vld [vmem:[#allocation6 + $0x220] sm:$0xff]
    %v2567 = vld [vmem:[#allocation6 + $0x228] sm:$0xff]
    %v2568 = vld [vmem:[#allocation6 + $0x230] sm:$0xff]
    %v2569 = vld [vmem:[#allocation6 + $0x238] sm:$0xff]
    %v2570 = vld [vmem:[#allocation6 + $0x240] sm:$0xff]
    %v2571 = vld [vmem:[#allocation6 + $0x248] sm:$0xff]
    %v2572 = vld [vmem:[#allocation6 + $0x250] sm:$0xff]
    %v2573 = vld [vmem:[#allocation6 + $0x258] sm:$0xff]
    %v2574 = vld [vmem:[#allocation6 + $0x260] sm:$0xff]
    %v2575 = vld [vmem:[#allocation6 + $0x268] sm:$0xff]
    %v2576 = vld [vmem:[#allocation6 + $0x270] sm:$0xff]
    %v2577 = vld [vmem:[#allocation6 + $0x278] sm:$0xff]
    %v2578 = vld [vmem:[#allocation6 + $0x280] sm:$0xff]
    %v2579 = vld [vmem:[#allocation6 + $0x288] sm:$0xff]
    %v2580 = vld [vmem:[#allocation6 + $0x290] sm:$0xff]
    %v2581 = vld [vmem:[#allocation6 + $0x298] sm:$0xff]
    %v2582 = vld [vmem:[#allocation6 + $0x2a0] sm:$0xff]
    %v2583 = vld [vmem:[#allocation6 + $0x2a8] sm:$0xff]
    %v2584 = vld [vmem:[#allocation6 + $0x2b0] sm:$0xff]
    %v2585 = vld [vmem:[#allocation6 + $0x2b8] sm:$0xff]
    %v2586 = vld [vmem:[#allocation6 + $0x2c0] sm:$0xff]
    %v2587 = vld [vmem:[#allocation6 + $0x2c8] sm:$0xff]
    %v2588 = vld [vmem:[#allocation6 + $0x2d0] sm:$0xff]
    %v2589 = vld [vmem:[#allocation6 + $0x2d8] sm:$0xff]
    %v2590 = vld [vmem:[#allocation6 + $0x2e0] sm:$0xff]
    %v2591 = vld [vmem:[#allocation6 + $0x2e8] sm:$0xff]
    %v2592 = vld [vmem:[#allocation6 + $0x2f0] sm:$0xff]
    %v2593 = vld [vmem:[#allocation6 + $0x2f8] sm:$0xff]
    %v2594 = vld [vmem:[#allocation6 + $0x300] sm:$0xff]
    %v2595 = vld [vmem:[#allocation6 + $0x308] sm:$0xff]
    %v2596 = vld [vmem:[#allocation6 + $0x310] sm:$0xff]
    %v2597 = vld [vmem:[#allocation6 + $0x318] sm:$0xff]
    %v2598 = vld [vmem:[#allocation6 + $0x320] sm:$0xff]
    %v2599 = vld [vmem:[#allocation6 + $0x328] sm:$0xff]
    %v2600 = vld [vmem:[#allocation6 + $0x330] sm:$0xff]
    %v2601 = vld [vmem:[#allocation6 + $0x338] sm:$0xff]
    %v2602 = vld [vmem:[#allocation6 + $0x340] sm:$0xff]
    %v2603 = vld [vmem:[#allocation6 + $0x348] sm:$0xff]
    %v2604 = vld [vmem:[#allocation6 + $0x350] sm:$0xff]
    %v2605 = vld [vmem:[#allocation6 + $0x358] sm:$0xff]
    %v2606 = vld [vmem:[#allocation6 + $0x360] sm:$0xff]
    %v2607 = vld [vmem:[#allocation6 + $0x368] sm:$0xff]
    %v2608 = vld [vmem:[#allocation6 + $0x370] sm:$0xff]
    %v2609 = vld [vmem:[#allocation6 + $0x378] sm:$0xff]
    %v2610 = vld [vmem:[#allocation6 + $0x380] sm:$0xff]
    %v2611 = vld [vmem:[#allocation6 + $0x388] sm:$0xff]
    %v2612 = vld [vmem:[#allocation6 + $0x390] sm:$0xff]
    %v2613 = vld [vmem:[#allocation6 + $0x398] sm:$0xff]
    %v2614 = vld [vmem:[#allocation6 + $0x3a0] sm:$0xff]
    %v2615 = vld [vmem:[#allocation6 + $0x3a8] sm:$0xff]
    %v2616 = vld [vmem:[#allocation6 + $0x3b0] sm:$0xff]
    %v2617 = vld [vmem:[#allocation6 + $0x3b8] sm:$0xff]
    %v2618 = vld [vmem:[#allocation6 + $0x3c0] sm:$0xff]
    %v2619 = vld [vmem:[#allocation6 + $0x3c8] sm:$0xff]
    %v2620 = vld [vmem:[#allocation6 + $0x3d0] sm:$0xff]
    %v2621 = vld [vmem:[#allocation6 + $0x3d8] sm:$0xff]
    %v2622 = vld [vmem:[#allocation6 + $0x3e0] sm:$0xff]
    %v2623 = vld [vmem:[#allocation6 + $0x3e8] sm:$0xff]
    %v2624 = vld [vmem:[#allocation6 + $0x3f0] sm:$0xff]
    %v2625 = vld [vmem:[#allocation6 + $0x3f8] sm:$0xff]
    %v2626 = vld [vmem:[#allocation6 + $0x400] sm:$0xff]
    %v2627 = vld [vmem:[#allocation6 + $0x408] sm:$0xff]
    %v2628 = vld [vmem:[#allocation6 + $0x410] sm:$0xff]
    %v2629 = vld [vmem:[#allocation6 + $0x418] sm:$0xff]
    %v2630 = vld [vmem:[#allocation6 + $0x420] sm:$0xff]
    %v2631 = vld [vmem:[#allocation6 + $0x428] sm:$0xff]
    %v2632 = vld [vmem:[#allocation6 + $0x430] sm:$0xff]
    %v2633 = vld [vmem:[#allocation6 + $0x438] sm:$0xff]
    %v2634 = vld [vmem:[#allocation6 + $0x440] sm:$0xff]
    %v2635 = vld [vmem:[#allocation6 + $0x448] sm:$0xff]
    %v2636 = vld [vmem:[#allocation6 + $0x450] sm:$0xff]
    %v2637 = vld [vmem:[#allocation6 + $0x458] sm:$0xff]
    %v2638 = vld [vmem:[#allocation6 + $0x460] sm:$0xff]
    %v2639 = vld [vmem:[#allocation6 + $0x468] sm:$0xff]
    %v2640 = vld [vmem:[#allocation6 + $0x470] sm:$0xff]
    %v2641 = vld [vmem:[#allocation6 + $0x478] sm:$0xff]
    %v2642 = vld [vmem:[#allocation6 + $0x480] sm:$0xff]
    %v2643 = vld [vmem:[#allocation6 + $0x488] sm:$0xff]
    %v2644 = vld [vmem:[#allocation6 + $0x490] sm:$0xff]
    %v2645 = vld [vmem:[#allocation6 + $0x498] sm:$0xff]
    %v2646 = vld [vmem:[#allocation6 + $0x4a0] sm:$0xff]
    %v2647 = vld [vmem:[#allocation6 + $0x4a8] sm:$0xff]
    %v2648 = vld [vmem:[#allocation6 + $0x4b0] sm:$0xff]
    %v2649 = vld [vmem:[#allocation6 + $0x4b8] sm:$0xff]
    %v2650 = vld [vmem:[#allocation6 + $0x4c0] sm:$0xff]
    %v2651 = vld [vmem:[#allocation6 + $0x4c8] sm:$0xff]
    %v2652 = vld [vmem:[#allocation6 + $0x4d0] sm:$0xff]
    %v2653 = vld [vmem:[#allocation6 + $0x4d8] sm:$0xff]
    %v2654 = vld [vmem:[#allocation6 + $0x4e0] sm:$0xff]
    %v2655 = vld [vmem:[#allocation6 + $0x4e8] sm:$0xff]
    %v2656 = vld [vmem:[#allocation6 + $0x4f0] sm:$0xff]
    %v2657 = vld [vmem:[#allocation6 + $0x4f8] sm:$0xff]
    %v2658 = vld [vmem:[#allocation6 + $0x500] sm:$0xff]
    %v2659 = vld [vmem:[#allocation6 + $0x508] sm:$0xff]
    %v2660 = vld [vmem:[#allocation6 + $0x510] sm:$0xff]
    %v2661 = vld [vmem:[#allocation6 + $0x518] sm:$0xff]
    %v2662 = vld [vmem:[#allocation6 + $0x520] sm:$0xff]
    %v2663 = vld [vmem:[#allocation6 + $0x528] sm:$0xff]
    %v2664 = vld [vmem:[#allocation6 + $0x530] sm:$0xff]
    %v2665 = vld [vmem:[#allocation6 + $0x538] sm:$0xff]
    %v2666 = vld [vmem:[#allocation6 + $0x540] sm:$0xff]
    %v2667 = vld [vmem:[#allocation6 + $0x548] sm:$0xff]
    %v2668 = vld [vmem:[#allocation6 + $0x550] sm:$0xff]
    %v2669 = vld [vmem:[#allocation6 + $0x558] sm:$0xff]
    %v2670 = vld [vmem:[#allocation6 + $0x560] sm:$0xff]
    %v2671 = vld [vmem:[#allocation6 + $0x568] sm:$0xff]
    %v2672 = vld [vmem:[#allocation6 + $0x570] sm:$0xff]
    %v2673 = vld [vmem:[#allocation6 + $0x578] sm:$0xff]
    %v2674 = vld [vmem:[#allocation6 + $0x580] sm:$0xff]
    %v2675 = vld [vmem:[#allocation6 + $0x588] sm:$0xff]
    %v2676 = vld [vmem:[#allocation6 + $0x590] sm:$0xff]
    %v2677 = vld [vmem:[#allocation6 + $0x598] sm:$0xff]
    %v2678 = vld [vmem:[#allocation6 + $0x5a0] sm:$0xff]
    %v2679 = vld [vmem:[#allocation6 + $0x5a8] sm:$0xff]
    %v2680 = vld [vmem:[#allocation6 + $0x5b0] sm:$0xff]
    %v2681 = vld [vmem:[#allocation6 + $0x5b8] sm:$0xff]
    %v2682 = vld [vmem:[#allocation6 + $0x5c0] sm:$0xff]
    %v2683 = vld [vmem:[#allocation6 + $0x5c8] sm:$0xff]
    %v2684 = vld [vmem:[#allocation6 + $0x5d0] sm:$0xff]
    %v2685 = vld [vmem:[#allocation6 + $0x5d8] sm:$0xff]
    %v2686 = vld [vmem:[#allocation6 + $0x5e0] sm:$0xff]
    %v2687 = vld [vmem:[#allocation6 + $0x5e8] sm:$0xff]
    %v2688 = vld [vmem:[#allocation6 + $0x5f0] sm:$0xff]
    %v2689 = vld [vmem:[#allocation6 + $0x5f8] sm:$0xff]
    %2690 = vmatprep.subr.mxu0 %v2589
    %2691 = vmatpush1.msra.mxu0 %v2588
    %2692 = vmatprep.subr.mxu0 %v2583
    %2693 = vmatpush1.msra.mxu0 %v2582
    %2694 = vmatprep.subr.mxu0 %v2577
    %2695 = vmatpush1.msra.mxu0 %v2576
    %2696 = vmatprep.subr.mxu0 %v2571
    %2697 = vmatpush1.msra.mxu0 %v2570
    %2698 = vmatprep.subr.mxu0 %v2565
    %2699 = vmatpush1.msra.mxu0 %v2564
    %2700 = vmatprep.subr.mxu0 %v2559
    %2701 = vmatpush1.msra.mxu0 %v2558
    %2702 = vmatprep.subr.mxu0 %v2553
    %2703 = vmatpush1.msra.mxu0 %v2552
    %2704 = vmatprep.subr.mxu0 %v2547
    %2705 = vmatpush1.msra.mxu0 %v2546
    %2706 = vmatprep.subr.mxu0 %v2541
    %2707 = vmatpush1.msra.mxu0 %v2540
    %2708 = vmatprep.subr.mxu0 %v2535
    %2709 = vmatpush1.msra.mxu0 %v2534
    %2710 = vmatprep.subr.mxu0 %v2529
    %2711 = vmatpush1.msra.mxu0 %v2528
    %2712 = vmatprep.subr.mxu0 %v2523
    %2713 = vmatpush1.msra.mxu0 %v2522
    %2714 = vmatprep.subr.mxu0 %v2517
    %2715 = vmatpush1.msra.mxu0 %v2516
    %2716 = vmatprep.subr.mxu0 %v2511
    %2717 = vmatpush1.msra.mxu0 %v2510
    %2718 = vmatprep.subr.mxu0 %v2505
    %2719 = vmatpush1.msra.mxu0 %v2504
    %2720 = vmatprep.subr.mxu0 %v2499
    %2721 = vmatpush1.msra.mxu0 %v2498
    %2722 = vmatprep.subr.mxu0 %v2685
    %2723 = vmatpush2.msra.mxu0 %v2684
    %2724 = vmatprep.subr.mxu0 %v2679
    %2725 = vmatpush2.msra.mxu0 %v2678
    %2726 = vmatprep.subr.mxu0 %v2673
    %2727 = vmatpush2.msra.mxu0 %v2672
    %2728 = vmatprep.subr.mxu0 %v2667
    %2729 = vmatpush2.msra.mxu0 %v2666
    %2730 = vmatprep.subr.mxu0 %v2661
    %2731 = vmatpush2.msra.mxu0 %v2660
    %2732 = vmatprep.subr.mxu0 %v2655
    %2733 = vmatpush2.msra.mxu0 %v2654
    %2734 = vmatprep.subr.mxu0 %v2649
    %2735 = vmatpush2.msra.mxu0 %v2648
    %2736 = vmatprep.subr.mxu0 %v2643
    %2737 = vmatpush2.msra.mxu0 %v2642
    %2738 = vmatprep.subr.mxu0 %v2637
    %2739 = vmatpush2.msra.mxu0 %v2636
    %2740 = vmatprep.subr.mxu0 %v2631
    %2741 = vmatpush2.msra.mxu0 %v2630
    %2742 = vmatprep.subr.mxu0 %v2625
    %2743 = vmatpush2.msra.mxu0 %v2624
    %2744 = vmatprep.subr.mxu0 %v2619
    %2745 = vmatpush2.msra.mxu0 %v2618
    %2746 = vmatprep.subr.mxu0 %v2613
    %2747 = vmatpush2.msra.mxu0 %v2612
    %2748 = vmatprep.subr.mxu0 %v2607
    %2749 = vmatpush2.msra.mxu0 %v2606
    %2750 = vmatprep.subr.mxu0 %v2601
    %2751 = vmatpush2.msra.mxu0 %v2600
    %2752 = vmatprep.subr.mxu0 %v2595
    %2753 = vmatpush2.msra.mxu0 %v2594
    %2754 = vmatprep.mubr.f32.mxu0 %v2480
    %2755 = vmatmul.mubr.f32.gmra.mxu0 %v2479
    %v2756 = vpop.f32.mrf.mxu0
    %v2757 = vadd.f32 0.0, %v2756
    %v2758 = vpop.f32.mrf.mxu0
    %v2759 = vadd.f32 0.0, %v2758
    %2760 = vdwg.mxu0
    %2761 = vmatprep.subr.mxu0 %v2591
    %2762 = vmatpush1.msra.mxu0 %v2590
    %2763 = vmatprep.subr.mxu0 %v2585
    %2764 = vmatpush1.msra.mxu0 %v2584
    %2765 = vmatprep.subr.mxu0 %v2579
    %2766 = vmatpush1.msra.mxu0 %v2578
    %2767 = vmatprep.subr.mxu0 %v2573
    %2768 = vmatpush1.msra.mxu0 %v2572
    %2769 = vmatprep.subr.mxu0 %v2567
    %2770 = vmatpush1.msra.mxu0 %v2566
    %2771 = vmatprep.subr.mxu0 %v2561
    %2772 = vmatpush1.msra.mxu0 %v2560
    %2773 = vmatprep.subr.mxu0 %v2555
    %2774 = vmatpush1.msra.mxu0 %v2554
    %2775 = vmatprep.subr.mxu0 %v2549
    %2776 = vmatpush1.msra.mxu0 %v2548
    %2777 = vmatprep.subr.mxu0 %v2543
    %2778 = vmatpush1.msra.mxu0 %v2542
    %2779 = vmatprep.subr.mxu0 %v2537
    %2780 = vmatpush1.msra.mxu0 %v2536
    %2781 = vmatprep.subr.mxu0 %v2531
    %2782 = vmatpush1.msra.mxu0 %v2530
    %2783 = vmatprep.subr.mxu0 %v2525
    %2784 = vmatpush1.msra.mxu0 %v2524
    %2785 = vmatprep.subr.mxu0 %v2519
    %2786 = vmatpush1.msra.mxu0 %v2518
    %2787 = vmatprep.subr.mxu0 %v2513
    %2788 = vmatpush1.msra.mxu0 %v2512
    %2789 = vmatprep.subr.mxu0 %v2507
    %2790 = vmatpush1.msra.mxu0 %v2506
    %2791 = vmatprep.subr.mxu0 %v2501
    %2792 = vmatpush1.msra.mxu0 %v2500
    %2793 = vmatprep.subr.mxu0 %v2687
    %2794 = vmatpush2.msra.mxu0 %v2686
    %2795 = vmatprep.subr.mxu0 %v2681
    %2796 = vmatpush2.msra.mxu0 %v2680
    %2797 = vmatprep.subr.mxu0 %v2675
    %2798 = vmatpush2.msra.mxu0 %v2674
    %2799 = vmatprep.subr.mxu0 %v2669
    %2800 = vmatpush2.msra.mxu0 %v2668
    %2801 = vmatprep.subr.mxu0 %v2663
    %2802 = vmatpush2.msra.mxu0 %v2662
    %2803 = vmatprep.subr.mxu0 %v2657
    %2804 = vmatpush2.msra.mxu0 %v2656
    %2805 = vmatprep.subr.mxu0 %v2651
    %2806 = vmatpush2.msra.mxu0 %v2650
    %2807 = vmatprep.subr.mxu0 %v2645
    %2808 = vmatpush2.msra.mxu0 %v2644
    %2809 = vmatprep.subr.mxu0 %v2639
    %2810 = vmatpush2.msra.mxu0 %v2638
    %2811 = vmatprep.subr.mxu0 %v2633
    %2812 = vmatpush2.msra.mxu0 %v2632
    %2813 = vmatprep.subr.mxu0 %v2627
    %2814 = vmatpush2.msra.mxu0 %v2626
    %2815 = vmatprep.subr.mxu0 %v2621
    %2816 = vmatpush2.msra.mxu0 %v2620
    %2817 = vmatprep.subr.mxu0 %v2615
    %2818 = vmatpush2.msra.mxu0 %v2614
    %2819 = vmatprep.subr.mxu0 %v2609
    %2820 = vmatpush2.msra.mxu0 %v2608
    %2821 = vmatprep.subr.mxu0 %v2603
    %2822 = vmatpush2.msra.mxu0 %v2602
    %2823 = vmatprep.subr.mxu0 %v2597
    %2824 = vmatpush2.msra.mxu0 %v2596
    %2825 = vmatprep.mubr.f32.mxu0 %v2480
    %2826 = vmatmul.mubr.f32.gmra.mxu0 %v2479
    %v2827 = vpop.f32.mrf.mxu0
    %v2828 = vadd.f32 0.0, %v2827
    %v2829 = vpop.f32.mrf.mxu0
    %v2830 = vadd.f32 0.0, %v2829
    %2831 = vdwg.mxu0
    %2832 = vmatprep.subr.mxu0 %v2593
    %2833 = vmatpush1.msra.mxu0 %v2592
    %2834 = vmatprep.subr.mxu0 %v2587
    %2835 = vmatpush1.msra.mxu0 %v2586
    %2836 = vmatprep.subr.mxu0 %v2581
    %2837 = vmatpush1.msra.mxu0 %v2580
    %2838 = vmatprep.subr.mxu0 %v2575
    %2839 = vmatpush1.msra.mxu0 %v2574
    %2840 = vmatprep.subr.mxu0 %v2569
    %2841 = vmatpush1.msra.mxu0 %v2568
    %2842 = vmatprep.subr.mxu0 %v2563
    %2843 = vmatpush1.msra.mxu0 %v2562
    %2844 = vmatprep.subr.mxu0 %v2557
    %2845 = vmatpush1.msra.mxu0 %v2556
    %2846 = vmatprep.subr.mxu0 %v2551
    %2847 = vmatpush1.msra.mxu0 %v2550
    %2848 = vmatprep.subr.mxu0 %v2545
    %2849 = vmatpush1.msra.mxu0 %v2544
    %2850 = vmatprep.subr.mxu0 %v2539
    %2851 = vmatpush1.msra.mxu0 %v2538
    %2852 = vmatprep.subr.mxu0 %v2533
    %2853 = vmatpush1.msra.mxu0 %v2532
    %2854 = vmatprep.subr.mxu0 %v2527
    %2855 = vmatpush1.msra.mxu0 %v2526
    %2856 = vmatprep.subr.mxu0 %v2521
    %2857 = vmatpush1.msra.mxu0 %v2520
    %2858 = vmatprep.subr.mxu0 %v2515
    %2859 = vmatpush1.msra.mxu0 %v2514
    %2860 = vmatprep.subr.mxu0 %v2509
    %2861 = vmatpush1.msra.mxu0 %v2508
    %2862 = vmatprep.subr.mxu0 %v2503
    %2863 = vmatpush1.msra.mxu0 %v2502
    %2864 = vmatprep.subr.mxu0 %v2689
    %2865 = vmatpush2.msra.mxu0 %v2688
    %2866 = vmatprep.subr.mxu0 %v2683
    %2867 = vmatpush2.msra.mxu0 %v2682
    %2868 = vmatprep.subr.mxu0 %v2677
    %2869 = vmatpush2.msra.mxu0 %v2676
    %2870 = vmatprep.subr.mxu0 %v2671
    %2871 = vmatpush2.msra.mxu0 %v2670
    %2872 = vmatprep.subr.mxu0 %v2665
    %2873 = vmatpush2.msra.mxu0 %v2664
    %2874 = vmatprep.subr.mxu0 %v2659
    %2875 = vmatpush2.msra.mxu0 %v2658
    %2876 = vmatprep.subr.mxu0 %v2653
    %2877 = vmatpush2.msra.mxu0 %v2652
    %2878 = vmatprep.subr.mxu0 %v2647
    %2879 = vmatpush2.msra.mxu0 %v2646
    %2880 = vmatprep.subr.mxu0 %v2641
    %2881 = vmatpush2.msra.mxu0 %v2640
    %2882 = vmatprep.subr.mxu0 %v2635
    %2883 = vmatpush2.msra.mxu0 %v2634
    %2884 = vmatprep.subr.mxu0 %v2629
    %2885 = vmatpush2.msra.mxu0 %v2628
    %2886 = vmatprep.subr.mxu0 %v2623
    %2887 = vmatpush2.msra.mxu0 %v2622
    %2888 = vmatprep.subr.mxu0 %v2617
    %2889 = vmatpush2.msra.mxu0 %v2616
    %2890 = vmatprep.subr.mxu0 %v2611
    %2891 = vmatpush2.msra.mxu0 %v2610
    %2892 = vmatprep.subr.mxu0 %v2605
    %2893 = vmatpush2.msra.mxu0 %v2604
    %2894 = vmatprep.subr.mxu0 %v2599
    %2895 = vmatpush2.msra.mxu0 %v2598
    %2896 = vmatprep.mubr.f32.mxu0 %v2480
    %2897 = vmatmul.mubr.f32.gmra.mxu0 %v2479
    %v2898 = vpop.f32.mrf.mxu0
    %v2899 = vadd.f32 0.0, %v2898
    %v2900 = vpop.f32.mrf.mxu0
    %v2901 = vadd.f32 0.0, %v2900
    %2902 = vdwg.mxu0
    %v2903 = vadd.f32 %v2492, %v2757
    %v2904 = vadd.f32 %v2493, %v2759
    %v2905 = vmul.f32 %v2903, 0.5
    %v2906 = vmul.f32 %v2904, 0.5
    %v2907 = vtanh.pop %v2905
    %v2908 = vtanh.pop %v2906
    %v2909 = vadd.f32 %v2907, 1.0
    %v2910 = vadd.f32 %v2908, 1.0
    %v2911 = vmul.f32 %v2909, 0.5
    %v2912 = vmul.f32 %v2910, 0.5
    %v2913 = vadd.f32 %v2494, %v2828
    %v2914 = vadd.f32 %v2495, %v2830
    %v2915 = vmul.f32 %v2913, 0.5
    %v2916 = vmul.f32 %v2914, 0.5
    %v2917 = vtanh.pop %v2915
    %v2918 = vtanh.pop %v2916
    %v2919 = vadd.f32 %v2917, 1.0
    %v2920 = vadd.f32 %v2918, 1.0
    %v2921 = vmul.f32 %v2919, 0.5
    %v2922 = vmul.f32 %v2920, 0.5
    %v2923 = vadd.f32 %v2899, %v650
    %v2924 = vadd.f32 %v2901, %v654
    %v2925 = vmul.f32 %v2911, %v2923
    %v2926 = vmul.f32 %v2912, %v2924
    %v2927 = vadd.f32 %v2496, %v2925
    %v2928 = vadd.f32 %v2497, %v2926
    %v2929 = vtanh.pop %v2927
    %v2930 = vtanh.pop %v2928
    %v2931 = vsub.f32 1.0, %v2921
    %v2932 = vsub.f32 1.0, %v2922
    %v2933 = vmul.f32 %v2931, %v2929
    %v2934 = vmul.f32 %v2932, %v2930
    %v2935 = vmul.f32 %v2921, %v2479
    %v2936 = vmul.f32 %v2922, %v2480
    %v2937 = vadd.f32 %v2933, %v2935
    %v2938 = vadd.f32 %v2934, %v2936
    %2939 = vst [vmem:[%s2487] sm:$0xff] %v2937
    %2940 = vst [vmem:[%s2483 + $0x8] sm:$0xff] %v2938
    %s2941 = smul.u32 5, 6
    %s2942 = smul.addr %s2941, 8
    %s2943 = scalar_lea.vmem [#allocation2], %s2942
    %v2944 = vld [vmem:[%s2943] sm:$0xff]
    %v2945 = vld [vmem:[%s2943 + $0x8] sm:$0xff]
    %v2946 = vld [vmem:[%s2943 + $0x10] sm:$0xff]
    %v2947 = vld [vmem:[%s2943 + $0x18] sm:$0xff]
    %v2948 = vld [vmem:[%s2943 + $0x20] sm:$0xff]
    %v2949 = vld [vmem:[%s2943 + $0x28] sm:$0xff]
    %v2950 = vld [vmem:[#allocation6] sm:$0xff]
    %v2951 = vld [vmem:[#allocation6 + $0x8] sm:$0xff]
    %v2952 = vld [vmem:[#allocation6 + $0x10] sm:$0xff]
    %v2953 = vld [vmem:[#allocation6 + $0x18] sm:$0xff]
    %v2954 = vld [vmem:[#allocation6 + $0x20] sm:$0xff]
    %v2955 = vld [vmem:[#allocation6 + $0x28] sm:$0xff]
    %v2956 = vld [vmem:[#allocation6 + $0x30] sm:$0xff]
    %v2957 = vld [vmem:[#allocation6 + $0x38] sm:$0xff]
    %v2958 = vld [vmem:[#allocation6 + $0x40] sm:$0xff]
    %v2959 = vld [vmem:[#allocation6 + $0x48] sm:$0xff]
    %v2960 = vld [vmem:[#allocation6 + $0x50] sm:$0xff]
    %v2961 = vld [vmem:[#allocation6 + $0x58] sm:$0xff]
    %v2962 = vld [vmem:[#allocation6 + $0x60] sm:$0xff]
    %v2963 = vld [vmem:[#allocation6 + $0x68] sm:$0xff]
    %v2964 = vld [vmem:[#allocation6 + $0x70] sm:$0xff]
    %v2965 = vld [vmem:[#allocation6 + $0x78] sm:$0xff]
    %v2966 = vld [vmem:[#allocation6 + $0x80] sm:$0xff]
    %v2967 = vld [vmem:[#allocation6 + $0x88] sm:$0xff]
    %v2968 = vld [vmem:[#allocation6 + $0x90] sm:$0xff]
    %v2969 = vld [vmem:[#allocation6 + $0x98] sm:$0xff]
    %v2970 = vld [vmem:[#allocation6 + $0xa0] sm:$0xff]
    %v2971 = vld [vmem:[#allocation6 + $0xa8] sm:$0xff]
    %v2972 = vld [vmem:[#allocation6 + $0xb0] sm:$0xff]
    %v2973 = vld [vmem:[#allocation6 + $0xb8] sm:$0xff]
    %v2974 = vld [vmem:[#allocation6 + $0xc0] sm:$0xff]
    %v2975 = vld [vmem:[#allocation6 + $0xc8] sm:$0xff]
    %v2976 = vld [vmem:[#allocation6 + $0xd0] sm:$0xff]
    %v2977 = vld [vmem:[#allocation6 + $0xd8] sm:$0xff]
    %v2978 = vld [vmem:[#allocation6 + $0xe0] sm:$0xff]
    %v2979 = vld [vmem:[#allocation6 + $0xe8] sm:$0xff]
    %v2980 = vld [vmem:[#allocation6 + $0xf0] sm:$0xff]
    %v2981 = vld [vmem:[#allocation6 + $0xf8] sm:$0xff]
    %v2982 = vld [vmem:[#allocation6 + $0x100] sm:$0xff]
    %v2983 = vld [vmem:[#allocation6 + $0x108] sm:$0xff]
    %v2984 = vld [vmem:[#allocation6 + $0x110] sm:$0xff]
    %v2985 = vld [vmem:[#allocation6 + $0x118] sm:$0xff]
    %v2986 = vld [vmem:[#allocation6 + $0x120] sm:$0xff]
    %v2987 = vld [vmem:[#allocation6 + $0x128] sm:$0xff]
    %v2988 = vld [vmem:[#allocation6 + $0x130] sm:$0xff]
    %v2989 = vld [vmem:[#allocation6 + $0x138] sm:$0xff]
    %v2990 = vld [vmem:[#allocation6 + $0x140] sm:$0xff]
    %v2991 = vld [vmem:[#allocation6 + $0x148] sm:$0xff]
    %v2992 = vld [vmem:[#allocation6 + $0x150] sm:$0xff]
    %v2993 = vld [vmem:[#allocation6 + $0x158] sm:$0xff]
    %v2994 = vld [vmem:[#allocation6 + $0x160] sm:$0xff]
    %v2995 = vld [vmem:[#allocation6 + $0x168] sm:$0xff]
    %v2996 = vld [vmem:[#allocation6 + $0x170] sm:$0xff]
    %v2997 = vld [vmem:[#allocation6 + $0x178] sm:$0xff]
    %v2998 = vld [vmem:[#allocation6 + $0x180] sm:$0xff]
    %v2999 = vld [vmem:[#allocation6 + $0x188] sm:$0xff]
    %v3000 = vld [vmem:[#allocation6 + $0x190] sm:$0xff]
    %v3001 = vld [vmem:[#allocation6 + $0x198] sm:$0xff]
    %v3002 = vld [vmem:[#allocation6 + $0x1a0] sm:$0xff]
    %v3003 = vld [vmem:[#allocation6 + $0x1a8] sm:$0xff]
    %v3004 = vld [vmem:[#allocation6 + $0x1b0] sm:$0xff]
    %v3005 = vld [vmem:[#allocation6 + $0x1b8] sm:$0xff]
    %v3006 = vld [vmem:[#allocation6 + $0x1c0] sm:$0xff]
    %v3007 = vld [vmem:[#allocation6 + $0x1c8] sm:$0xff]
    %v3008 = vld [vmem:[#allocation6 + $0x1d0] sm:$0xff]
    %v3009 = vld [vmem:[#allocation6 + $0x1d8] sm:$0xff]
    %v3010 = vld [vmem:[#allocation6 + $0x1e0] sm:$0xff]
    %v3011 = vld [vmem:[#allocation6 + $0x1e8] sm:$0xff]
    %v3012 = vld [vmem:[#allocation6 + $0x1f0] sm:$0xff]
    %v3013 = vld [vmem:[#allocation6 + $0x1f8] sm:$0xff]
    %v3014 = vld [vmem:[#allocation6 + $0x200] sm:$0xff]
    %v3015 = vld [vmem:[#allocation6 + $0x208] sm:$0xff]
    %v3016 = vld [vmem:[#allocation6 + $0x210] sm:$0xff]
    %v3017 = vld [vmem:[#allocation6 + $0x218] sm:$0xff]
    %v3018 = vld [vmem:[#allocation6 + $0x220] sm:$0xff]
    %v3019 = vld [vmem:[#allocation6 + $0x228] sm:$0xff]
    %v3020 = vld [vmem:[#allocation6 + $0x230] sm:$0xff]
    %v3021 = vld [vmem:[#allocation6 + $0x238] sm:$0xff]
    %v3022 = vld [vmem:[#allocation6 + $0x240] sm:$0xff]
    %v3023 = vld [vmem:[#allocation6 + $0x248] sm:$0xff]
    %v3024 = vld [vmem:[#allocation6 + $0x250] sm:$0xff]
    %v3025 = vld [vmem:[#allocation6 + $0x258] sm:$0xff]
    %v3026 = vld [vmem:[#allocation6 + $0x260] sm:$0xff]
    %v3027 = vld [vmem:[#allocation6 + $0x268] sm:$0xff]
    %v3028 = vld [vmem:[#allocation6 + $0x270] sm:$0xff]
    %v3029 = vld [vmem:[#allocation6 + $0x278] sm:$0xff]
    %v3030 = vld [vmem:[#allocation6 + $0x280] sm:$0xff]
    %v3031 = vld [vmem:[#allocation6 + $0x288] sm:$0xff]
    %v3032 = vld [vmem:[#allocation6 + $0x290] sm:$0xff]
    %v3033 = vld [vmem:[#allocation6 + $0x298] sm:$0xff]
    %v3034 = vld [vmem:[#allocation6 + $0x2a0] sm:$0xff]
    %v3035 = vld [vmem:[#allocation6 + $0x2a8] sm:$0xff]
    %v3036 = vld [vmem:[#allocation6 + $0x2b0] sm:$0xff]
    %v3037 = vld [vmem:[#allocation6 + $0x2b8] sm:$0xff]
    %v3038 = vld [vmem:[#allocation6 + $0x2c0] sm:$0xff]
    %v3039 = vld [vmem:[#allocation6 + $0x2c8] sm:$0xff]
    %v3040 = vld [vmem:[#allocation6 + $0x2d0] sm:$0xff]
    %v3041 = vld [vmem:[#allocation6 + $0x2d8] sm:$0xff]
    %v3042 = vld [vmem:[#allocation6 + $0x2e0] sm:$0xff]
    %v3043 = vld [vmem:[#allocation6 + $0x2e8] sm:$0xff]
    %v3044 = vld [vmem:[#allocation6 + $0x2f0] sm:$0xff]
    %v3045 = vld [vmem:[#allocation6 + $0x2f8] sm:$0xff]
    %v3046 = vld [vmem:[#allocation6 + $0x300] sm:$0xff]
    %v3047 = vld [vmem:[#allocation6 + $0x308] sm:$0xff]
    %v3048 = vld [vmem:[#allocation6 + $0x310] sm:$0xff]
    %v3049 = vld [vmem:[#allocation6 + $0x318] sm:$0xff]
    %v3050 = vld [vmem:[#allocation6 + $0x320] sm:$0xff]
    %v3051 = vld [vmem:[#allocation6 + $0x328] sm:$0xff]
    %v3052 = vld [vmem:[#allocation6 + $0x330] sm:$0xff]
    %v3053 = vld [vmem:[#allocation6 + $0x338] sm:$0xff]
    %v3054 = vld [vmem:[#allocation6 + $0x340] sm:$0xff]
    %v3055 = vld [vmem:[#allocation6 + $0x348] sm:$0xff]
    %v3056 = vld [vmem:[#allocation6 + $0x350] sm:$0xff]
    %v3057 = vld [vmem:[#allocation6 + $0x358] sm:$0xff]
    %v3058 = vld [vmem:[#allocation6 + $0x360] sm:$0xff]
    %v3059 = vld [vmem:[#allocation6 + $0x368] sm:$0xff]
    %v3060 = vld [vmem:[#allocation6 + $0x370] sm:$0xff]
    %v3061 = vld [vmem:[#allocation6 + $0x378] sm:$0xff]
    %v3062 = vld [vmem:[#allocation6 + $0x380] sm:$0xff]
    %v3063 = vld [vmem:[#allocation6 + $0x388] sm:$0xff]
    %v3064 = vld [vmem:[#allocation6 + $0x390] sm:$0xff]
    %v3065 = vld [vmem:[#allocation6 + $0x398] sm:$0xff]
    %v3066 = vld [vmem:[#allocation6 + $0x3a0] sm:$0xff]
    %v3067 = vld [vmem:[#allocation6 + $0x3a8] sm:$0xff]
    %v3068 = vld [vmem:[#allocation6 + $0x3b0] sm:$0xff]
    %v3069 = vld [vmem:[#allocation6 + $0x3b8] sm:$0xff]
    %v3070 = vld [vmem:[#allocation6 + $0x3c0] sm:$0xff]
    %v3071 = vld [vmem:[#allocation6 + $0x3c8] sm:$0xff]
    %v3072 = vld [vmem:[#allocation6 + $0x3d0] sm:$0xff]
    %v3073 = vld [vmem:[#allocation6 + $0x3d8] sm:$0xff]
    %v3074 = vld [vmem:[#allocation6 + $0x3e0] sm:$0xff]
    %v3075 = vld [vmem:[#allocation6 + $0x3e8] sm:$0xff]
    %v3076 = vld [vmem:[#allocation6 + $0x3f0] sm:$0xff]
    %v3077 = vld [vmem:[#allocation6 + $0x3f8] sm:$0xff]
    %v3078 = vld [vmem:[#allocation6 + $0x400] sm:$0xff]
    %v3079 = vld [vmem:[#allocation6 + $0x408] sm:$0xff]
    %v3080 = vld [vmem:[#allocation6 + $0x410] sm:$0xff]
    %v3081 = vld [vmem:[#allocation6 + $0x418] sm:$0xff]
    %v3082 = vld [vmem:[#allocation6 + $0x420] sm:$0xff]
    %v3083 = vld [vmem:[#allocation6 + $0x428] sm:$0xff]
    %v3084 = vld [vmem:[#allocation6 + $0x430] sm:$0xff]
    %v3085 = vld [vmem:[#allocation6 + $0x438] sm:$0xff]
    %v3086 = vld [vmem:[#allocation6 + $0x440] sm:$0xff]
    %v3087 = vld [vmem:[#allocation6 + $0x448] sm:$0xff]
    %v3088 = vld [vmem:[#allocation6 + $0x450] sm:$0xff]
    %v3089 = vld [vmem:[#allocation6 + $0x458] sm:$0xff]
    %v3090 = vld [vmem:[#allocation6 + $0x460] sm:$0xff]
    %v3091 = vld [vmem:[#allocation6 + $0x468] sm:$0xff]
    %v3092 = vld [vmem:[#allocation6 + $0x470] sm:$0xff]
    %v3093 = vld [vmem:[#allocation6 + $0x478] sm:$0xff]
    %v3094 = vld [vmem:[#allocation6 + $0x480] sm:$0xff]
    %v3095 = vld [vmem:[#allocation6 + $0x488] sm:$0xff]
    %v3096 = vld [vmem:[#allocation6 + $0x490] sm:$0xff]
    %v3097 = vld [vmem:[#allocation6 + $0x498] sm:$0xff]
    %v3098 = vld [vmem:[#allocation6 + $0x4a0] sm:$0xff]
    %v3099 = vld [vmem:[#allocation6 + $0x4a8] sm:$0xff]
    %v3100 = vld [vmem:[#allocation6 + $0x4b0] sm:$0xff]
    %v3101 = vld [vmem:[#allocation6 + $0x4b8] sm:$0xff]
    %v3102 = vld [vmem:[#allocation6 + $0x4c0] sm:$0xff]
    %v3103 = vld [vmem:[#allocation6 + $0x4c8] sm:$0xff]
    %v3104 = vld [vmem:[#allocation6 + $0x4d0] sm:$0xff]
    %v3105 = vld [vmem:[#allocation6 + $0x4d8] sm:$0xff]
    %v3106 = vld [vmem:[#allocation6 + $0x4e0] sm:$0xff]
    %v3107 = vld [vmem:[#allocation6 + $0x4e8] sm:$0xff]
    %v3108 = vld [vmem:[#allocation6 + $0x4f0] sm:$0xff]
    %v3109 = vld [vmem:[#allocation6 + $0x4f8] sm:$0xff]
    %v3110 = vld [vmem:[#allocation6 + $0x500] sm:$0xff]
    %v3111 = vld [vmem:[#allocation6 + $0x508] sm:$0xff]
    %v3112 = vld [vmem:[#allocation6 + $0x510] sm:$0xff]
    %v3113 = vld [vmem:[#allocation6 + $0x518] sm:$0xff]
    %v3114 = vld [vmem:[#allocation6 + $0x520] sm:$0xff]
    %v3115 = vld [vmem:[#allocation6 + $0x528] sm:$0xff]
    %v3116 = vld [vmem:[#allocation6 + $0x530] sm:$0xff]
    %v3117 = vld [vmem:[#allocation6 + $0x538] sm:$0xff]
    %v3118 = vld [vmem:[#allocation6 + $0x540] sm:$0xff]
    %v3119 = vld [vmem:[#allocation6 + $0x548] sm:$0xff]
    %v3120 = vld [vmem:[#allocation6 + $0x550] sm:$0xff]
    %v3121 = vld [vmem:[#allocation6 + $0x558] sm:$0xff]
    %v3122 = vld [vmem:[#allocation6 + $0x560] sm:$0xff]
    %v3123 = vld [vmem:[#allocation6 + $0x568] sm:$0xff]
    %v3124 = vld [vmem:[#allocation6 + $0x570] sm:$0xff]
    %v3125 = vld [vmem:[#allocation6 + $0x578] sm:$0xff]
    %v3126 = vld [vmem:[#allocation6 + $0x580] sm:$0xff]
    %v3127 = vld [vmem:[#allocation6 + $0x588] sm:$0xff]
    %v3128 = vld [vmem:[#allocation6 + $0x590] sm:$0xff]
    %v3129 = vld [vmem:[#allocation6 + $0x598] sm:$0xff]
    %v3130 = vld [vmem:[#allocation6 + $0x5a0] sm:$0xff]
    %v3131 = vld [vmem:[#allocation6 + $0x5a8] sm:$0xff]
    %v3132 = vld [vmem:[#allocation6 + $0x5b0] sm:$0xff]
    %v3133 = vld [vmem:[#allocation6 + $0x5b8] sm:$0xff]
    %v3134 = vld [vmem:[#allocation6 + $0x5c0] sm:$0xff]
    %v3135 = vld [vmem:[#allocation6 + $0x5c8] sm:$0xff]
    %v3136 = vld [vmem:[#allocation6 + $0x5d0] sm:$0xff]
    %v3137 = vld [vmem:[#allocation6 + $0x5d8] sm:$0xff]
    %v3138 = vld [vmem:[#allocation6 + $0x5e0] sm:$0xff]
    %v3139 = vld [vmem:[#allocation6 + $0x5e8] sm:$0xff]
    %v3140 = vld [vmem:[#allocation6 + $0x5f0] sm:$0xff]
    %v3141 = vld [vmem:[#allocation6 + $0x5f8] sm:$0xff]
    %3142 = vmatprep.subr.mxu0 %v3041
    %3143 = vmatpush1.msra.mxu0 %v3040
    %3144 = vmatprep.subr.mxu0 %v3035
    %3145 = vmatpush1.msra.mxu0 %v3034
    %3146 = vmatprep.subr.mxu0 %v3029
    %3147 = vmatpush1.msra.mxu0 %v3028
    %3148 = vmatprep.subr.mxu0 %v3023
    %3149 = vmatpush1.msra.mxu0 %v3022
    %3150 = vmatprep.subr.mxu0 %v3017
    %3151 = vmatpush1.msra.mxu0 %v3016
    %3152 = vmatprep.subr.mxu0 %v3011
    %3153 = vmatpush1.msra.mxu0 %v3010
    %3154 = vmatprep.subr.mxu0 %v3005
    %3155 = vmatpush1.msra.mxu0 %v3004
    %3156 = vmatprep.subr.mxu0 %v2999
    %3157 = vmatpush1.msra.mxu0 %v2998
    %3158 = vmatprep.subr.mxu0 %v2993
    %3159 = vmatpush1.msra.mxu0 %v2992
    %3160 = vmatprep.subr.mxu0 %v2987
    %3161 = vmatpush1.msra.mxu0 %v2986
    %3162 = vmatprep.subr.mxu0 %v2981
    %3163 = vmatpush1.msra.mxu0 %v2980
    %3164 = vmatprep.subr.mxu0 %v2975
    %3165 = vmatpush1.msra.mxu0 %v2974
    %3166 = vmatprep.subr.mxu0 %v2969
    %3167 = vmatpush1.msra.mxu0 %v2968
    %3168 = vmatprep.subr.mxu0 %v2963
    %3169 = vmatpush1.msra.mxu0 %v2962
    %3170 = vmatprep.subr.mxu0 %v2957
    %3171 = vmatpush1.msra.mxu0 %v2956
    %3172 = vmatprep.subr.mxu0 %v2951
    %3173 = vmatpush1.msra.mxu0 %v2950
    %3174 = vmatprep.subr.mxu0 %v3137
    %3175 = vmatpush2.msra.mxu0 %v3136
    %3176 = vmatprep.subr.mxu0 %v3131
    %3177 = vmatpush2.msra.mxu0 %v3130
    %3178 = vmatprep.subr.mxu0 %v3125
    %3179 = vmatpush2.msra.mxu0 %v3124
    %3180 = vmatprep.subr.mxu0 %v3119
    %3181 = vmatpush2.msra.mxu0 %v3118
    %3182 = vmatprep.subr.mxu0 %v3113
    %3183 = vmatpush2.msra.mxu0 %v3112
    %3184 = vmatprep.subr.mxu0 %v3107
    %3185 = vmatpush2.msra.mxu0 %v3106
    %3186 = vmatprep.subr.mxu0 %v3101
    %3187 = vmatpush2.msra.mxu0 %v3100
    %3188 = vmatprep.subr.mxu0 %v3095
    %3189 = vmatpush2.msra.mxu0 %v3094
    %3190 = vmatprep.subr.mxu0 %v3089
    %3191 = vmatpush2.msra.mxu0 %v3088
    %3192 = vmatprep.subr.mxu0 %v3083
    %3193 = vmatpush2.msra.mxu0 %v3082
    %3194 = vmatprep.subr.mxu0 %v3077
    %3195 = vmatpush2.msra.mxu0 %v3076
    %3196 = vmatprep.subr.mxu0 %v3071
    %3197 = vmatpush2.msra.mxu0 %v3070
    %3198 = vmatprep.subr.mxu0 %v3065
    %3199 = vmatpush2.msra.mxu0 %v3064
    %3200 = vmatprep.subr.mxu0 %v3059
    %3201 = vmatpush2.msra.mxu0 %v3058
    %3202 = vmatprep.subr.mxu0 %v3053
    %3203 = vmatpush2.msra.mxu0 %v3052
    %3204 = vmatprep.subr.mxu0 %v3047
    %3205 = vmatpush2.msra.mxu0 %v3046
    %3206 = vmatprep.mubr.f32.mxu0 %v2938
    %3207 = vmatmul.mubr.f32.gmra.mxu0 %v2937
    %v3208 = vpop.f32.mrf.mxu0
    %v3209 = vadd.f32 0.0, %v3208
    %v3210 = vpop.f32.mrf.mxu0
    %v3211 = vadd.f32 0.0, %v3210
    %3212 = vdwg.mxu0
    %3213 = vmatprep.subr.mxu0 %v3043
    %3214 = vmatpush1.msra.mxu0 %v3042
    %3215 = vmatprep.subr.mxu0 %v3037
    %3216 = vmatpush1.msra.mxu0 %v3036
    %3217 = vmatprep.subr.mxu0 %v3031
    %3218 = vmatpush1.msra.mxu0 %v3030
    %3219 = vmatprep.subr.mxu0 %v3025
    %3220 = vmatpush1.msra.mxu0 %v3024
    %3221 = vmatprep.subr.mxu0 %v3019
    %3222 = vmatpush1.msra.mxu0 %v3018
    %3223 = vmatprep.subr.mxu0 %v3013
    %3224 = vmatpush1.msra.mxu0 %v3012
    %3225 = vmatprep.subr.mxu0 %v3007
    %3226 = vmatpush1.msra.mxu0 %v3006
    %3227 = vmatprep.subr.mxu0 %v3001
    %3228 = vmatpush1.msra.mxu0 %v3000
    %3229 = vmatprep.subr.mxu0 %v2995
    %3230 = vmatpush1.msra.mxu0 %v2994
    %3231 = vmatprep.subr.mxu0 %v2989
    %3232 = vmatpush1.msra.mxu0 %v2988
    %3233 = vmatprep.subr.mxu0 %v2983
    %3234 = vmatpush1.msra.mxu0 %v2982
    %3235 = vmatprep.subr.mxu0 %v2977
    %3236 = vmatpush1.msra.mxu0 %v2976
    %3237 = vmatprep.subr.mxu0 %v2971
    %3238 = vmatpush1.msra.mxu0 %v2970
    %3239 = vmatprep.subr.mxu0 %v2965
    %3240 = vmatpush1.msra.mxu0 %v2964
    %3241 = vmatprep.subr.mxu0 %v2959
    %3242 = vmatpush1.msra.mxu0 %v2958
    %3243 = vmatprep.subr.mxu0 %v2953
    %3244 = vmatpush1.msra.mxu0 %v2952
    %3245 = vmatprep.subr.mxu0 %v3139
    %3246 = vmatpush2.msra.mxu0 %v3138
    %3247 = vmatprep.subr.mxu0 %v3133
    %3248 = vmatpush2.msra.mxu0 %v3132
    %3249 = vmatprep.subr.mxu0 %v3127
    %3250 = vmatpush2.msra.mxu0 %v3126
    %3251 = vmatprep.subr.mxu0 %v3121
    %3252 = vmatpush2.msra.mxu0 %v3120
    %3253 = vmatprep.subr.mxu0 %v3115
    %3254 = vmatpush2.msra.mxu0 %v3114
    %3255 = vmatprep.subr.mxu0 %v3109
    %3256 = vmatpush2.msra.mxu0 %v3108
    %3257 = vmatprep.subr.mxu0 %v3103
    %3258 = vmatpush2.msra.mxu0 %v3102
    %3259 = vmatprep.subr.mxu0 %v3097
    %3260 = vmatpush2.msra.mxu0 %v3096
    %3261 = vmatprep.subr.mxu0 %v3091
    %3262 = vmatpush2.msra.mxu0 %v3090
    %3263 = vmatprep.subr.mxu0 %v3085
    %3264 = vmatpush2.msra.mxu0 %v3084
    %3265 = vmatprep.subr.mxu0 %v3079
    %3266 = vmatpush2.msra.mxu0 %v3078
    %3267 = vmatprep.subr.mxu0 %v3073
    %3268 = vmatpush2.msra.mxu0 %v3072
    %3269 = vmatprep.subr.mxu0 %v3067
    %3270 = vmatpush2.msra.mxu0 %v3066
    %3271 = vmatprep.subr.mxu0 %v3061
    %3272 = vmatpush2.msra.mxu0 %v3060
    %3273 = vmatprep.subr.mxu0 %v3055
    %3274 = vmatpush2.msra.mxu0 %v3054
    %3275 = vmatprep.subr.mxu0 %v3049
    %3276 = vmatpush2.msra.mxu0 %v3048
    %3277 = vmatprep.mubr.f32.mxu0 %v2938
    %3278 = vmatmul.mubr.f32.gmra.mxu0 %v2937
    %v3279 = vpop.f32.mrf.mxu0
    %v3280 = vadd.f32 0.0, %v3279
    %v3281 = vpop.f32.mrf.mxu0
    %v3282 = vadd.f32 0.0, %v3281
    %3283 = vdwg.mxu0
    %3284 = vmatprep.subr.mxu0 %v3045
    %3285 = vmatpush1.msra.mxu0 %v3044
    %3286 = vmatprep.subr.mxu0 %v3039
    %3287 = vmatpush1.msra.mxu0 %v3038
    %3288 = vmatprep.subr.mxu0 %v3033
    %3289 = vmatpush1.msra.mxu0 %v3032
    %3290 = vmatprep.subr.mxu0 %v3027
    %3291 = vmatpush1.msra.mxu0 %v3026
    %3292 = vmatprep.subr.mxu0 %v3021
    %3293 = vmatpush1.msra.mxu0 %v3020
    %3294 = vmatprep.subr.mxu0 %v3015
    %3295 = vmatpush1.msra.mxu0 %v3014
    %3296 = vmatprep.subr.mxu0 %v3009
    %3297 = vmatpush1.msra.mxu0 %v3008
    %3298 = vmatprep.subr.mxu0 %v3003
    %3299 = vmatpush1.msra.mxu0 %v3002
    %3300 = vmatprep.subr.mxu0 %v2997
    %3301 = vmatpush1.msra.mxu0 %v2996
    %3302 = vmatprep.subr.mxu0 %v2991
    %3303 = vmatpush1.msra.mxu0 %v2990
    %3304 = vmatprep.subr.mxu0 %v2985
    %3305 = vmatpush1.msra.mxu0 %v2984
    %3306 = vmatprep.subr.mxu0 %v2979
    %3307 = vmatpush1.msra.mxu0 %v2978
    %3308 = vmatprep.subr.mxu0 %v2973
    %3309 = vmatpush1.msra.mxu0 %v2972
    %3310 = vmatprep.subr.mxu0 %v2967
    %3311 = vmatpush1.msra.mxu0 %v2966
    %3312 = vmatprep.subr.mxu0 %v2961
    %3313 = vmatpush1.msra.mxu0 %v2960
    %3314 = vmatprep.subr.mxu0 %v2955
    %3315 = vmatpush1.msra.mxu0 %v2954
    %3316 = vmatprep.subr.mxu0 %v3141
    %3317 = vmatpush2.msra.mxu0 %v3140
    %3318 = vmatprep.subr.mxu0 %v3135
    %3319 = vmatpush2.msra.mxu0 %v3134
    %3320 = vmatprep.subr.mxu0 %v3129
    %3321 = vmatpush2.msra.mxu0 %v3128
    %3322 = vmatprep.subr.mxu0 %v3123
    %3323 = vmatpush2.msra.mxu0 %v3122
    %3324 = vmatprep.subr.mxu0 %v3117
    %3325 = vmatpush2.msra.mxu0 %v3116
    %3326 = vmatprep.subr.mxu0 %v3111
    %3327 = vmatpush2.msra.mxu0 %v3110
    %3328 = vmatprep.subr.mxu0 %v3105
    %3329 = vmatpush2.msra.mxu0 %v3104
    %3330 = vmatprep.subr.mxu0 %v3099
    %3331 = vmatpush2.msra.mxu0 %v3098
    %3332 = vmatprep.subr.mxu0 %v3093
    %3333 = vmatpush2.msra.mxu0 %v3092
    %3334 = vmatprep.subr.mxu0 %v3087
    %3335 = vmatpush2.msra.mxu0 %v3086
    %3336 = vmatprep.subr.mxu0 %v3081
    %3337 = vmatpush2.msra.mxu0 %v3080
    %3338 = vmatprep.subr.mxu0 %v3075
    %3339 = vmatpush2.msra.mxu0 %v3074
    %3340 = vmatprep.subr.mxu0 %v3069
    %3341 = vmatpush2.msra.mxu0 %v3068
    %3342 = vmatprep.subr.mxu0 %v3063
    %3343 = vmatpush2.msra.mxu0 %v3062
    %3344 = vmatprep.subr.mxu0 %v3057
    %3345 = vmatpush2.msra.mxu0 %v3056
    %3346 = vmatprep.subr.mxu0 %v3051
    %3347 = vmatpush2.msra.mxu0 %v3050
    %3348 = vmatprep.mubr.f32.mxu0 %v2938
    %3349 = vmatmul.mubr.f32.gmra.mxu0 %v2937
    %v3350 = vpop.f32.mrf.mxu0
    %v3351 = vadd.f32 0.0, %v3350
    %v3352 = vpop.f32.mrf.mxu0
    %v3353 = vadd.f32 0.0, %v3352
    %3354 = vdwg.mxu0
    %v3355 = vadd.f32 %v2944, %v3209
    %v3356 = vadd.f32 %v2945, %v3211
    %v3357 = vmul.f32 %v3355, 0.5
    %v3358 = vmul.f32 %v3356, 0.5
    %v3359 = vtanh.pop %v3357
    %v3360 = vtanh.pop %v3358
    %v3361 = vadd.f32 %v3359, 1.0
    %v3362 = vadd.f32 %v3360, 1.0
    %v3363 = vmul.f32 %v3361, 0.5
    %v3364 = vmul.f32 %v3362, 0.5
    %v3365 = vadd.f32 %v2946, %v3280
    %v3366 = vadd.f32 %v2947, %v3282
    %v3367 = vmul.f32 %v3365, 0.5
    %v3368 = vmul.f32 %v3366, 0.5
    %v3369 = vtanh.pop %v3367
    %v3370 = vtanh.pop %v3368
    %v3371 = vadd.f32 %v3369, 1.0
    %v3372 = vadd.f32 %v3370, 1.0
    %v3373 = vmul.f32 %v3371, 0.5
    %v3374 = vmul.f32 %v3372, 0.5
    %v3375 = vadd.f32 %v3351, %v650
    %v3376 = vadd.f32 %v3353, %v654
    %v3377 = vmul.f32 %v3363, %v3375
    %v3378 = vmul.f32 %v3364, %v3376
    %v3379 = vadd.f32 %v2948, %v3377
    %v3380 = vadd.f32 %v2949, %v3378
    %v3381 = vtanh.pop %v3379
    %v3382 = vtanh.pop %v3380
    %v3383 = vsub.f32 1.0, %v3373
    %v3384 = vsub.f32 1.0, %v3374
    %v3385 = vmul.f32 %v3383, %v3381
    %v3386 = vmul.f32 %v3384, %v3382
    %v3387 = vmul.f32 %v3373, %v2937
    %v3388 = vmul.f32 %v3374, %v2938
    %v3389 = vadd.f32 %v3385, %v3387
    %v3390 = vadd.f32 %v3386, %v3388
    %3391 = vst [vmem:[%s2029] sm:$0xff] %v3389
    %3392 = vst [vmem:[%s2025 + $0x8] sm:$0xff] %v3390
    %s3393 = smul.u32 6, 6
    %s3394 = smul.addr %s3393, 8
    %s3395 = scalar_lea.vmem [#allocation2], %s3394
    %v3396 = vld [vmem:[%s3395] sm:$0xff]
    %v3397 = vld [vmem:[%s3395 + $0x8] sm:$0xff]
    %v3398 = vld [vmem:[%s3395 + $0x10] sm:$0xff]
    %v3399 = vld [vmem:[%s3395 + $0x18] sm:$0xff]
    %v3400 = vld [vmem:[%s3395 + $0x20] sm:$0xff]
    %v3401 = vld [vmem:[%s3395 + $0x28] sm:$0xff]
    %v3402 = vld [vmem:[#allocation6] sm:$0xff]
    %v3403 = vld [vmem:[#allocation6 + $0x8] sm:$0xff]
    %v3404 = vld [vmem:[#allocation6 + $0x10] sm:$0xff]
    %v3405 = vld [vmem:[#allocation6 + $0x18] sm:$0xff]
    %v3406 = vld [vmem:[#allocation6 + $0x20] sm:$0xff]
    %v3407 = vld [vmem:[#allocation6 + $0x28] sm:$0xff]
    %v3408 = vld [vmem:[#allocation6 + $0x30] sm:$0xff]
    %v3409 = vld [vmem:[#allocation6 + $0x38] sm:$0xff]
    %v3410 = vld [vmem:[#allocation6 + $0x40] sm:$0xff]
    %v3411 = vld [vmem:[#allocation6 + $0x48] sm:$0xff]
    %v3412 = vld [vmem:[#allocation6 + $0x50] sm:$0xff]
    %v3413 = vld [vmem:[#allocation6 + $0x58] sm:$0xff]
    %v3414 = vld [vmem:[#allocation6 + $0x60] sm:$0xff]
    %v3415 = vld [vmem:[#allocation6 + $0x68] sm:$0xff]
    %v3416 = vld [vmem:[#allocation6 + $0x70] sm:$0xff]
    %v3417 = vld [vmem:[#allocation6 + $0x78] sm:$0xff]
    %v3418 = vld [vmem:[#allocation6 + $0x80] sm:$0xff]
    %v3419 = vld [vmem:[#allocation6 + $0x88] sm:$0xff]
    %v3420 = vld [vmem:[#allocation6 + $0x90] sm:$0xff]
    %v3421 = vld [vmem:[#allocation6 + $0x98] sm:$0xff]
    %v3422 = vld [vmem:[#allocation6 + $0xa0] sm:$0xff]
    %v3423 = vld [vmem:[#allocation6 + $0xa8] sm:$0xff]
    %v3424 = vld [vmem:[#allocation6 + $0xb0] sm:$0xff]
    %v3425 = vld [vmem:[#allocation6 + $0xb8] sm:$0xff]
    %v3426 = vld [vmem:[#allocation6 + $0xc0] sm:$0xff]
    %v3427 = vld [vmem:[#allocation6 + $0xc8] sm:$0xff]
    %v3428 = vld [vmem:[#allocation6 + $0xd0] sm:$0xff]
    %v3429 = vld [vmem:[#allocation6 + $0xd8] sm:$0xff]
    %v3430 = vld [vmem:[#allocation6 + $0xe0] sm:$0xff]
    %v3431 = vld [vmem:[#allocation6 + $0xe8] sm:$0xff]
    %v3432 = vld [vmem:[#allocation6 + $0xf0] sm:$0xff]
    %v3433 = vld [vmem:[#allocation6 + $0xf8] sm:$0xff]
    %v3434 = vld [vmem:[#allocation6 + $0x100] sm:$0xff]
    %v3435 = vld [vmem:[#allocation6 + $0x108] sm:$0xff]
    %v3436 = vld [vmem:[#allocation6 + $0x110] sm:$0xff]
    %v3437 = vld [vmem:[#allocation6 + $0x118] sm:$0xff]
    %v3438 = vld [vmem:[#allocation6 + $0x120] sm:$0xff]
    %v3439 = vld [vmem:[#allocation6 + $0x128] sm:$0xff]
    %v3440 = vld [vmem:[#allocation6 + $0x130] sm:$0xff]
    %v3441 = vld [vmem:[#allocation6 + $0x138] sm:$0xff]
    %v3442 = vld [vmem:[#allocation6 + $0x140] sm:$0xff]
    %v3443 = vld [vmem:[#allocation6 + $0x148] sm:$0xff]
    %v3444 = vld [vmem:[#allocation6 + $0x150] sm:$0xff]
    %v3445 = vld [vmem:[#allocation6 + $0x158] sm:$0xff]
    %v3446 = vld [vmem:[#allocation6 + $0x160] sm:$0xff]
    %v3447 = vld [vmem:[#allocation6 + $0x168] sm:$0xff]
    %v3448 = vld [vmem:[#allocation6 + $0x170] sm:$0xff]
    %v3449 = vld [vmem:[#allocation6 + $0x178] sm:$0xff]
    %v3450 = vld [vmem:[#allocation6 + $0x180] sm:$0xff]
    %v3451 = vld [vmem:[#allocation6 + $0x188] sm:$0xff]
    %v3452 = vld [vmem:[#allocation6 + $0x190] sm:$0xff]
    %v3453 = vld [vmem:[#allocation6 + $0x198] sm:$0xff]
    %v3454 = vld [vmem:[#allocation6 + $0x1a0] sm:$0xff]
    %v3455 = vld [vmem:[#allocation6 + $0x1a8] sm:$0xff]
    %v3456 = vld [vmem:[#allocation6 + $0x1b0] sm:$0xff]
    %v3457 = vld [vmem:[#allocation6 + $0x1b8] sm:$0xff]
    %v3458 = vld [vmem:[#allocation6 + $0x1c0] sm:$0xff]
    %v3459 = vld [vmem:[#allocation6 + $0x1c8] sm:$0xff]
    %v3460 = vld [vmem:[#allocation6 + $0x1d0] sm:$0xff]
    %v3461 = vld [vmem:[#allocation6 + $0x1d8] sm:$0xff]
    %v3462 = vld [vmem:[#allocation6 + $0x1e0] sm:$0xff]
    %v3463 = vld [vmem:[#allocation6 + $0x1e8] sm:$0xff]
    %v3464 = vld [vmem:[#allocation6 + $0x1f0] sm:$0xff]
    %v3465 = vld [vmem:[#allocation6 + $0x1f8] sm:$0xff]
    %v3466 = vld [vmem:[#allocation6 + $0x200] sm:$0xff]
    %v3467 = vld [vmem:[#allocation6 + $0x208] sm:$0xff]
    %v3468 = vld [vmem:[#allocation6 + $0x210] sm:$0xff]
    %v3469 = vld [vmem:[#allocation6 + $0x218] sm:$0xff]
    %v3470 = vld [vmem:[#allocation6 + $0x220] sm:$0xff]
    %v3471 = vld [vmem:[#allocation6 + $0x228] sm:$0xff]
    %v3472 = vld [vmem:[#allocation6 + $0x230] sm:$0xff]
    %v3473 = vld [vmem:[#allocation6 + $0x238] sm:$0xff]
    %v3474 = vld [vmem:[#allocation6 + $0x240] sm:$0xff]
    %v3475 = vld [vmem:[#allocation6 + $0x248] sm:$0xff]
    %v3476 = vld [vmem:[#allocation6 + $0x250] sm:$0xff]
    %v3477 = vld [vmem:[#allocation6 + $0x258] sm:$0xff]
    %v3478 = vld [vmem:[#allocation6 + $0x260] sm:$0xff]
    %v3479 = vld [vmem:[#allocation6 + $0x268] sm:$0xff]
    %v3480 = vld [vmem:[#allocation6 + $0x270] sm:$0xff]
    %v3481 = vld [vmem:[#allocation6 + $0x278] sm:$0xff]
    %v3482 = vld [vmem:[#allocation6 + $0x280] sm:$0xff]
    %v3483 = vld [vmem:[#allocation6 + $0x288] sm:$0xff]
    %v3484 = vld [vmem:[#allocation6 + $0x290] sm:$0xff]
    %v3485 = vld [vmem:[#allocation6 + $0x298] sm:$0xff]
    %v3486 = vld [vmem:[#allocation6 + $0x2a0] sm:$0xff]
    %v3487 = vld [vmem:[#allocation6 + $0x2a8] sm:$0xff]
    %v3488 = vld [vmem:[#allocation6 + $0x2b0] sm:$0xff]
    %v3489 = vld [vmem:[#allocation6 + $0x2b8] sm:$0xff]
    %v3490 = vld [vmem:[#allocation6 + $0x2c0] sm:$0xff]
    %v3491 = vld [vmem:[#allocation6 + $0x2c8] sm:$0xff]
    %v3492 = vld [vmem:[#allocation6 + $0x2d0] sm:$0xff]
    %v3493 = vld [vmem:[#allocation6 + $0x2d8] sm:$0xff]
    %v3494 = vld [vmem:[#allocation6 + $0x2e0] sm:$0xff]
    %v3495 = vld [vmem:[#allocation6 + $0x2e8] sm:$0xff]
    %v3496 = vld [vmem:[#allocation6 + $0x2f0] sm:$0xff]
    %v3497 = vld [vmem:[#allocation6 + $0x2f8] sm:$0xff]
    %v3498 = vld [vmem:[#allocation6 + $0x300] sm:$0xff]
    %v3499 = vld [vmem:[#allocation6 + $0x308] sm:$0xff]
    %v3500 = vld [vmem:[#allocation6 + $0x310] sm:$0xff]
    %v3501 = vld [vmem:[#allocation6 + $0x318] sm:$0xff]
    %v3502 = vld [vmem:[#allocation6 + $0x320] sm:$0xff]
    %v3503 = vld [vmem:[#allocation6 + $0x328] sm:$0xff]
    %v3504 = vld [vmem:[#allocation6 + $0x330] sm:$0xff]
    %v3505 = vld [vmem:[#allocation6 + $0x338] sm:$0xff]
    %v3506 = vld [vmem:[#allocation6 + $0x340] sm:$0xff]
    %v3507 = vld [vmem:[#allocation6 + $0x348] sm:$0xff]
    %v3508 = vld [vmem:[#allocation6 + $0x350] sm:$0xff]
    %v3509 = vld [vmem:[#allocation6 + $0x358] sm:$0xff]
    %v3510 = vld [vmem:[#allocation6 + $0x360] sm:$0xff]
    %v3511 = vld [vmem:[#allocation6 + $0x368] sm:$0xff]
    %v3512 = vld [vmem:[#allocation6 + $0x370] sm:$0xff]
    %v3513 = vld [vmem:[#allocation6 + $0x378] sm:$0xff]
    %v3514 = vld [vmem:[#allocation6 + $0x380] sm:$0xff]
    %v3515 = vld [vmem:[#allocation6 + $0x388] sm:$0xff]
    %v3516 = vld [vmem:[#allocation6 + $0x390] sm:$0xff]
    %v3517 = vld [vmem:[#allocation6 + $0x398] sm:$0xff]
    %v3518 = vld [vmem:[#allocation6 + $0x3a0] sm:$0xff]
    %v3519 = vld [vmem:[#allocation6 + $0x3a8] sm:$0xff]
    %v3520 = vld [vmem:[#allocation6 + $0x3b0] sm:$0xff]
    %v3521 = vld [vmem:[#allocation6 + $0x3b8] sm:$0xff]
    %v3522 = vld [vmem:[#allocation6 + $0x3c0] sm:$0xff]
    %v3523 = vld [vmem:[#allocation6 + $0x3c8] sm:$0xff]
    %v3524 = vld [vmem:[#allocation6 + $0x3d0] sm:$0xff]
    %v3525 = vld [vmem:[#allocation6 + $0x3d8] sm:$0xff]
    %v3526 = vld [vmem:[#allocation6 + $0x3e0] sm:$0xff]
    %v3527 = vld [vmem:[#allocation6 + $0x3e8] sm:$0xff]
    %v3528 = vld [vmem:[#allocation6 + $0x3f0] sm:$0xff]
    %v3529 = vld [vmem:[#allocation6 + $0x3f8] sm:$0xff]
    %v3530 = vld [vmem:[#allocation6 + $0x400] sm:$0xff]
    %v3531 = vld [vmem:[#allocation6 + $0x408] sm:$0xff]
    %v3532 = vld [vmem:[#allocation6 + $0x410] sm:$0xff]
    %v3533 = vld [vmem:[#allocation6 + $0x418] sm:$0xff]
    %v3534 = vld [vmem:[#allocation6 + $0x420] sm:$0xff]
    %v3535 = vld [vmem:[#allocation6 + $0x428] sm:$0xff]
    %v3536 = vld [vmem:[#allocation6 + $0x430] sm:$0xff]
    %v3537 = vld [vmem:[#allocation6 + $0x438] sm:$0xff]
    %v3538 = vld [vmem:[#allocation6 + $0x440] sm:$0xff]
    %v3539 = vld [vmem:[#allocation6 + $0x448] sm:$0xff]
    %v3540 = vld [vmem:[#allocation6 + $0x450] sm:$0xff]
    %v3541 = vld [vmem:[#allocation6 + $0x458] sm:$0xff]
    %v3542 = vld [vmem:[#allocation6 + $0x460] sm:$0xff]
    %v3543 = vld [vmem:[#allocation6 + $0x468] sm:$0xff]
    %v3544 = vld [vmem:[#allocation6 + $0x470] sm:$0xff]
    %v3545 = vld [vmem:[#allocation6 + $0x478] sm:$0xff]
    %v3546 = vld [vmem:[#allocation6 + $0x480] sm:$0xff]
    %v3547 = vld [vmem:[#allocation6 + $0x488] sm:$0xff]
    %v3548 = vld [vmem:[#allocation6 + $0x490] sm:$0xff]
    %v3549 = vld [vmem:[#allocation6 + $0x498] sm:$0xff]
    %v3550 = vld [vmem:[#allocation6 + $0x4a0] sm:$0xff]
    %v3551 = vld [vmem:[#allocation6 + $0x4a8] sm:$0xff]
    %v3552 = vld [vmem:[#allocation6 + $0x4b0] sm:$0xff]
    %v3553 = vld [vmem:[#allocation6 + $0x4b8] sm:$0xff]
    %v3554 = vld [vmem:[#allocation6 + $0x4c0] sm:$0xff]
    %v3555 = vld [vmem:[#allocation6 + $0x4c8] sm:$0xff]
    %v3556 = vld [vmem:[#allocation6 + $0x4d0] sm:$0xff]
    %v3557 = vld [vmem:[#allocation6 + $0x4d8] sm:$0xff]
    %v3558 = vld [vmem:[#allocation6 + $0x4e0] sm:$0xff]
    %v3559 = vld [vmem:[#allocation6 + $0x4e8] sm:$0xff]
    %v3560 = vld [vmem:[#allocation6 + $0x4f0] sm:$0xff]
    %v3561 = vld [vmem:[#allocation6 + $0x4f8] sm:$0xff]
    %v3562 = vld [vmem:[#allocation6 + $0x500] sm:$0xff]
    %v3563 = vld [vmem:[#allocation6 + $0x508] sm:$0xff]
    %v3564 = vld [vmem:[#allocation6 + $0x510] sm:$0xff]
    %v3565 = vld [vmem:[#allocation6 + $0x518] sm:$0xff]
    %v3566 = vld [vmem:[#allocation6 + $0x520] sm:$0xff]
    %v3567 = vld [vmem:[#allocation6 + $0x528] sm:$0xff]
    %v3568 = vld [vmem:[#allocation6 + $0x530] sm:$0xff]
    %v3569 = vld [vmem:[#allocation6 + $0x538] sm:$0xff]
    %v3570 = vld [vmem:[#allocation6 + $0x540] sm:$0xff]
    %v3571 = vld [vmem:[#allocation6 + $0x548] sm:$0xff]
    %v3572 = vld [vmem:[#allocation6 + $0x550] sm:$0xff]
    %v3573 = vld [vmem:[#allocation6 + $0x558] sm:$0xff]
    %v3574 = vld [vmem:[#allocation6 + $0x560] sm:$0xff]
    %v3575 = vld [vmem:[#allocation6 + $0x568] sm:$0xff]
    %v3576 = vld [vmem:[#allocation6 + $0x570] sm:$0xff]
    %v3577 = vld [vmem:[#allocation6 + $0x578] sm:$0xff]
    %v3578 = vld [vmem:[#allocation6 + $0x580] sm:$0xff]
    %v3579 = vld [vmem:[#allocation6 + $0x588] sm:$0xff]
    %v3580 = vld [vmem:[#allocation6 + $0x590] sm:$0xff]
    %v3581 = vld [vmem:[#allocation6 + $0x598] sm:$0xff]
    %v3582 = vld [vmem:[#allocation6 + $0x5a0] sm:$0xff]
    %v3583 = vld [vmem:[#allocation6 + $0x5a8] sm:$0xff]
    %v3584 = vld [vmem:[#allocation6 + $0x5b0] sm:$0xff]
    %v3585 = vld [vmem:[#allocation6 + $0x5b8] sm:$0xff]
    %v3586 = vld [vmem:[#allocation6 + $0x5c0] sm:$0xff]
    %v3587 = vld [vmem:[#allocation6 + $0x5c8] sm:$0xff]
    %v3588 = vld [vmem:[#allocation6 + $0x5d0] sm:$0xff]
    %v3589 = vld [vmem:[#allocation6 + $0x5d8] sm:$0xff]
    %v3590 = vld [vmem:[#allocation6 + $0x5e0] sm:$0xff]
    %v3591 = vld [vmem:[#allocation6 + $0x5e8] sm:$0xff]
    %v3592 = vld [vmem:[#allocation6 + $0x5f0] sm:$0xff]
    %v3593 = vld [vmem:[#allocation6 + $0x5f8] sm:$0xff]
    %3594 = vmatprep.subr.mxu0 %v3493
    %3595 = vmatpush1.msra.mxu0 %v3492
    %3596 = vmatprep.subr.mxu0 %v3487
    %3597 = vmatpush1.msra.mxu0 %v3486
    %3598 = vmatprep.subr.mxu0 %v3481
    %3599 = vmatpush1.msra.mxu0 %v3480
    %3600 = vmatprep.subr.mxu0 %v3475
    %3601 = vmatpush1.msra.mxu0 %v3474
    %3602 = vmatprep.subr.mxu0 %v3469
    %3603 = vmatpush1.msra.mxu0 %v3468
    %3604 = vmatprep.subr.mxu0 %v3463
    %3605 = vmatpush1.msra.mxu0 %v3462
    %3606 = vmatprep.subr.mxu0 %v3457
    %3607 = vmatpush1.msra.mxu0 %v3456
    %3608 = vmatprep.subr.mxu0 %v3451
    %3609 = vmatpush1.msra.mxu0 %v3450
    %3610 = vmatprep.subr.mxu0 %v3445
    %3611 = vmatpush1.msra.mxu0 %v3444
    %3612 = vmatprep.subr.mxu0 %v3439
    %3613 = vmatpush1.msra.mxu0 %v3438
    %3614 = vmatprep.subr.mxu0 %v3433
    %3615 = vmatpush1.msra.mxu0 %v3432
    %3616 = vmatprep.subr.mxu0 %v3427
    %3617 = vmatpush1.msra.mxu0 %v3426
    %3618 = vmatprep.subr.mxu0 %v3421
    %3619 = vmatpush1.msra.mxu0 %v3420
    %3620 = vmatprep.subr.mxu0 %v3415
    %3621 = vmatpush1.msra.mxu0 %v3414
    %3622 = vmatprep.subr.mxu0 %v3409
    %3623 = vmatpush1.msra.mxu0 %v3408
    %3624 = vmatprep.subr.mxu0 %v3403
    %3625 = vmatpush1.msra.mxu0 %v3402
    %3626 = vmatprep.subr.mxu0 %v3589
    %3627 = vmatpush2.msra.mxu0 %v3588
    %3628 = vmatprep.subr.mxu0 %v3583
    %3629 = vmatpush2.msra.mxu0 %v3582
    %3630 = vmatprep.subr.mxu0 %v3577
    %3631 = vmatpush2.msra.mxu0 %v3576
    %3632 = vmatprep.subr.mxu0 %v3571
    %3633 = vmatpush2.msra.mxu0 %v3570
    %3634 = vmatprep.subr.mxu0 %v3565
    %3635 = vmatpush2.msra.mxu0 %v3564
    %3636 = vmatprep.subr.mxu0 %v3559
    %3637 = vmatpush2.msra.mxu0 %v3558
    %3638 = vmatprep.subr.mxu0 %v3553
    %3639 = vmatpush2.msra.mxu0 %v3552
    %3640 = vmatprep.subr.mxu0 %v3547
    %3641 = vmatpush2.msra.mxu0 %v3546
    %3642 = vmatprep.subr.mxu0 %v3541
    %3643 = vmatpush2.msra.mxu0 %v3540
    %3644 = vmatprep.subr.mxu0 %v3535
    %3645 = vmatpush2.msra.mxu0 %v3534
    %3646 = vmatprep.subr.mxu0 %v3529
    %3647 = vmatpush2.msra.mxu0 %v3528
    %3648 = vmatprep.subr.mxu0 %v3523
    %3649 = vmatpush2.msra.mxu0 %v3522
    %3650 = vmatprep.subr.mxu0 %v3517
    %3651 = vmatpush2.msra.mxu0 %v3516
    %3652 = vmatprep.subr.mxu0 %v3511
    %3653 = vmatpush2.msra.mxu0 %v3510
    %3654 = vmatprep.subr.mxu0 %v3505
    %3655 = vmatpush2.msra.mxu0 %v3504
    %3656 = vmatprep.subr.mxu0 %v3499
    %3657 = vmatpush2.msra.mxu0 %v3498
    %3658 = vmatprep.mubr.f32.mxu0 %v3390
    %3659 = vmatmul.mubr.f32.gmra.mxu0 %v3389
    %v3660 = vpop.f32.mrf.mxu0
    %v3661 = vadd.f32 0.0, %v3660
    %v3662 = vpop.f32.mrf.mxu0
    %v3663 = vadd.f32 0.0, %v3662
    %3664 = vdwg.mxu0
    %3665 = vmatprep.subr.mxu0 %v3495
    %3666 = vmatpush1.msra.mxu0 %v3494
    %3667 = vmatprep.subr.mxu0 %v3489
    %3668 = vmatpush1.msra.mxu0 %v3488
    %3669 = vmatprep.subr.mxu0 %v3483
    %3670 = vmatpush1.msra.mxu0 %v3482
    %3671 = vmatprep.subr.mxu0 %v3477
    %3672 = vmatpush1.msra.mxu0 %v3476
    %3673 = vmatprep.subr.mxu0 %v3471
    %3674 = vmatpush1.msra.mxu0 %v3470
    %3675 = vmatprep.subr.mxu0 %v3465
    %3676 = vmatpush1.msra.mxu0 %v3464
    %3677 = vmatprep.subr.mxu0 %v3459
    %3678 = vmatpush1.msra.mxu0 %v3458
    %3679 = vmatprep.subr.mxu0 %v3453
    %3680 = vmatpush1.msra.mxu0 %v3452
    %3681 = vmatprep.subr.mxu0 %v3447
    %3682 = vmatpush1.msra.mxu0 %v3446
    %3683 = vmatprep.subr.mxu0 %v3441
    %3684 = vmatpush1.msra.mxu0 %v3440
    %3685 = vmatprep.subr.mxu0 %v3435
    %3686 = vmatpush1.msra.mxu0 %v3434
    %3687 = vmatprep.subr.mxu0 %v3429
    %3688 = vmatpush1.msra.mxu0 %v3428
    %3689 = vmatprep.subr.mxu0 %v3423
    %3690 = vmatpush1.msra.mxu0 %v3422
    %3691 = vmatprep.subr.mxu0 %v3417
    %3692 = vmatpush1.msra.mxu0 %v3416
    %3693 = vmatprep.subr.mxu0 %v3411
    %3694 = vmatpush1.msra.mxu0 %v3410
    %3695 = vmatprep.subr.mxu0 %v3405
    %3696 = vmatpush1.msra.mxu0 %v3404
    %3697 = vmatprep.subr.mxu0 %v3591
    %3698 = vmatpush2.msra.mxu0 %v3590
    %3699 = vmatprep.subr.mxu0 %v3585
    %3700 = vmatpush2.msra.mxu0 %v3584
    %3701 = vmatprep.subr.mxu0 %v3579
    %3702 = vmatpush2.msra.mxu0 %v3578
    %3703 = vmatprep.subr.mxu0 %v3573
    %3704 = vmatpush2.msra.mxu0 %v3572
    %3705 = vmatprep.subr.mxu0 %v3567
    %3706 = vmatpush2.msra.mxu0 %v3566
    %3707 = vmatprep.subr.mxu0 %v3561
    %3708 = vmatpush2.msra.mxu0 %v3560
    %3709 = vmatprep.subr.mxu0 %v3555
    %3710 = vmatpush2.msra.mxu0 %v3554
    %3711 = vmatprep.subr.mxu0 %v3549
    %3712 = vmatpush2.msra.mxu0 %v3548
    %3713 = vmatprep.subr.mxu0 %v3543
    %3714 = vmatpush2.msra.mxu0 %v3542
    %3715 = vmatprep.subr.mxu0 %v3537
    %3716 = vmatpush2.msra.mxu0 %v3536
    %3717 = vmatprep.subr.mxu0 %v3531
    %3718 = vmatpush2.msra.mxu0 %v3530
    %3719 = vmatprep.subr.mxu0 %v3525
    %3720 = vmatpush2.msra.mxu0 %v3524
    %3721 = vmatprep.subr.mxu0 %v3519
    %3722 = vmatpush2.msra.mxu0 %v3518
    %3723 = vmatprep.subr.mxu0 %v3513
    %3724 = vmatpush2.msra.mxu0 %v3512
    %3725 = vmatprep.subr.mxu0 %v3507
    %3726 = vmatpush2.msra.mxu0 %v3506
    %3727 = vmatprep.subr.mxu0 %v3501
    %3728 = vmatpush2.msra.mxu0 %v3500
    %3729 = vmatprep.mubr.f32.mxu0 %v3390
    %3730 = vmatmul.mubr.f32.gmra.mxu0 %v3389
    %v3731 = vpop.f32.mrf.mxu0
    %v3732 = vadd.f32 0.0, %v3731
    %v3733 = vpop.f32.mrf.mxu0
    %v3734 = vadd.f32 0.0, %v3733
    %3735 = vdwg.mxu0
    %3736 = vmatprep.subr.mxu0 %v3497
    %3737 = vmatpush1.msra.mxu0 %v3496
    %3738 = vmatprep.subr.mxu0 %v3491
    %3739 = vmatpush1.msra.mxu0 %v3490
    %3740 = vmatprep.subr.mxu0 %v3485
    %3741 = vmatpush1.msra.mxu0 %v3484
    %3742 = vmatprep.subr.mxu0 %v3479
    %3743 = vmatpush1.msra.mxu0 %v3478
    %3744 = vmatprep.subr.mxu0 %v3473
    %3745 = vmatpush1.msra.mxu0 %v3472
    %3746 = vmatprep.subr.mxu0 %v3467
    %3747 = vmatpush1.msra.mxu0 %v3466
    %3748 = vmatprep.subr.mxu0 %v3461
    %3749 = vmatpush1.msra.mxu0 %v3460
    %3750 = vmatprep.subr.mxu0 %v3455
    %3751 = vmatpush1.msra.mxu0 %v3454
    %3752 = vmatprep.subr.mxu0 %v3449
    %3753 = vmatpush1.msra.mxu0 %v3448
    %3754 = vmatprep.subr.mxu0 %v3443
    %3755 = vmatpush1.msra.mxu0 %v3442
    %3756 = vmatprep.subr.mxu0 %v3437
    %3757 = vmatpush1.msra.mxu0 %v3436
    %3758 = vmatprep.subr.mxu0 %v3431
    %3759 = vmatpush1.msra.mxu0 %v3430
    %3760 = vmatprep.subr.mxu0 %v3425
    %3761 = vmatpush1.msra.mxu0 %v3424
    %3762 = vmatprep.subr.mxu0 %v3419
    %3763 = vmatpush1.msra.mxu0 %v3418
    %3764 = vmatprep.subr.mxu0 %v3413
    %3765 = vmatpush1.msra.mxu0 %v3412
    %3766 = vmatprep.subr.mxu0 %v3407
    %3767 = vmatpush1.msra.mxu0 %v3406
    %3768 = vmatprep.subr.mxu0 %v3593
    %3769 = vmatpush2.msra.mxu0 %v3592
    %3770 = vmatprep.subr.mxu0 %v3587
    %3771 = vmatpush2.msra.mxu0 %v3586
    %3772 = vmatprep.subr.mxu0 %v3581
    %3773 = vmatpush2.msra.mxu0 %v3580
    %3774 = vmatprep.subr.mxu0 %v3575
    %3775 = vmatpush2.msra.mxu0 %v3574
    %3776 = vmatprep.subr.mxu0 %v3569
    %3777 = vmatpush2.msra.mxu0 %v3568
    %3778 = vmatprep.subr.mxu0 %v3563
    %3779 = vmatpush2.msra.mxu0 %v3562
    %3780 = vmatprep.subr.mxu0 %v3557
    %3781 = vmatpush2.msra.mxu0 %v3556
    %3782 = vmatprep.subr.mxu0 %v3551
    %3783 = vmatpush2.msra.mxu0 %v3550
    %3784 = vmatprep.subr.mxu0 %v3545
    %3785 = vmatpush2.msra.mxu0 %v3544
    %3786 = vmatprep.subr.mxu0 %v3539
    %3787 = vmatpush2.msra.mxu0 %v3538
    %3788 = vmatprep.subr.mxu0 %v3533
    %3789 = vmatpush2.msra.mxu0 %v3532
    %3790 = vmatprep.subr.mxu0 %v3527
    %3791 = vmatpush2.msra.mxu0 %v3526
    %3792 = vmatprep.subr.mxu0 %v3521
    %3793 = vmatpush2.msra.mxu0 %v3520
    %3794 = vmatprep.subr.mxu0 %v3515
    %3795 = vmatpush2.msra.mxu0 %v3514
    %3796 = vmatprep.subr.mxu0 %v3509
    %3797 = vmatpush2.msra.mxu0 %v3508
    %3798 = vmatprep.subr.mxu0 %v3503
    %3799 = vmatpush2.msra.mxu0 %v3502
    %3800 = vmatprep.mubr.f32.mxu0 %v3390
    %3801 = vmatmul.mubr.f32.gmra.mxu0 %v3389
    %v3802 = vpop.f32.mrf.mxu0
    %v3803 = vadd.f32 0.0, %v3802
    %v3804 = vpop.f32.mrf.mxu0
    %v3805 = vadd.f32 0.0, %v3804
    %3806 = vdwg.mxu0
    %v3807 = vadd.f32 %v3396, %v3661
    %v3808 = vadd.f32 %v3397, %v3663
    %v3809 = vmul.f32 %v3807, 0.5
    %v3810 = vmul.f32 %v3808, 0.5
    %v3811 = vtanh.pop %v3809
    %v3812 = vtanh.pop %v3810
    %v3813 = vadd.f32 %v3811, 1.0
    %v3814 = vadd.f32 %v3812, 1.0
    %v3815 = vmul.f32 %v3813, 0.5
    %v3816 = vmul.f32 %v3814, 0.5
    %v3817 = vadd.f32 %v3398, %v3732
    %v3818 = vadd.f32 %v3399, %v3734
    %v3819 = vmul.f32 %v3817, 0.5
    %v3820 = vmul.f32 %v3818, 0.5
    %v3821 = vtanh.pop %v3819
    %v3822 = vtanh.pop %v3820
    %v3823 = vadd.f32 %v3821, 1.0
    %v3824 = vadd.f32 %v3822, 1.0
    %v3825 = vmul.f32 %v3823, 0.5
    %v3826 = vmul.f32 %v3824, 0.5
    %v3827 = vadd.f32 %v3803, %v650
    %v3828 = vadd.f32 %v3805, %v654
    %v3829 = vmul.f32 %v3815, %v3827
    %v3830 = vmul.f32 %v3816, %v3828
    %v3831 = vadd.f32 %v3400, %v3829
    %v3832 = vadd.f32 %v3401, %v3830
    %v3833 = vtanh.pop %v3831
    %v3834 = vtanh.pop %v3832
    %v3835 = vsub.f32 1.0, %v3825
    %v3836 = vsub.f32 1.0, %v3826
    %v3837 = vmul.f32 %v3835, %v3833
    %v3838 = vmul.f32 %v3836, %v3834
    %v3839 = vmul.f32 %v3825, %v3389
    %v3840 = vmul.f32 %v3826, %v3390
    %v3841 = vadd.f32 %v3837, %v3839
    %v3842 = vadd.f32 %v3838, %v3840
    %3843 = vst [vmem:[%s1571] sm:$0xff] %v3841
    %3844 = vst [vmem:[%s1567 + $0x8] sm:$0xff] %v3842
    %s3845 = smul.u32 7, 6
    %s3846 = smul.addr %s3845, 8
    %s3847 = scalar_lea.vmem [#allocation2], %s3846
    %v3848 = vld [vmem:[%s3847] sm:$0xff]
    %v3849 = vld [vmem:[%s3847 + $0x8] sm:$0xff]
    %v3850 = vld [vmem:[%s3847 + $0x10] sm:$0xff]
    %v3851 = vld [vmem:[%s3847 + $0x18] sm:$0xff]
    %v3852 = vld [vmem:[%s3847 + $0x20] sm:$0xff]
    %v3853 = vld [vmem:[%s3847 + $0x28] sm:$0xff]
    %v3854 = vld [vmem:[#allocation6] sm:$0xff]
    %v3855 = vld [vmem:[#allocation6 + $0x8] sm:$0xff]
    %v3856 = vld [vmem:[#allocation6 + $0x10] sm:$0xff]
    %v3857 = vld [vmem:[#allocation6 + $0x18] sm:$0xff]
    %v3858 = vld [vmem:[#allocation6 + $0x20] sm:$0xff]
    %v3859 = vld [vmem:[#allocation6 + $0x28] sm:$0xff]
    %v3860 = vld [vmem:[#allocation6 + $0x30] sm:$0xff]
    %v3861 = vld [vmem:[#allocation6 + $0x38] sm:$0xff]
    %v3862 = vld [vmem:[#allocation6 + $0x40] sm:$0xff]
    %v3863 = vld [vmem:[#allocation6 + $0x48] sm:$0xff]
    %v3864 = vld [vmem:[#allocation6 + $0x50] sm:$0xff]
    %v3865 = vld [vmem:[#allocation6 + $0x58] sm:$0xff]
    %v3866 = vld [vmem:[#allocation6 + $0x60] sm:$0xff]
    %v3867 = vld [vmem:[#allocation6 + $0x68] sm:$0xff]
    %v3868 = vld [vmem:[#allocation6 + $0x70] sm:$0xff]
    %v3869 = vld [vmem:[#allocation6 + $0x78] sm:$0xff]
    %v3870 = vld [vmem:[#allocation6 + $0x80] sm:$0xff]
    %v3871 = vld [vmem:[#allocation6 + $0x88] sm:$0xff]
    %v3872 = vld [vmem:[#allocation6 + $0x90] sm:$0xff]
    %v3873 = vld [vmem:[#allocation6 + $0x98] sm:$0xff]
    %v3874 = vld [vmem:[#allocation6 + $0xa0] sm:$0xff]
    %v3875 = vld [vmem:[#allocation6 + $0xa8] sm:$0xff]
    %v3876 = vld [vmem:[#allocation6 + $0xb0] sm:$0xff]
    %v3877 = vld [vmem:[#allocation6 + $0xb8] sm:$0xff]
    %v3878 = vld [vmem:[#allocation6 + $0xc0] sm:$0xff]
    %v3879 = vld [vmem:[#allocation6 + $0xc8] sm:$0xff]
    %v3880 = vld [vmem:[#allocation6 + $0xd0] sm:$0xff]
    %v3881 = vld [vmem:[#allocation6 + $0xd8] sm:$0xff]
    %v3882 = vld [vmem:[#allocation6 + $0xe0] sm:$0xff]
    %v3883 = vld [vmem:[#allocation6 + $0xe8] sm:$0xff]
    %v3884 = vld [vmem:[#allocation6 + $0xf0] sm:$0xff]
    %v3885 = vld [vmem:[#allocation6 + $0xf8] sm:$0xff]
    %v3886 = vld [vmem:[#allocation6 + $0x100] sm:$0xff]
    %v3887 = vld [vmem:[#allocation6 + $0x108] sm:$0xff]
    %v3888 = vld [vmem:[#allocation6 + $0x110] sm:$0xff]
    %v3889 = vld [vmem:[#allocation6 + $0x118] sm:$0xff]
    %v3890 = vld [vmem:[#allocation6 + $0x120] sm:$0xff]
    %v3891 = vld [vmem:[#allocation6 + $0x128] sm:$0xff]
    %v3892 = vld [vmem:[#allocation6 + $0x130] sm:$0xff]
    %v3893 = vld [vmem:[#allocation6 + $0x138] sm:$0xff]
    %v3894 = vld [vmem:[#allocation6 + $0x140] sm:$0xff]
    %v3895 = vld [vmem:[#allocation6 + $0x148] sm:$0xff]
    %v3896 = vld [vmem:[#allocation6 + $0x150] sm:$0xff]
    %v3897 = vld [vmem:[#allocation6 + $0x158] sm:$0xff]
    %v3898 = vld [vmem:[#allocation6 + $0x160] sm:$0xff]
    %v3899 = vld [vmem:[#allocation6 + $0x168] sm:$0xff]
    %v3900 = vld [vmem:[#allocation6 + $0x170] sm:$0xff]
    %v3901 = vld [vmem:[#allocation6 + $0x178] sm:$0xff]
    %v3902 = vld [vmem:[#allocation6 + $0x180] sm:$0xff]
    %v3903 = vld [vmem:[#allocation6 + $0x188] sm:$0xff]
    %v3904 = vld [vmem:[#allocation6 + $0x190] sm:$0xff]
    %v3905 = vld [vmem:[#allocation6 + $0x198] sm:$0xff]
    %v3906 = vld [vmem:[#allocation6 + $0x1a0] sm:$0xff]
    %v3907 = vld [vmem:[#allocation6 + $0x1a8] sm:$0xff]
    %v3908 = vld [vmem:[#allocation6 + $0x1b0] sm:$0xff]
    %v3909 = vld [vmem:[#allocation6 + $0x1b8] sm:$0xff]
    %v3910 = vld [vmem:[#allocation6 + $0x1c0] sm:$0xff]
    %v3911 = vld [vmem:[#allocation6 + $0x1c8] sm:$0xff]
    %v3912 = vld [vmem:[#allocation6 + $0x1d0] sm:$0xff]
    %v3913 = vld [vmem:[#allocation6 + $0x1d8] sm:$0xff]
    %v3914 = vld [vmem:[#allocation6 + $0x1e0] sm:$0xff]
    %v3915 = vld [vmem:[#allocation6 + $0x1e8] sm:$0xff]
    %v3916 = vld [vmem:[#allocation6 + $0x1f0] sm:$0xff]
    %v3917 = vld [vmem:[#allocation6 + $0x1f8] sm:$0xff]
    %v3918 = vld [vmem:[#allocation6 + $0x200] sm:$0xff]
    %v3919 = vld [vmem:[#allocation6 + $0x208] sm:$0xff]
    %v3920 = vld [vmem:[#allocation6 + $0x210] sm:$0xff]
    %v3921 = vld [vmem:[#allocation6 + $0x218] sm:$0xff]
    %v3922 = vld [vmem:[#allocation6 + $0x220] sm:$0xff]
    %v3923 = vld [vmem:[#allocation6 + $0x228] sm:$0xff]
    %v3924 = vld [vmem:[#allocation6 + $0x230] sm:$0xff]
    %v3925 = vld [vmem:[#allocation6 + $0x238] sm:$0xff]
    %v3926 = vld [vmem:[#allocation6 + $0x240] sm:$0xff]
    %v3927 = vld [vmem:[#allocation6 + $0x248] sm:$0xff]
    %v3928 = vld [vmem:[#allocation6 + $0x250] sm:$0xff]
    %v3929 = vld [vmem:[#allocation6 + $0x258] sm:$0xff]
    %v3930 = vld [vmem:[#allocation6 + $0x260] sm:$0xff]
    %v3931 = vld [vmem:[#allocation6 + $0x268] sm:$0xff]
    %v3932 = vld [vmem:[#allocation6 + $0x270] sm:$0xff]
    %v3933 = vld [vmem:[#allocation6 + $0x278] sm:$0xff]
    %v3934 = vld [vmem:[#allocation6 + $0x280] sm:$0xff]
    %v3935 = vld [vmem:[#allocation6 + $0x288] sm:$0xff]
    %v3936 = vld [vmem:[#allocation6 + $0x290] sm:$0xff]
    %v3937 = vld [vmem:[#allocation6 + $0x298] sm:$0xff]
    %v3938 = vld [vmem:[#allocation6 + $0x2a0] sm:$0xff]
    %v3939 = vld [vmem:[#allocation6 + $0x2a8] sm:$0xff]
    %v3940 = vld [vmem:[#allocation6 + $0x2b0] sm:$0xff]
    %v3941 = vld [vmem:[#allocation6 + $0x2b8] sm:$0xff]
    %v3942 = vld [vmem:[#allocation6 + $0x2c0] sm:$0xff]
    %v3943 = vld [vmem:[#allocation6 + $0x2c8] sm:$0xff]
    %v3944 = vld [vmem:[#allocation6 + $0x2d0] sm:$0xff]
    %v3945 = vld [vmem:[#allocation6 + $0x2d8] sm:$0xff]
    %v3946 = vld [vmem:[#allocation6 + $0x2e0] sm:$0xff]
    %v3947 = vld [vmem:[#allocation6 + $0x2e8] sm:$0xff]
    %v3948 = vld [vmem:[#allocation6 + $0x2f0] sm:$0xff]
    %v3949 = vld [vmem:[#allocation6 + $0x2f8] sm:$0xff]
    %v3950 = vld [vmem:[#allocation6 + $0x300] sm:$0xff]
    %v3951 = vld [vmem:[#allocation6 + $0x308] sm:$0xff]
    %v3952 = vld [vmem:[#allocation6 + $0x310] sm:$0xff]
    %v3953 = vld [vmem:[#allocation6 + $0x318] sm:$0xff]
    %v3954 = vld [vmem:[#allocation6 + $0x320] sm:$0xff]
    %v3955 = vld [vmem:[#allocation6 + $0x328] sm:$0xff]
    %v3956 = vld [vmem:[#allocation6 + $0x330] sm:$0xff]
    %v3957 = vld [vmem:[#allocation6 + $0x338] sm:$0xff]
    %v3958 = vld [vmem:[#allocation6 + $0x340] sm:$0xff]
    %v3959 = vld [vmem:[#allocation6 + $0x348] sm:$0xff]
    %v3960 = vld [vmem:[#allocation6 + $0x350] sm:$0xff]
    %v3961 = vld [vmem:[#allocation6 + $0x358] sm:$0xff]
    %v3962 = vld [vmem:[#allocation6 + $0x360] sm:$0xff]
    %v3963 = vld [vmem:[#allocation6 + $0x368] sm:$0xff]
    %v3964 = vld [vmem:[#allocation6 + $0x370] sm:$0xff]
    %v3965 = vld [vmem:[#allocation6 + $0x378] sm:$0xff]
    %v3966 = vld [vmem:[#allocation6 + $0x380] sm:$0xff]
    %v3967 = vld [vmem:[#allocation6 + $0x388] sm:$0xff]
    %v3968 = vld [vmem:[#allocation6 + $0x390] sm:$0xff]
    %v3969 = vld [vmem:[#allocation6 + $0x398] sm:$0xff]
    %v3970 = vld [vmem:[#allocation6 + $0x3a0] sm:$0xff]
    %v3971 = vld [vmem:[#allocation6 + $0x3a8] sm:$0xff]
    %v3972 = vld [vmem:[#allocation6 + $0x3b0] sm:$0xff]
    %v3973 = vld [vmem:[#allocation6 + $0x3b8] sm:$0xff]
    %v3974 = vld [vmem:[#allocation6 + $0x3c0] sm:$0xff]
    %v3975 = vld [vmem:[#allocation6 + $0x3c8] sm:$0xff]
    %v3976 = vld [vmem:[#allocation6 + $0x3d0] sm:$0xff]
    %v3977 = vld [vmem:[#allocation6 + $0x3d8] sm:$0xff]
    %v3978 = vld [vmem:[#allocation6 + $0x3e0] sm:$0xff]
    %v3979 = vld [vmem:[#allocation6 + $0x3e8] sm:$0xff]
    %v3980 = vld [vmem:[#allocation6 + $0x3f0] sm:$0xff]
    %v3981 = vld [vmem:[#allocation6 + $0x3f8] sm:$0xff]
    %v3982 = vld [vmem:[#allocation6 + $0x400] sm:$0xff]
    %v3983 = vld [vmem:[#allocation6 + $0x408] sm:$0xff]
    %v3984 = vld [vmem:[#allocation6 + $0x410] sm:$0xff]
    %v3985 = vld [vmem:[#allocation6 + $0x418] sm:$0xff]
    %v3986 = vld [vmem:[#allocation6 + $0x420] sm:$0xff]
    %v3987 = vld [vmem:[#allocation6 + $0x428] sm:$0xff]
    %v3988 = vld [vmem:[#allocation6 + $0x430] sm:$0xff]
    %v3989 = vld [vmem:[#allocation6 + $0x438] sm:$0xff]
    %v3990 = vld [vmem:[#allocation6 + $0x440] sm:$0xff]
    %v3991 = vld [vmem:[#allocation6 + $0x448] sm:$0xff]
    %v3992 = vld [vmem:[#allocation6 + $0x450] sm:$0xff]
    %v3993 = vld [vmem:[#allocation6 + $0x458] sm:$0xff]
    %v3994 = vld [vmem:[#allocation6 + $0x460] sm:$0xff]
    %v3995 = vld [vmem:[#allocation6 + $0x468] sm:$0xff]
    %v3996 = vld [vmem:[#allocation6 + $0x470] sm:$0xff]
    %v3997 = vld [vmem:[#allocation6 + $0x478] sm:$0xff]
    %v3998 = vld [vmem:[#allocation6 + $0x480] sm:$0xff]
    %v3999 = vld [vmem:[#allocation6 + $0x488] sm:$0xff]
    %v4000 = vld [vmem:[#allocation6 + $0x490] sm:$0xff]
    %v4001 = vld [vmem:[#allocation6 + $0x498] sm:$0xff]
    %v4002 = vld [vmem:[#allocation6 + $0x4a0] sm:$0xff]
    %v4003 = vld [vmem:[#allocation6 + $0x4a8] sm:$0xff]
    %v4004 = vld [vmem:[#allocation6 + $0x4b0] sm:$0xff]
    %v4005 = vld [vmem:[#allocation6 + $0x4b8] sm:$0xff]
    %v4006 = vld [vmem:[#allocation6 + $0x4c0] sm:$0xff]
    %v4007 = vld [vmem:[#allocation6 + $0x4c8] sm:$0xff]
    %v4008 = vld [vmem:[#allocation6 + $0x4d0] sm:$0xff]
    %v4009 = vld [vmem:[#allocation6 + $0x4d8] sm:$0xff]
    %v4010 = vld [vmem:[#allocation6 + $0x4e0] sm:$0xff]
    %v4011 = vld [vmem:[#allocation6 + $0x4e8] sm:$0xff]
    %v4012 = vld [vmem:[#allocation6 + $0x4f0] sm:$0xff]
    %v4013 = vld [vmem:[#allocation6 + $0x4f8] sm:$0xff]
    %v4014 = vld [vmem:[#allocation6 + $0x500] sm:$0xff]
    %v4015 = vld [vmem:[#allocation6 + $0x508] sm:$0xff]
    %v4016 = vld [vmem:[#allocation6 + $0x510] sm:$0xff]
    %v4017 = vld [vmem:[#allocation6 + $0x518] sm:$0xff]
    %v4018 = vld [vmem:[#allocation6 + $0x520] sm:$0xff]
    %v4019 = vld [vmem:[#allocation6 + $0x528] sm:$0xff]
    %v4020 = vld [vmem:[#allocation6 + $0x530] sm:$0xff]
    %v4021 = vld [vmem:[#allocation6 + $0x538] sm:$0xff]
    %v4022 = vld [vmem:[#allocation6 + $0x540] sm:$0xff]
    %v4023 = vld [vmem:[#allocation6 + $0x548] sm:$0xff]
    %v4024 = vld [vmem:[#allocation6 + $0x550] sm:$0xff]
    %v4025 = vld [vmem:[#allocation6 + $0x558] sm:$0xff]
    %v4026 = vld [vmem:[#allocation6 + $0x560] sm:$0xff]
    %v4027 = vld [vmem:[#allocation6 + $0x568] sm:$0xff]
    %v4028 = vld [vmem:[#allocation6 + $0x570] sm:$0xff]
    %v4029 = vld [vmem:[#allocation6 + $0x578] sm:$0xff]
    %v4030 = vld [vmem:[#allocation6 + $0x580] sm:$0xff]
    %v4031 = vld [vmem:[#allocation6 + $0x588] sm:$0xff]
    %v4032 = vld [vmem:[#allocation6 + $0x590] sm:$0xff]
    %v4033 = vld [vmem:[#allocation6 + $0x598] sm:$0xff]
    %v4034 = vld [vmem:[#allocation6 + $0x5a0] sm:$0xff]
    %v4035 = vld [vmem:[#allocation6 + $0x5a8] sm:$0xff]
    %v4036 = vld [vmem:[#allocation6 + $0x5b0] sm:$0xff]
    %v4037 = vld [vmem:[#allocation6 + $0x5b8] sm:$0xff]
    %v4038 = vld [vmem:[#allocation6 + $0x5c0] sm:$0xff]
    %v4039 = vld [vmem:[#allocation6 + $0x5c8] sm:$0xff]
    %v4040 = vld [vmem:[#allocation6 + $0x5d0] sm:$0xff]
    %v4041 = vld [vmem:[#allocation6 + $0x5d8] sm:$0xff]
    %v4042 = vld [vmem:[#allocation6 + $0x5e0] sm:$0xff]
    %v4043 = vld [vmem:[#allocation6 + $0x5e8] sm:$0xff]
    %v4044 = vld [vmem:[#allocation6 + $0x5f0] sm:$0xff]
    %v4045 = vld [vmem:[#allocation6 + $0x5f8] sm:$0xff]
    %4046 = vmatprep.subr.mxu0 %v3945
    %4047 = vmatpush1.msra.mxu0 %v3944
    %4048 = vmatprep.subr.mxu0 %v3939
    %4049 = vmatpush1.msra.mxu0 %v3938
    %4050 = vmatprep.subr.mxu0 %v3933
    %4051 = vmatpush1.msra.mxu0 %v3932
    %4052 = vmatprep.subr.mxu0 %v3927
    %4053 = vmatpush1.msra.mxu0 %v3926
    %4054 = vmatprep.subr.mxu0 %v3921
    %4055 = vmatpush1.msra.mxu0 %v3920
    %4056 = vmatprep.subr.mxu0 %v3915
    %4057 = vmatpush1.msra.mxu0 %v3914
    %4058 = vmatprep.subr.mxu0 %v3909
    %4059 = vmatpush1.msra.mxu0 %v3908
    %4060 = vmatprep.subr.mxu0 %v3903
    %4061 = vmatpush1.msra.mxu0 %v3902
    %4062 = vmatprep.subr.mxu0 %v3897
    %4063 = vmatpush1.msra.mxu0 %v3896
    %4064 = vmatprep.subr.mxu0 %v3891
    %4065 = vmatpush1.msra.mxu0 %v3890
    %4066 = vmatprep.subr.mxu0 %v3885
    %4067 = vmatpush1.msra.mxu0 %v3884
    %4068 = vmatprep.subr.mxu0 %v3879
    %4069 = vmatpush1.msra.mxu0 %v3878
    %4070 = vmatprep.subr.mxu0 %v3873
    %4071 = vmatpush1.msra.mxu0 %v3872
    %4072 = vmatprep.subr.mxu0 %v3867
    %4073 = vmatpush1.msra.mxu0 %v3866
    %4074 = vmatprep.subr.mxu0 %v3861
    %4075 = vmatpush1.msra.mxu0 %v3860
    %4076 = vmatprep.subr.mxu0 %v3855
    %4077 = vmatpush1.msra.mxu0 %v3854
    %4078 = vmatprep.subr.mxu0 %v4041
    %4079 = vmatpush2.msra.mxu0 %v4040
    %4080 = vmatprep.subr.mxu0 %v4035
    %4081 = vmatpush2.msra.mxu0 %v4034
    %4082 = vmatprep.subr.mxu0 %v4029
    %4083 = vmatpush2.msra.mxu0 %v4028
    %4084 = vmatprep.subr.mxu0 %v4023
    %4085 = vmatpush2.msra.mxu0 %v4022
    %4086 = vmatprep.subr.mxu0 %v4017
    %4087 = vmatpush2.msra.mxu0 %v4016
    %4088 = vmatprep.subr.mxu0 %v4011
    %4089 = vmatpush2.msra.mxu0 %v4010
    %4090 = vmatprep.subr.mxu0 %v4005
    %4091 = vmatpush2.msra.mxu0 %v4004
    %4092 = vmatprep.subr.mxu0 %v3999
    %4093 = vmatpush2.msra.mxu0 %v3998
    %4094 = vmatprep.subr.mxu0 %v3993
    %4095 = vmatpush2.msra.mxu0 %v3992
    %4096 = vmatprep.subr.mxu0 %v3987
    %4097 = vmatpush2.msra.mxu0 %v3986
    %4098 = vmatprep.subr.mxu0 %v3981
    %4099 = vmatpush2.msra.mxu0 %v3980
    %4100 = vmatprep.subr.mxu0 %v3975
    %4101 = vmatpush2.msra.mxu0 %v3974
    %4102 = vmatprep.subr.mxu0 %v3969
    %4103 = vmatpush2.msra.mxu0 %v3968
    %4104 = vmatprep.subr.mxu0 %v3963
    %4105 = vmatpush2.msra.mxu0 %v3962
    %4106 = vmatprep.subr.mxu0 %v3957
    %4107 = vmatpush2.msra.mxu0 %v3956
    %4108 = vmatprep.subr.mxu0 %v3951
    %4109 = vmatpush2.msra.mxu0 %v3950
    %4110 = vmatprep.mubr.f32.mxu0 %v3842
    %4111 = vmatmul.mubr.f32.gmra.mxu0 %v3841
    %v4112 = vpop.f32.mrf.mxu0
    %v4113 = vadd.f32 0.0, %v4112
    %v4114 = vpop.f32.mrf.mxu0
    %v4115 = vadd.f32 0.0, %v4114
    %4116 = vdwg.mxu0
    %4117 = vmatprep.subr.mxu0 %v3947
    %4118 = vmatpush1.msra.mxu0 %v3946
    %4119 = vmatprep.subr.mxu0 %v3941
    %4120 = vmatpush1.msra.mxu0 %v3940
    %4121 = vmatprep.subr.mxu0 %v3935
    %4122 = vmatpush1.msra.mxu0 %v3934
    %4123 = vmatprep.subr.mxu0 %v3929
    %4124 = vmatpush1.msra.mxu0 %v3928
    %4125 = vmatprep.subr.mxu0 %v3923
    %4126 = vmatpush1.msra.mxu0 %v3922
    %4127 = vmatprep.subr.mxu0 %v3917
    %4128 = vmatpush1.msra.mxu0 %v3916
    %4129 = vmatprep.subr.mxu0 %v3911
    %4130 = vmatpush1.msra.mxu0 %v3910
    %4131 = vmatprep.subr.mxu0 %v3905
    %4132 = vmatpush1.msra.mxu0 %v3904
    %4133 = vmatprep.subr.mxu0 %v3899
    %4134 = vmatpush1.msra.mxu0 %v3898
    %4135 = vmatprep.subr.mxu0 %v3893
    %4136 = vmatpush1.msra.mxu0 %v3892
    %4137 = vmatprep.subr.mxu0 %v3887
    %4138 = vmatpush1.msra.mxu0 %v3886
    %4139 = vmatprep.subr.mxu0 %v3881
    %4140 = vmatpush1.msra.mxu0 %v3880
    %4141 = vmatprep.subr.mxu0 %v3875
    %4142 = vmatpush1.msra.mxu0 %v3874
    %4143 = vmatprep.subr.mxu0 %v3869
    %4144 = vmatpush1.msra.mxu0 %v3868
    %4145 = vmatprep.subr.mxu0 %v3863
    %4146 = vmatpush1.msra.mxu0 %v3862
    %4147 = vmatprep.subr.mxu0 %v3857
    %4148 = vmatpush1.msra.mxu0 %v3856
    %4149 = vmatprep.subr.mxu0 %v4043
    %4150 = vmatpush2.msra.mxu0 %v4042
    %4151 = vmatprep.subr.mxu0 %v4037
    %4152 = vmatpush2.msra.mxu0 %v4036
    %4153 = vmatprep.subr.mxu0 %v4031
    %4154 = vmatpush2.msra.mxu0 %v4030
    %4155 = vmatprep.subr.mxu0 %v4025
    %4156 = vmatpush2.msra.mxu0 %v4024
    %4157 = vmatprep.subr.mxu0 %v4019
    %4158 = vmatpush2.msra.mxu0 %v4018
    %4159 = vmatprep.subr.mxu0 %v4013
    %4160 = vmatpush2.msra.mxu0 %v4012
    %4161 = vmatprep.subr.mxu0 %v4007
    %4162 = vmatpush2.msra.mxu0 %v4006
    %4163 = vmatprep.subr.mxu0 %v4001
    %4164 = vmatpush2.msra.mxu0 %v4000
    %4165 = vmatprep.subr.mxu0 %v3995
    %4166 = vmatpush2.msra.mxu0 %v3994
    %4167 = vmatprep.subr.mxu0 %v3989
    %4168 = vmatpush2.msra.mxu0 %v3988
    %4169 = vmatprep.subr.mxu0 %v3983
    %4170 = vmatpush2.msra.mxu0 %v3982
    %4171 = vmatprep.subr.mxu0 %v3977
    %4172 = vmatpush2.msra.mxu0 %v3976
    %4173 = vmatprep.subr.mxu0 %v3971
    %4174 = vmatpush2.msra.mxu0 %v3970
    %4175 = vmatprep.subr.mxu0 %v3965
    %4176 = vmatpush2.msra.mxu0 %v3964
    %4177 = vmatprep.subr.mxu0 %v3959
    %4178 = vmatpush2.msra.mxu0 %v3958
    %4179 = vmatprep.subr.mxu0 %v3953
    %4180 = vmatpush2.msra.mxu0 %v3952
    %4181 = vmatprep.mubr.f32.mxu0 %v3842
    %4182 = vmatmul.mubr.f32.gmra.mxu0 %v3841
    %v4183 = vpop.f32.mrf.mxu0
    %v4184 = vadd.f32 0.0, %v4183
    %v4185 = vpop.f32.mrf.mxu0
    %v4186 = vadd.f32 0.0, %v4185
    %4187 = vdwg.mxu0
    %4188 = vmatprep.subr.mxu0 %v3949
    %4189 = vmatpush1.msra.mxu0 %v3948
    %4190 = vmatprep.subr.mxu0 %v3943
    %4191 = vmatpush1.msra.mxu0 %v3942
    %4192 = vmatprep.subr.mxu0 %v3937
    %4193 = vmatpush1.msra.mxu0 %v3936
    %4194 = vmatprep.subr.mxu0 %v3931
    %4195 = vmatpush1.msra.mxu0 %v3930
    %4196 = vmatprep.subr.mxu0 %v3925
    %4197 = vmatpush1.msra.mxu0 %v3924
    %4198 = vmatprep.subr.mxu0 %v3919
    %4199 = vmatpush1.msra.mxu0 %v3918
    %4200 = vmatprep.subr.mxu0 %v3913
    %4201 = vmatpush1.msra.mxu0 %v3912
    %4202 = vmatprep.subr.mxu0 %v3907
    %4203 = vmatpush1.msra.mxu0 %v3906
    %4204 = vmatprep.subr.mxu0 %v3901
    %4205 = vmatpush1.msra.mxu0 %v3900
    %4206 = vmatprep.subr.mxu0 %v3895
    %4207 = vmatpush1.msra.mxu0 %v3894
    %4208 = vmatprep.subr.mxu0 %v3889
    %4209 = vmatpush1.msra.mxu0 %v3888
    %4210 = vmatprep.subr.mxu0 %v3883
    %4211 = vmatpush1.msra.mxu0 %v3882
    %4212 = vmatprep.subr.mxu0 %v3877
    %4213 = vmatpush1.msra.mxu0 %v3876
    %4214 = vmatprep.subr.mxu0 %v3871
    %4215 = vmatpush1.msra.mxu0 %v3870
    %4216 = vmatprep.subr.mxu0 %v3865
    %4217 = vmatpush1.msra.mxu0 %v3864
    %4218 = vmatprep.subr.mxu0 %v3859
    %4219 = vmatpush1.msra.mxu0 %v3858
    %4220 = vmatprep.subr.mxu0 %v4045
    %4221 = vmatpush2.msra.mxu0 %v4044
    %4222 = vmatprep.subr.mxu0 %v4039
    %4223 = vmatpush2.msra.mxu0 %v4038
    %4224 = vmatprep.subr.mxu0 %v4033
    %4225 = vmatpush2.msra.mxu0 %v4032
    %4226 = vmatprep.subr.mxu0 %v4027
    %4227 = vmatpush2.msra.mxu0 %v4026
    %4228 = vmatprep.subr.mxu0 %v4021
    %4229 = vmatpush2.msra.mxu0 %v4020
    %4230 = vmatprep.subr.mxu0 %v4015
    %4231 = vmatpush2.msra.mxu0 %v4014
    %4232 = vmatprep.subr.mxu0 %v4009
    %4233 = vmatpush2.msra.mxu0 %v4008
    %4234 = vmatprep.subr.mxu0 %v4003
    %4235 = vmatpush2.msra.mxu0 %v4002
    %4236 = vmatprep.subr.mxu0 %v3997
    %4237 = vmatpush2.msra.mxu0 %v3996
    %4238 = vmatprep.subr.mxu0 %v3991
    %4239 = vmatpush2.msra.mxu0 %v3990
    %4240 = vmatprep.subr.mxu0 %v3985
    %4241 = vmatpush2.msra.mxu0 %v3984
    %4242 = vmatprep.subr.mxu0 %v3979
    %4243 = vmatpush2.msra.mxu0 %v3978
    %4244 = vmatprep.subr.mxu0 %v3973
    %4245 = vmatpush2.msra.mxu0 %v3972
    %4246 = vmatprep.subr.mxu0 %v3967
    %4247 = vmatpush2.msra.mxu0 %v3966
    %4248 = vmatprep.subr.mxu0 %v3961
    %4249 = vmatpush2.msra.mxu0 %v3960
    %4250 = vmatprep.subr.mxu0 %v3955
    %4251 = vmatpush2.msra.mxu0 %v3954
    %4252 = vmatprep.mubr.f32.mxu0 %v3842
    %4253 = vmatmul.mubr.f32.gmra.mxu0 %v3841
    %v4254 = vpop.f32.mrf.mxu0
    %v4255 = vadd.f32 0.0, %v4254
    %v4256 = vpop.f32.mrf.mxu0
    %v4257 = vadd.f32 0.0, %v4256
    %4258 = vdwg.mxu0
    %v4259 = vadd.f32 %v3848, %v4113
    %v4260 = vadd.f32 %v3849, %v4115
    %v4261 = vmul.f32 %v4259, 0.5
    %v4262 = vmul.f32 %v4260, 0.5
    %v4263 = vtanh.pop %v4261
    %v4264 = vtanh.pop %v4262
    %v4265 = vadd.f32 %v4263, 1.0
    %v4266 = vadd.f32 %v4264, 1.0
    %v4267 = vmul.f32 %v4265, 0.5
    %v4268 = vmul.f32 %v4266, 0.5
    %v4269 = vadd.f32 %v3850, %v4184
    %v4270 = vadd.f32 %v3851, %v4186
    %v4271 = vmul.f32 %v4269, 0.5
    %v4272 = vmul.f32 %v4270, 0.5
    %v4273 = vtanh.pop %v4271
    %v4274 = vtanh.pop %v4272
    %v4275 = vadd.f32 %v4273, 1.0
    %v4276 = vadd.f32 %v4274, 1.0
    %v4277 = vmul.f32 %v4275, 0.5
    %v4278 = vmul.f32 %v4276, 0.5
    %v4279 = vadd.f32 %v4255, %v650
    %v4280 = vadd.f32 %v4257, %v654
    %v4281 = vmul.f32 %v4267, %v4279
    %v4282 = vmul.f32 %v4268, %v4280
    %v4283 = vadd.f32 %v3852, %v4281
    %v4284 = vadd.f32 %v3853, %v4282
    %v4285 = vtanh.pop %v4283
    %v4286 = vtanh.pop %v4284
    %v4287 = vsub.f32 1.0, %v4277
    %v4288 = vsub.f32 1.0, %v4278
    %v4289 = vmul.f32 %v4287, %v4285
    %v4290 = vmul.f32 %v4288, %v4286
    %v4291 = vmul.f32 %v4277, %v3841
    %v4292 = vmul.f32 %v4278, %v3842
    %v4293 = vadd.f32 %v4289, %v4291
    %v4294 = vadd.f32 %v4290, %v4292
    %4295 = vst [vmem:[%s1113] sm:$0xff] %v4293
    %4296 = vst [vmem:[%s1109 + $0x8] sm:$0xff] %v4294
    %v4297 = vld [vmem:[#allocation8] sm:$0xff]
    %v4298 = vld [vmem:[#allocation8 + $0x8] sm:$0xff]
    %v4299 = vld [vmem:[#allocation8 + $0x10] sm:$0xff]
    %v4300 = vld [vmem:[#allocation8 + $0x18] sm:$0xff]
    %v4301 = vld [vmem:[#allocation8 + $0x20] sm:$0xff]
    %v4302 = vld [vmem:[#allocation8 + $0x28] sm:$0xff]
    %v4303 = vld [vmem:[#allocation8 + $0x30] sm:$0xff]
    %v4304 = vld [vmem:[#allocation8 + $0x38] sm:$0xff]
    %v4305 = vld [vmem:[#allocation8 + $0x40] sm:$0xff]
    %v4306 = vld [vmem:[#allocation8 + $0x48] sm:$0xff]
    %v4307 = vld [vmem:[#allocation8 + $0x50] sm:$0xff]
    %v4308 = vld [vmem:[#allocation8 + $0x58] sm:$0xff]
    %v4309 = vld [vmem:[#allocation8 + $0x60] sm:$0xff]
    %v4310 = vld [vmem:[#allocation8 + $0x68] sm:$0xff]
    %v4311 = vld [vmem:[#allocation8 + $0x70] sm:$0xff]
    %v4312 = vld [vmem:[#allocation8 + $0x78] sm:$0xff]
    %v4313 = vld [vmem:[#allocation8 + $0x80] sm:$0xff]
    %v4314 = vld [vmem:[#allocation8 + $0x88] sm:$0xff]
    %v4315 = vld [vmem:[#allocation8 + $0x90] sm:$0xff]
    %v4316 = vld [vmem:[#allocation8 + $0x98] sm:$0xff]
    %v4317 = vld [vmem:[#allocation8 + $0xa0] sm:$0xff]
    %v4318 = vld [vmem:[#allocation8 + $0xa8] sm:$0xff]
    %v4319 = vld [vmem:[#allocation8 + $0xb0] sm:$0xff]
    %v4320 = vld [vmem:[#allocation8 + $0xb8] sm:$0xff]
    %v4321 = vld [vmem:[#allocation8 + $0xc0] sm:$0xff]
    %v4322 = vld [vmem:[#allocation8 + $0xc8] sm:$0xff]
    %v4323 = vld [vmem:[#allocation8 + $0xd0] sm:$0xff]
    %v4324 = vld [vmem:[#allocation8 + $0xd8] sm:$0xff]
    %v4325 = vld [vmem:[#allocation8 + $0xe0] sm:$0xff]
    %v4326 = vld [vmem:[#allocation8 + $0xe8] sm:$0xff]
    %v4327 = vld [vmem:[#allocation8 + $0xf0] sm:$0xff]
    %v4328 = vld [vmem:[#allocation8 + $0xf8] sm:$0xff]
    %v4329 = vld [vmem:[%s6] sm:$0x1]
    %v4331 = vlaneseq
    %v4332 = vshrl.u32 %v4331, 7
    %v4333 = vsub.s32 0, %v4332
    %v4334 = vrot.slane %v4329, %v4333
    %4336 = vmatprep.subr.mxu0 0.0
    %4337 = vmatpush1.msra.mxu0 %v4312
    %4338 = vmatprep.subr.mxu0 0.0
    %4339 = vmatpush1.msra.mxu0 %v4311
    %4340 = vmatprep.subr.mxu0 0.0
    %4341 = vmatpush1.msra.mxu0 %v4310
    %4342 = vmatprep.subr.mxu0 0.0
    %4343 = vmatpush1.msra.mxu0 %v4309
    %4344 = vmatprep.subr.mxu0 0.0
    %4345 = vmatpush1.msra.mxu0 %v4308
    %4346 = vmatprep.subr.mxu0 0.0
    %4347 = vmatpush1.msra.mxu0 %v4307
    %4348 = vmatprep.subr.mxu0 0.0
    %4349 = vmatpush1.msra.mxu0 %v4306
    %4350 = vmatprep.subr.mxu0 0.0
    %4351 = vmatpush1.msra.mxu0 %v4305
    %4352 = vmatprep.subr.mxu0 0.0
    %4353 = vmatpush1.msra.mxu0 %v4304
    %4354 = vmatprep.subr.mxu0 0.0
    %4355 = vmatpush1.msra.mxu0 %v4303
    %4356 = vmatprep.subr.mxu0 0.0
    %4357 = vmatpush1.msra.mxu0 %v4302
    %4358 = vmatprep.subr.mxu0 0.0
    %4359 = vmatpush1.msra.mxu0 %v4301
    %4360 = vmatprep.subr.mxu0 0.0
    %4361 = vmatpush1.msra.mxu0 %v4300
    %4362 = vmatprep.subr.mxu0 0.0
    %4363 = vmatpush1.msra.mxu0 %v4299
    %4364 = vmatprep.subr.mxu0 0.0
    %4365 = vmatpush1.msra.mxu0 %v4298
    %4366 = vmatprep.subr.mxu0 0.0
    %4367 = vmatpush1.msra.mxu0 %v4297
    %4368 = vmatprep.subr.mxu0 0.0
    %4369 = vmatpush2.msra.mxu0 %v4328
    %4370 = vmatprep.subr.mxu0 0.0
    %4371 = vmatpush2.msra.mxu0 %v4327
    %4372 = vmatprep.subr.mxu0 0.0
    %4373 = vmatpush2.msra.mxu0 %v4326
    %4374 = vmatprep.subr.mxu0 0.0
    %4375 = vmatpush2.msra.mxu0 %v4325
    %4376 = vmatprep.subr.mxu0 0.0
    %4377 = vmatpush2.msra.mxu0 %v4324
    %4378 = vmatprep.subr.mxu0 0.0
    %4379 = vmatpush2.msra.mxu0 %v4323
    %4380 = vmatprep.subr.mxu0 0.0
    %4381 = vmatpush2.msra.mxu0 %v4322
    %4382 = vmatprep.subr.mxu0 0.0
    %4383 = vmatpush2.msra.mxu0 %v4321
    %4384 = vmatprep.subr.mxu0 0.0
    %4385 = vmatpush2.msra.mxu0 %v4320
    %4386 = vmatprep.subr.mxu0 0.0
    %4387 = vmatpush2.msra.mxu0 %v4319
    %4388 = vmatprep.subr.mxu0 0.0
    %4389 = vmatpush2.msra.mxu0 %v4318
    %4390 = vmatprep.subr.mxu0 0.0
    %4391 = vmatpush2.msra.mxu0 %v4317
    %4392 = vmatprep.subr.mxu0 0.0
    %4393 = vmatpush2.msra.mxu0 %v4316
    %4394 = vmatprep.subr.mxu0 0.0
    %4395 = vmatpush2.msra.mxu0 %v4315
    %4396 = vmatprep.subr.mxu0 0.0
    %4397 = vmatpush2.msra.mxu0 %v4314
    %4398 = vmatprep.subr.mxu0 0.0
    %4399 = vmatpush2.msra.mxu0 %v4313
    %4400 = vmatprep.mubr.f32.mxu0 %v4294
    %4401 = vmatmul.mubr.f32.gmra.mxu0 %v4293
    %v4402 = vpop.f32.mrf.mxu0
    %v4403 = vadd.f32 %v4334, %v4402
    %v4404 = vpop.f32.mrf.mxu0
    %4405 = vdwg.mxu0
    %v4406 = vtanh.pop %v4403
    %4407 = vst [vmem:[#allocation10] sm:$0xff] %v4406
    // Predicated region
    $region42: #{tpu_custom_call.1} parent=1 // pred_check
      _
    $region43: #{tpu_custom_call.1} parent=1 // pred_check_branch
      %4409 = sbr.rel (0) target = $region45
    $region44: #{tpu_custom_call.1} parent=1 // pred_region
      %s4411 = ssub.s32 2048, 2048
      %4412 = vsyncadd [#allocation5], %s4411
      %s4413 = sshll.u32 [#allocation9], 4
      %s4414 = int_to_ptr.vmem [resolvable:$true] %s4413
      %4419 = dma.vmem_to_hbm [thread:$0]  %s4414, 2048, %s7, [#allocation5], 256, 256, 16
    $region45: #{tpu_custom_call.1} parent=1 // pred_fallthru
      _
    // Predicated region
    $region46: #{tpu_custom_call.1} parent=1 // pred_check
      _
    $region47: #{tpu_custom_call.1} parent=1 // pred_check_branch
      %4421 = sbr.rel (0) target = $region49
    $region48: #{tpu_custom_call.1} parent=1 // pred_region
      %s4423 = ssub.s32 128, 128
      %4424 = vsyncadd [#allocation11], %s4423
      %s4426 = sshll.u32 [#allocation10], 4
      %s4427 = int_to_ptr.vmem [resolvable:$true] %s4426
      %4429 = dma.vmem_to_hbm [thread:$0]  %s4427, 128, %s8, [#allocation11]
    $region49: #{tpu_custom_call.1} parent=1 // pred_fallthru
      _
    // Predicated region
    $region50: #{tpu_custom_call.1} parent=1 // pred_check
      _
    $region51: #{tpu_custom_call.1} parent=1 // pred_check_branch
      %4431 = sbr.rel (0) target = $region53
    $region52: #{tpu_custom_call.1} parent=1 // pred_region
      %4432 = dma.done [#allocation5], 2048
    $region53: #{tpu_custom_call.1} parent=1 // pred_fallthru
      _
    // Predicated region
    $region54: #{tpu_custom_call.1} parent=1 // pred_check
      _
    $region55: #{tpu_custom_call.1} parent=1 // pred_check_branch
      %4434 = sbr.rel (0) target = $region57
    $region56: #{tpu_custom_call.1} parent=1 // pred_region
      %4435 = dma.done [#allocation11], 128
    $region57: #{tpu_custom_call.1} parent=1 // pred_fallthru
      _
    %4436 = vsyncpa [#allocation4], 1
    %4437 = vsyncpa [#allocation7], 1
    %4438 = vsyncpa [#allocation5], 1
    %4439 = vsyncpa [#allocation11], 1

</llo_original>
